<compile_context>
chip_gen: v6e
topology: v6e:2x2x1
jax: 0.10.0
libtpu: 0.0.40
codegen_flags: <defaults>
</compile_context>

<pallas_src>
import functools

import jax
import jax.numpy as jnp
import numpy as np
from jax.experimental import pallas as pl
from jax.experimental.pallas import tpu as pltpu

NP = 128  # lane-dense padded width of the final output


def _round_up(x, m):
    return (x + m - 1) // m * m


# ----------------------------------------------------------------------------
# Fused kernel: conv1+bn1+relu -> conv2+bn2+relu -> fc1 -> fc2 (padded output)
# ----------------------------------------------------------------------------
def _fused_cnn_kernel(x_ref, w1_ref, b1_ref, w2_ref, b2_ref,
                      fw1_ref, fb1_ref, fw2_ref, fb2_ref,
                      o_ref, h1_ref, h2_ref, *,
                      B, H, W, C, Ho2, Wo2):
    HW = H * W
    R1 = h1_ref.shape[0]          # rows of conv1 output kept (padded full frame)
    R2 = h2_ref.shape[0]          # rows of conv2 output kept
    C1 = h1_ref.shape[1]          # 16
    C2 = h2_ref.shape[1]          # 32

    def conv3x3_relu(src_ref, w_ref, bias_row, n_rows, c_in):
        # VALID 3x3 conv as 9 shifted-row matmuls on the flattened NHWC frame.
        # Rows whose spatial position is outside the valid window get garbage;
        # they are never consumed by valid downstream positions.
        acc = None
        for di in range(3):
            for dj in range(3):
                shift = di * W + dj                     # static row shift
                tap = di * 3 + dj
                patch = src_ref[shift:shift + n_rows, :]            # (n_rows, c_in)
                wt = w_ref[tap * c_in:(tap + 1) * c_in, :]          # (c_in, c_out)
                part = jnp.dot(patch, wt, preferred_element_type=jnp.float32)
                acc = part if acc is None else acc + part
        return jnp.maximum(acc + bias_row, 0.0)

    # conv1 + bn1 + relu  (BN scale folded into w1, conv bias + BN shift in b1)
    h1_ref[...] = conv3x3_relu(x_ref, w1_ref, b1_ref[...], R1, C)
    # conv2 + bn2 + relu
    h2_ref[...] = conv3x3_relu(h1_ref, w2_ref, b2_ref[...], R2, C1)

    # fc1 + fc2.  PyTorch's NCHW flatten is folded into fw1's row ordering:
    # fc1(x) = sum_s  h2[row(b, s), :] @ fw1[s*C2:(s+1)*C2, :]  + fc1_b
    offs = [ho * W + wo for ho in range(Ho2) for wo in range(Wo2)]
    for b in range(B):            # static Python loop (B is tiny)
        acc = fb1_ref[...]                                           # (1, C2)
        for s, off in enumerate(offs):
            row = h2_ref[b * HW + off:b * HW + off + 1, :]           # (1, C2)
            acc = acc + jnp.dot(row, fw1_ref[s * C2:(s + 1) * C2, :],
                                preferred_element_type=jnp.float32)
        out_b = jnp.dot(acc, fw2_ref[...],
                        preferred_element_type=jnp.float32) + fb2_ref[...]
        o_ref[b:b + 1, :] = out_b.astype(o_ref.dtype)                # lane-dense


# ----------------------------------------------------------------------------
# One-time parameter folding (BN fold, conv-weight layout, flatten permutation,
# lane padding of the final layer).
# ----------------------------------------------------------------------------
def fold_params(params, eps=1e-5):
    c1 = params["conv1_w"].shape[0]          # 16
    c2 = params["conv2_w"].shape[0]          # 32
    c_in = params["conv1_w"].shape[1]

    s1 = params["bn1_gamma"] / jnp.sqrt(params["bn1_var"] + eps)
    s2 = params["bn2_gamma"] / jnp.sqrt(params["bn2_var"] + eps)

    # conv weights: rows ordered (di, dj, c_in), BN scale folded into columns.
    w1 = (params["conv1_w"] * s1[:, None, None, None]
          ).transpose(2, 3, 1, 0).reshape(9 * c_in, c1)
    b1 = (params["bn1_beta"] + s1 * (params["conv1_b"] - params["bn1_mean"])
          ).reshape(1, c1)
    w2 = (params["conv2_w"] * s2[:, None, None, None]
          ).transpose(2, 3, 1, 0).reshape(9 * c1, c2)
    b2 = (params["bn2_beta"] + s2 * (params["conv2_b"] - params["bn2_mean"])
          ).reshape(1, c2)

    # fc1: PyTorch flatten index = c*S + s  (S = Ho2*Wo2 spatial positions).
    fc1_w = params["fc1_w"]                                  # (32, 192)
    n_out1 = fc1_w.shape[0]
    S = fc1_w.shape[1] // c2
    fw1 = fc1_w.reshape(n_out1, c2, S).transpose(2, 1, 0).reshape(S * c2, n_out1)
    fb1 = params["fc1_b"].reshape(1, n_out1)

    # fc2: pad output columns to 128 lanes with zeros (sliced off in wrapper).
    n_act = params["fc2_w"].shape[0]
    fw2 = jnp.zeros((n_out1, NP), jnp.float32).at[:, :n_act].set(params["fc2_w"].T)
    fb2 = jnp.zeros((1, NP), jnp.float32).at[:, :n_act].set(
        params["fc2_b"].reshape(1, n_act))

    f32 = lambda a: a.astype(jnp.float32)
    return {"w1": f32(w1), "b1": f32(b1), "w2": f32(w2), "b2": f32(b2),
            "fw1": f32(fw1), "fb1": f32(fb1), "fw2": f32(fw2), "fb2": f32(fb2)}


# ----------------------------------------------------------------------------
# Forward pass: one pallas_call; only input layout + final slice as glue.
# ----------------------------------------------------------------------------
def cnn_forward(folded, x, *, num_action):
    B, C, H, W = x.shape
    Ho2, Wo2 = H - 4, W - 4
    HW = H * W
    R = B * HW
    SH = 2 * W + 2                                  # max row shift of a 3x3 tap
    R2 = _round_up(R, 8)                            # conv2 rows kept
    R1 = _round_up(R2 + SH, 8)                      # conv1 rows kept
    RXP = _round_up(R1 + SH, 8)                     # padded input rows

    # Input glue: NCHW -> flattened NHWC rows (row = b*H*W + h*W + w), zero-pad.
    x_rows = x.transpose(0, 2, 3, 1).reshape(R, C).astype(jnp.float32)
    x_rows = jnp.pad(x_rows, ((0, RXP - R), (0, 0)))

    w1, b1, w2, b2 = folded["w1"], folded["b1"], folded["w2"], folded["b2"]
    fw1, fb1, fw2, fb2 = folded["fw1"], folded["fb1"], folded["fw2"], folded["fb2"]
    C1, C2 = w1.shape[1], w2.shape[1]

    flops = 2 * (R1 * 9 * C * C1 + R2 * 9 * C1 * C2
                 + B * Ho2 * Wo2 * C2 * fw1.shape[1] + B * fw2.shape[0] * NP)
    bytes_accessed = 4 * (x_rows.size + w1.size + b1.size + w2.size + b2.size
                          + fw1.size + fb1.size + fw2.size + fb2.size + B * NP)

    kernel = functools.partial(_fused_cnn_kernel,
                               B=B, H=H, W=W, C=C, Ho2=Ho2, Wo2=Wo2)
    full = lambda shape: pl.BlockSpec(shape, lambda i: (0, 0))

    out = pl.pallas_call(
        kernel,
        out_shape=jax.ShapeDtypeStruct((B, NP), jnp.float32),
        grid=(1,),
        in_specs=[full(x_rows.shape), full(w1.shape), full(b1.shape),
                  full(w2.shape), full(b2.shape), full(fw1.shape),
                  full(fb1.shape), full(fw2.shape), full(fb2.shape)],
        out_specs=full((B, NP)),
        scratch_shapes=[pltpu.VMEM((R1, C1), jnp.float32),
                        pltpu.VMEM((R2, C2), jnp.float32)],
        compiler_params=pltpu.CompilerParams(
            dimension_semantics=("arbitrary",)),
        cost_estimate=pl.CostEstimate(flops=flops, transcendentals=0,
                                      bytes_accessed=bytes_accessed),
    )(x_rows, w1, b1, w2, b2, fw1, fb1, fw2, fb2)

    return out[:, :num_action]


# ----------------------------------------------------------------------------
# Deterministic parameter init (shapes from CNN.__init__)
# ----------------------------------------------------------------------------
def init_params(key, num_channel, num_action):
    ks = jax.random.split(key, 16)

    def n(k, shape, s=0.1):
        return (s * jax.random.normal(k, shape)).astype(jnp.float32)

    return {
        "conv1_w": n(ks[0], (16, num_channel, 3, 3)),
        "conv1_b": n(ks[1], (16,)),
        "bn1_gamma": 1.0 + n(ks[2], (16,)),
        "bn1_beta": n(ks[3], (16,)),
        "bn1_mean": n(ks[4], (16,)),
        "bn1_var": 0.5 + jnp.abs(n(ks[5], (16,))),
        "conv2_w": n(ks[6], (32, 16, 3, 3)),
        "conv2_b": n(ks[7], (32,)),
        "bn2_gamma": 1.0 + n(ks[8], (32,)),
        "bn2_beta": n(ks[9], (32,)),
        "bn2_mean": n(ks[10], (32,)),
        "bn2_var": 0.5 + jnp.abs(n(ks[11], (32,))),
        "fc1_w": n(ks[12], (32, 192)),
        "fc1_b": n(ks[13], (32,)),
        "fc2_w": n(ks[14], (num_action, 32)),
        "fc2_b": n(ks[15], (num_action,)),
    }


# ----------------------------------------------------------------------------
# Pure-JAX reference for correctness checking
# ----------------------------------------------------------------------------
def cnn_forward_ref(params, x):
    eps = 1e-5

    def conv_bn_relu(y, w, b, g, beta, mean, var):
        y = jax.lax.conv_general_dilated(
            y, w, (1, 1), "VALID", dimension_numbers=("NCHW", "OIHW", "NCHW"))
        y = y + b[None, :, None, None]
        y = g[None, :, None, None] * (y - mean[None, :, None, None]) \
            / jnp.sqrt(var + eps)[None, :, None, None] + beta[None, :, None, None]
        return jnp.maximum(y, 0.0)

    y = conv_bn_relu(x, params["conv1_w"], params["conv1_b"], params["bn1_gamma"],
                     params["bn1_beta"], params["bn1_mean"], params["bn1_var"])
    y = conv_bn_relu(y, params["conv2_w"], params["conv2_b"], params["bn2_gamma"],
                     params["bn2_beta"], params["bn2_mean"], params["bn2_var"])
    flat = y.reshape(y.shape[0], -1)
    h = flat @ params["fc1_w"].T + params["fc1_b"]
    return h @ params["fc2_w"].T + params["fc2_b"]


if __name__ == "__main__":
    num_channel, num_action = 4, 5
    batch, H, W = 2, 6, 7        # (H-4)*(W-4)*32 = 2*3*32 = 192 -> matches fc1

    key = jax.random.PRNGKey(0)
    kx, kp = jax.random.split(key)
    x = jax.random.normal(kx, (batch, num_channel, H, W), dtype=jnp.float32)
    params = init_params(kp, num_channel, num_action)
    folded = fold_params(params)                 # one-time weight prep

    fwd = jax.jit(cnn_forward, static_argnames=("num_action",))
    out = fwd(folded, x, num_action=num_action)
    out = jax.block_until_ready(out)

    ref = cnn_forward_ref(params, x)
    np.testing.assert_allclose(np.asarray(out), np.asarray(ref), rtol=1e-4, atol=1e-4)

    assert out.shape == (batch, num_action)
    print("KERNEL_OK")
</pallas_src>

<mosaic_0001>
module attributes {stable_mosaic.version = 11 : i64} {
  func.func @_fused_cnn_kernel(%arg0: i32, %arg1: memref<120x4xf32, #tpu.memory_space<vmem>>, %arg2: memref<36x16xf32, #tpu.memory_space<vmem>>, %arg3: memref<1x16xf32, #tpu.memory_space<vmem>>, %arg4: memref<144x32xf32, #tpu.memory_space<vmem>>, %arg5: memref<1x32xf32, #tpu.memory_space<vmem>>, %arg6: memref<192x32xf32, #tpu.memory_space<vmem>>, %arg7: memref<1x32xf32, #tpu.memory_space<vmem>>, %arg8: memref<32x128xf32, #tpu.memory_space<vmem>>, %arg9: memref<1x128xf32, #tpu.memory_space<vmem>>, %arg10: memref<2x128xf32, #tpu.memory_space<vmem>>, %arg11: memref<104x16xf32, #tpu.memory_space<vmem>>, %arg12: memref<88x32xf32, #tpu.memory_space<vmem>>) attributes {dimension_semantics = [#tpu.dimension_semantics<arbitrary>], iteration_bounds = array<i64: 1>, scalar_prefetch = 0 : i64, scratch_operands = 2 : i64, tpu.core_type = #tpu.core_type<tc>, window_params = [{pipeline_mode = #tpu.pipeline_mode<synchronous>, transform_indices = @transform_0, window_bounds = array<i64: 120, 4>}, {pipeline_mode = #tpu.pipeline_mode<synchronous>, transform_indices = @transform_1, window_bounds = array<i64: 36, 16>}, {pipeline_mode = #tpu.pipeline_mode<synchronous>, transform_indices = @transform_2, window_bounds = array<i64: 1, 16>}, {pipeline_mode = #tpu.pipeline_mode<synchronous>, transform_indices = @transform_3, window_bounds = array<i64: 144, 32>}, {pipeline_mode = #tpu.pipeline_mode<synchronous>, transform_indices = @transform_4, window_bounds = array<i64: 1, 32>}, {pipeline_mode = #tpu.pipeline_mode<synchronous>, transform_indices = @transform_5, window_bounds = array<i64: 192, 32>}, {pipeline_mode = #tpu.pipeline_mode<synchronous>, transform_indices = @transform_6, window_bounds = array<i64: 1, 32>}, {pipeline_mode = #tpu.pipeline_mode<synchronous>, transform_indices = @transform_7, window_bounds = array<i64: 32, 128>}, {pipeline_mode = #tpu.pipeline_mode<synchronous>, transform_indices = @transform_8, window_bounds = array<i64: 1, 128>}, {pipeline_mode = #tpu.pipeline_mode<synchronous>, transform_indices = @transform_9, window_bounds = array<i64: 2, 128>}]} {
    %c0 = arith.constant 0 : index
    %c0_0 = arith.constant 0 : index
    %0 = vector.load %arg3[%c0, %c0_0] : memref<1x16xf32, #tpu.memory_space<vmem>>, vector<1x16xf32>
    %c0_1 = arith.constant 0 : index
    %c0_2 = arith.constant 0 : index
    %1 = vector.load %arg1[%c0_1, %c0_2] : memref<120x4xf32, #tpu.memory_space<vmem>>, vector<104x4xf32>
    %c0_3 = arith.constant 0 : index
    %c0_4 = arith.constant 0 : index
    %2 = vector.load %arg2[%c0_3, %c0_4] : memref<36x16xf32, #tpu.memory_space<vmem>>, vector<4x16xf32>
    %cst = arith.constant dense<0.000000e+00> : vector<104x16xf32>
    %3 = tpu.matmul %1, %2, %cst {dimension_numbers = #tpu.dot_dimension_numbers<[1], [0], [0], [1], [0, 0, 1, 1], [], []>} : vector<104x4xf32>, vector<4x16xf32>, vector<104x16xf32> -> vector<104x16xf32>
    %c1 = arith.constant 1 : index
    %c0_5 = arith.constant 0 : index
    %4 = vector.load %arg1[%c1, %c0_5] : memref<120x4xf32, #tpu.memory_space<vmem>>, vector<104x4xf32>
    %c4 = arith.constant 4 : index
    %c0_6 = arith.constant 0 : index
    %5 = vector.load %arg2[%c4, %c0_6] : memref<36x16xf32, #tpu.memory_space<vmem>>, vector<4x16xf32>
    %cst_7 = arith.constant dense<0.000000e+00> : vector<104x16xf32>
    %6 = tpu.matmul %4, %5, %cst_7 {dimension_numbers = #tpu.dot_dimension_numbers<[1], [0], [0], [1], [0, 0, 1, 1], [], []>} : vector<104x4xf32>, vector<4x16xf32>, vector<104x16xf32> -> vector<104x16xf32>
    %7 = arith.addf %3, %6 : vector<104x16xf32>
    %c2 = arith.constant 2 : index
    %c0_8 = arith.constant 0 : index
    %8 = vector.load %arg1[%c2, %c0_8] : memref<120x4xf32, #tpu.memory_space<vmem>>, vector<104x4xf32>
    %c8 = arith.constant 8 : index
    %c0_9 = arith.constant 0 : index
    %9 = vector.load %arg2[%c8, %c0_9] : memref<36x16xf32, #tpu.memory_space<vmem>>, vector<4x16xf32>
    %cst_10 = arith.constant dense<0.000000e+00> : vector<104x16xf32>
    %10 = tpu.matmul %8, %9, %cst_10 {dimension_numbers = #tpu.dot_dimension_numbers<[1], [0], [0], [1], [0, 0, 1, 1], [], []>} : vector<104x4xf32>, vector<4x16xf32>, vector<104x16xf32> -> vector<104x16xf32>
    %11 = arith.addf %7, %10 : vector<104x16xf32>
    %c7 = arith.constant 7 : index
    %c0_11 = arith.constant 0 : index
    %12 = vector.load %arg1[%c7, %c0_11] : memref<120x4xf32, #tpu.memory_space<vmem>>, vector<104x4xf32>
    %c12 = arith.constant 12 : index
    %c0_12 = arith.constant 0 : index
    %13 = vector.load %arg2[%c12, %c0_12] : memref<36x16xf32, #tpu.memory_space<vmem>>, vector<4x16xf32>
    %cst_13 = arith.constant dense<0.000000e+00> : vector<104x16xf32>
    %14 = tpu.matmul %12, %13, %cst_13 {dimension_numbers = #tpu.dot_dimension_numbers<[1], [0], [0], [1], [0, 0, 1, 1], [], []>} : vector<104x4xf32>, vector<4x16xf32>, vector<104x16xf32> -> vector<104x16xf32>
    %15 = arith.addf %11, %14 : vector<104x16xf32>
    %c8_14 = arith.constant 8 : index
    %c0_15 = arith.constant 0 : index
    %16 = vector.load %arg1[%c8_14, %c0_15] : memref<120x4xf32, #tpu.memory_space<vmem>>, vector<104x4xf32>
    %c16 = arith.constant 16 : index
    %c0_16 = arith.constant 0 : index
    %17 = vector.load %arg2[%c16, %c0_16] : memref<36x16xf32, #tpu.memory_space<vmem>>, vector<4x16xf32>
    %cst_17 = arith.constant dense<0.000000e+00> : vector<104x16xf32>
    %18 = tpu.matmul %16, %17, %cst_17 {dimension_numbers = #tpu.dot_dimension_numbers<[1], [0], [0], [1], [0, 0, 1, 1], [], []>} : vector<104x4xf32>, vector<4x16xf32>, vector<104x16xf32> -> vector<104x16xf32>
    %19 = arith.addf %15, %18 : vector<104x16xf32>
    %c9 = arith.constant 9 : index
    %c0_18 = arith.constant 0 : index
    %20 = vector.load %arg1[%c9, %c0_18] : memref<120x4xf32, #tpu.memory_space<vmem>>, vector<104x4xf32>
    %c20 = arith.constant 20 : index
    %c0_19 = arith.constant 0 : index
    %21 = vector.load %arg2[%c20, %c0_19] : memref<36x16xf32, #tpu.memory_space<vmem>>, vector<4x16xf32>
    %cst_20 = arith.constant dense<0.000000e+00> : vector<104x16xf32>
    %22 = tpu.matmul %20, %21, %cst_20 {dimension_numbers = #tpu.dot_dimension_numbers<[1], [0], [0], [1], [0, 0, 1, 1], [], []>} : vector<104x4xf32>, vector<4x16xf32>, vector<104x16xf32> -> vector<104x16xf32>
    %23 = arith.addf %19, %22 : vector<104x16xf32>
    %c14 = arith.constant 14 : index
    %c0_21 = arith.constant 0 : index
    %24 = vector.load %arg1[%c14, %c0_21] : memref<120x4xf32, #tpu.memory_space<vmem>>, vector<104x4xf32>
    %c24 = arith.constant 24 : index
    %c0_22 = arith.constant 0 : index
    %25 = vector.load %arg2[%c24, %c0_22] : memref<36x16xf32, #tpu.memory_space<vmem>>, vector<4x16xf32>
    %cst_23 = arith.constant dense<0.000000e+00> : vector<104x16xf32>
    %26 = tpu.matmul %24, %25, %cst_23 {dimension_numbers = #tpu.dot_dimension_numbers<[1], [0], [0], [1], [0, 0, 1, 1], [], []>} : vector<104x4xf32>, vector<4x16xf32>, vector<104x16xf32> -> vector<104x16xf32>
    %27 = arith.addf %23, %26 : vector<104x16xf32>
    %c15 = arith.constant 15 : index
    %c0_24 = arith.constant 0 : index
    %28 = vector.load %arg1[%c15, %c0_24] : memref<120x4xf32, #tpu.memory_space<vmem>>, vector<104x4xf32>
    %c28 = arith.constant 28 : index
    %c0_25 = arith.constant 0 : index
    %29 = vector.load %arg2[%c28, %c0_25] : memref<36x16xf32, #tpu.memory_space<vmem>>, vector<4x16xf32>
    %cst_26 = arith.constant dense<0.000000e+00> : vector<104x16xf32>
    %30 = tpu.matmul %28, %29, %cst_26 {dimension_numbers = #tpu.dot_dimension_numbers<[1], [0], [0], [1], [0, 0, 1, 1], [], []>} : vector<104x4xf32>, vector<4x16xf32>, vector<104x16xf32> -> vector<104x16xf32>
    %31 = arith.addf %27, %30 : vector<104x16xf32>
    %c16_27 = arith.constant 16 : index
    %c0_28 = arith.constant 0 : index
    %32 = vector.load %arg1[%c16_27, %c0_28] : memref<120x4xf32, #tpu.memory_space<vmem>>, vector<104x4xf32>
    %c32 = arith.constant 32 : index
    %c0_29 = arith.constant 0 : index
    %33 = vector.load %arg2[%c32, %c0_29] : memref<36x16xf32, #tpu.memory_space<vmem>>, vector<4x16xf32>
    %cst_30 = arith.constant dense<0.000000e+00> : vector<104x16xf32>
    %34 = tpu.matmul %32, %33, %cst_30 {dimension_numbers = #tpu.dot_dimension_numbers<[1], [0], [0], [1], [0, 0, 1, 1], [], []>} : vector<104x4xf32>, vector<4x16xf32>, vector<104x16xf32> -> vector<104x16xf32>
    %35 = arith.addf %31, %34 : vector<104x16xf32>
    %36 = vector.broadcast %0 : vector<1x16xf32> to vector<104x16xf32>
    %37 = arith.addf %35, %36 : vector<104x16xf32>
    %cst_31 = arith.constant 0.000000e+00 : f32
    %38 = vector.broadcast %cst_31 : f32 to vector<104x16xf32>
    %39 = arith.maximumf %37, %38 : vector<104x16xf32>
    %c0_32 = arith.constant 0 : index
    %c0_33 = arith.constant 0 : index
    %40 = vector.load %arg11[%c0_32, %c0_33] : memref<104x16xf32, #tpu.memory_space<vmem>>, vector<104x16xf32>
    tpu.vector_store %arg11[%c0_32, %c0_33], %39 {strides = array<i32>} : memref<104x16xf32, #tpu.memory_space<vmem>>, vector<104x16xf32>,
    %c0_34 = arith.constant 0 : index
    %c0_35 = arith.constant 0 : index
    %41 = vector.load %arg5[%c0_34, %c0_35] : memref<1x32xf32, #tpu.memory_space<vmem>>, vector<1x32xf32>
    %c0_36 = arith.constant 0 : index
    %c0_37 = arith.constant 0 : index
    %42 = vector.load %arg11[%c0_36, %c0_37] : memref<104x16xf32, #tpu.memory_space<vmem>>, vector<88x16xf32>
    %c0_38 = arith.constant 0 : index
    %c0_39 = arith.constant 0 : index
    %43 = vector.load %arg4[%c0_38, %c0_39] : memref<144x32xf32, #tpu.memory_space<vmem>>, vector<16x32xf32>
    %cst_40 = arith.constant dense<0.000000e+00> : vector<88x32xf32>
    %44 = tpu.matmul %42, %43, %cst_40 {dimension_numbers = #tpu.dot_dimension_numbers<[1], [0], [0], [1], [0, 0, 1, 1], [], []>} : vector<88x16xf32>, vector<16x32xf32>, vector<88x32xf32> -> vector<88x32xf32>
    %c1_41 = arith.constant 1 : index
    %c0_42 = arith.constant 0 : index
    %45 = vector.load %arg11[%c1_41, %c0_42] : memref<104x16xf32, #tpu.memory_space<vmem>>, vector<88x16xf32>
    %c16_43 = arith.constant 16 : index
    %c0_44 = arith.constant 0 : index
    %46 = vector.load %arg4[%c16_43, %c0_44] : memref<144x32xf32, #tpu.memory_space<vmem>>, vector<16x32xf32>
    %cst_45 = arith.constant dense<0.000000e+00> : vector<88x32xf32>
    %47 = tpu.matmul %45, %46, %cst_45 {dimension_numbers = #tpu.dot_dimension_numbers<[1], [0], [0], [1], [0, 0, 1, 1], [], []>} : vector<88x16xf32>, vector<16x32xf32>, vector<88x32xf32> -> vector<88x32xf32>
    %48 = arith.addf %44, %47 : vector<88x32xf32>
    %c2_46 = arith.constant 2 : index
    %c0_47 = arith.constant 0 : index
    %49 = vector.load %arg11[%c2_46, %c0_47] : memref<104x16xf32, #tpu.memory_space<vmem>>, vector<88x16xf32>
    %c32_48 = arith.constant 32 : index
    %c0_49 = arith.constant 0 : index
    %50 = vector.load %arg4[%c32_48, %c0_49] : memref<144x32xf32, #tpu.memory_space<vmem>>, vector<16x32xf32>
    %cst_50 = arith.constant dense<0.000000e+00> : vector<88x32xf32>
    %51 = tpu.matmul %49, %50, %cst_50 {dimension_numbers = #tpu.dot_dimension_numbers<[1], [0], [0], [1], [0, 0, 1, 1], [], []>} : vector<88x16xf32>, vector<16x32xf32>, vector<88x32xf32> -> vector<88x32xf32>
    %52 = arith.addf %48, %51 : vector<88x32xf32>
    %c7_51 = arith.constant 7 : index
    %c0_52 = arith.constant 0 : index
    %53 = vector.load %arg11[%c7_51, %c0_52] : memref<104x16xf32, #tpu.memory_space<vmem>>, vector<88x16xf32>
    %c48 = arith.constant 48 : index
    %c0_53 = arith.constant 0 : index
    %54 = vector.load %arg4[%c48, %c0_53] : memref<144x32xf32, #tpu.memory_space<vmem>>, vector<16x32xf32>
    %cst_54 = arith.constant dense<0.000000e+00> : vector<88x32xf32>
    %55 = tpu.matmul %53, %54, %cst_54 {dimension_numbers = #tpu.dot_dimension_numbers<[1], [0], [0], [1], [0, 0, 1, 1], [], []>} : vector<88x16xf32>, vector<16x32xf32>, vector<88x32xf32> -> vector<88x32xf32>
    %56 = arith.addf %52, %55 : vector<88x32xf32>
    %c8_55 = arith.constant 8 : index
    %c0_56 = arith.constant 0 : index
    %57 = vector.load %arg11[%c8_55, %c0_56] : memref<104x16xf32, #tpu.memory_space<vmem>>, vector<88x16xf32>
    %c64 = arith.constant 64 : index
    %c0_57 = arith.constant 0 : index
    %58 = vector.load %arg4[%c64, %c0_57] : memref<144x32xf32, #tpu.memory_space<vmem>>, vector<16x32xf32>
    %cst_58 = arith.constant dense<0.000000e+00> : vector<88x32xf32>
    %59 = tpu.matmul %57, %58, %cst_58 {dimension_numbers = #tpu.dot_dimension_numbers<[1], [0], [0], [1], [0, 0, 1, 1], [], []>} : vector<88x16xf32>, vector<16x32xf32>, vector<88x32xf32> -> vector<88x32xf32>
    %60 = arith.addf %56, %59 : vector<88x32xf32>
    %c9_59 = arith.constant 9 : index
    %c0_60 = arith.constant 0 : index
    %61 = vector.load %arg11[%c9_59, %c0_60] : memref<104x16xf32, #tpu.memory_space<vmem>>, vector<88x16xf32>
    %c80 = arith.constant 80 : index
    %c0_61 = arith.constant 0 : index
    %62 = vector.load %arg4[%c80, %c0_61] : memref<144x32xf32, #tpu.memory_space<vmem>>, vector<16x32xf32>
    %cst_62 = arith.constant dense<0.000000e+00> : vector<88x32xf32>
    %63 = tpu.matmul %61, %62, %cst_62 {dimension_numbers = #tpu.dot_dimension_numbers<[1], [0], [0], [1], [0, 0, 1, 1], [], []>} : vector<88x16xf32>, vector<16x32xf32>, vector<88x32xf32> -> vector<88x32xf32>
    %64 = arith.addf %60, %63 : vector<88x32xf32>
    %c14_63 = arith.constant 14 : index
    %c0_64 = arith.constant 0 : index
    %65 = vector.load %arg11[%c14_63, %c0_64] : memref<104x16xf32, #tpu.memory_space<vmem>>, vector<88x16xf32>
    %c96 = arith.constant 96 : index
    %c0_65 = arith.constant 0 : index
    %66 = vector.load %arg4[%c96, %c0_65] : memref<144x32xf32, #tpu.memory_space<vmem>>, vector<16x32xf32>
    %cst_66 = arith.constant dense<0.000000e+00> : vector<88x32xf32>
    %67 = tpu.matmul %65, %66, %cst_66 {dimension_numbers = #tpu.dot_dimension_numbers<[1], [0], [0], [1], [0, 0, 1, 1], [], []>} : vector<88x16xf32>, vector<16x32xf32>, vector<88x32xf32> -> vector<88x32xf32>
    %68 = arith.addf %64, %67 : vector<88x32xf32>
    %c15_67 = arith.constant 15 : index
    %c0_68 = arith.constant 0 : index
    %69 = vector.load %arg11[%c15_67, %c0_68] : memref<104x16xf32, #tpu.memory_space<vmem>>, vector<88x16xf32>
    %c112 = arith.constant 112 : index
    %c0_69 = arith.constant 0 : index
    %70 = vector.load %arg4[%c112, %c0_69] : memref<144x32xf32, #tpu.memory_space<vmem>>, vector<16x32xf32>
    %cst_70 = arith.constant dense<0.000000e+00> : vector<88x32xf32>
    %71 = tpu.matmul %69, %70, %cst_70 {dimension_numbers = #tpu.dot_dimension_numbers<[1], [0], [0], [1], [0, 0, 1, 1], [], []>} : vector<88x16xf32>, vector<16x32xf32>, vector<88x32xf32> -> vector<88x32xf32>
    %72 = arith.addf %68, %71 : vector<88x32xf32>
    %c16_71 = arith.constant 16 : index
    %c0_72 = arith.constant 0 : index
    %73 = vector.load %arg11[%c16_71, %c0_72] : memref<104x16xf32, #tpu.memory_space<vmem>>, vector<88x16xf32>
    %c128 = arith.constant 128 : index
    %c0_73 = arith.constant 0 : index
    %74 = vector.load %arg4[%c128, %c0_73] : memref<144x32xf32, #tpu.memory_space<vmem>>, vector<16x32xf32>
    %cst_74 = arith.constant dense<0.000000e+00> : vector<88x32xf32>
    %75 = tpu.matmul %73, %74, %cst_74 {dimension_numbers = #tpu.dot_dimension_numbers<[1], [0], [0], [1], [0, 0, 1, 1], [], []>} : vector<88x16xf32>, vector<16x32xf32>, vector<88x32xf32> -> vector<88x32xf32>
    %76 = arith.addf %72, %75 : vector<88x32xf32>
    %77 = vector.broadcast %41 : vector<1x32xf32> to vector<88x32xf32>
    %78 = arith.addf %76, %77 : vector<88x32xf32>
    %cst_75 = arith.constant 0.000000e+00 : f32
    %79 = vector.broadcast %cst_75 : f32 to vector<88x32xf32>
    %80 = arith.maximumf %78, %79 : vector<88x32xf32>
    %c0_76 = arith.constant 0 : index
    %c0_77 = arith.constant 0 : index
    %81 = vector.load %arg12[%c0_76, %c0_77] : memref<88x32xf32, #tpu.memory_space<vmem>>, vector<88x32xf32>
    tpu.vector_store %arg12[%c0_76, %c0_77], %80 {strides = array<i32>} : memref<88x32xf32, #tpu.memory_space<vmem>>, vector<88x32xf32>,
    %c0_78 = arith.constant 0 : index
    %c0_79 = arith.constant 0 : index
    %82 = vector.load %arg7[%c0_78, %c0_79] : memref<1x32xf32, #tpu.memory_space<vmem>>, vector<1x32xf32>
    %c0_80 = arith.constant 0 : index
    %c0_81 = arith.constant 0 : index
    %83 = vector.load %arg12[%c0_80, %c0_81] : memref<88x32xf32, #tpu.memory_space<vmem>>, vector<1x32xf32>
    %c0_82 = arith.constant 0 : index
    %c0_83 = arith.constant 0 : index
    %84 = vector.load %arg6[%c0_82, %c0_83] : memref<192x32xf32, #tpu.memory_space<vmem>>, vector<32x32xf32>
    %cst_84 = arith.constant dense<0.000000e+00> : vector<1x32xf32>
    %85 = tpu.matmul %83, %84, %cst_84 {dimension_numbers = #tpu.dot_dimension_numbers<[1], [0], [0], [1], [0, 0, 1, 1], [], []>} : vector<1x32xf32>, vector<32x32xf32>, vector<1x32xf32> -> vector<1x32xf32>
    %86 = arith.addf %82, %85 : vector<1x32xf32>
    %c1_85 = arith.constant 1 : index
    %c0_86 = arith.constant 0 : index
    %87 = vector.load %arg12[%c1_85, %c0_86] : memref<88x32xf32, #tpu.memory_space<vmem>>, vector<1x32xf32>
    %c32_87 = arith.constant 32 : index
    %c0_88 = arith.constant 0 : index
    %88 = vector.load %arg6[%c32_87, %c0_88] : memref<192x32xf32, #tpu.memory_space<vmem>>, vector<32x32xf32>
    %cst_89 = arith.constant dense<0.000000e+00> : vector<1x32xf32>
    %89 = tpu.matmul %87, %88, %cst_89 {dimension_numbers = #tpu.dot_dimension_numbers<[1], [0], [0], [1], [0, 0, 1, 1], [], []>} : vector<1x32xf32>, vector<32x32xf32>, vector<1x32xf32> -> vector<1x32xf32>
    %90 = arith.addf %86, %89 : vector<1x32xf32>
    %c2_90 = arith.constant 2 : index
    %c0_91 = arith.constant 0 : index
    %91 = vector.load %arg12[%c2_90, %c0_91] : memref<88x32xf32, #tpu.memory_space<vmem>>, vector<1x32xf32>
    %c64_92 = arith.constant 64 : index
    %c0_93 = arith.constant 0 : index
    %92 = vector.load %arg6[%c64_92, %c0_93] : memref<192x32xf32, #tpu.memory_space<vmem>>, vector<32x32xf32>
    %cst_94 = arith.constant dense<0.000000e+00> : vector<1x32xf32>
    %93 = tpu.matmul %91, %92, %cst_94 {dimension_numbers = #tpu.dot_dimension_numbers<[1], [0], [0], [1], [0, 0, 1, 1], [], []>} : vector<1x32xf32>, vector<32x32xf32>, vector<1x32xf32> -> vector<1x32xf32>
    %94 = arith.addf %90, %93 : vector<1x32xf32>
    %c7_95 = arith.constant 7 : index
    %c0_96 = arith.constant 0 : index
    %95 = vector.load %arg12[%c7_95, %c0_96] : memref<88x32xf32, #tpu.memory_space<vmem>>, vector<1x32xf32>
    %c96_97 = arith.constant 96 : index
    %c0_98 = arith.constant 0 : index
    %96 = vector.load %arg6[%c96_97, %c0_98] : memref<192x32xf32, #tpu.memory_space<vmem>>, vector<32x32xf32>
    %cst_99 = arith.constant dense<0.000000e+00> : vector<1x32xf32>
    %97 = tpu.matmul %95, %96, %cst_99 {dimension_numbers = #tpu.dot_dimension_numbers<[1], [0], [0], [1], [0, 0, 1, 1], [], []>} : vector<1x32xf32>, vector<32x32xf32>, vector<1x32xf32> -> vector<1x32xf32>
    %98 = arith.addf %94, %97 : vector<1x32xf32>
    %c8_100 = arith.constant 8 : index
    %c0_101 = arith.constant 0 : index
    %99 = vector.load %arg12[%c8_100, %c0_101] : memref<88x32xf32, #tpu.memory_space<vmem>>, vector<1x32xf32>
    %c128_102 = arith.constant 128 : index
    %c0_103 = arith.constant 0 : index
    %100 = vector.load %arg6[%c128_102, %c0_103] : memref<192x32xf32, #tpu.memory_space<vmem>>, vector<32x32xf32>
    %cst_104 = arith.constant dense<0.000000e+00> : vector<1x32xf32>
    %101 = tpu.matmul %99, %100, %cst_104 {dimension_numbers = #tpu.dot_dimension_numbers<[1], [0], [0], [1], [0, 0, 1, 1], [], []>} : vector<1x32xf32>, vector<32x32xf32>, vector<1x32xf32> -> vector<1x32xf32>
    %102 = arith.addf %98, %101 : vector<1x32xf32>
    %c9_105 = arith.constant 9 : index
    %c0_106 = arith.constant 0 : index
    %103 = vector.load %arg12[%c9_105, %c0_106] : memref<88x32xf32, #tpu.memory_space<vmem>>, vector<1x32xf32>
    %c160 = arith.constant 160 : index
    %c0_107 = arith.constant 0 : index
    %104 = vector.load %arg6[%c160, %c0_107] : memref<192x32xf32, #tpu.memory_space<vmem>>, vector<32x32xf32>
    %cst_108 = arith.constant dense<0.000000e+00> : vector<1x32xf32>
    %105 = tpu.matmul %103, %104, %cst_108 {dimension_numbers = #tpu.dot_dimension_numbers<[1], [0], [0], [1], [0, 0, 1, 1], [], []>} : vector<1x32xf32>, vector<32x32xf32>, vector<1x32xf32> -> vector<1x32xf32>
    %106 = arith.addf %102, %105 : vector<1x32xf32>
    %c0_109 = arith.constant 0 : index
    %c0_110 = arith.constant 0 : index
    %107 = vector.load %arg8[%c0_109, %c0_110] : memref<32x128xf32, #tpu.memory_space<vmem>>, vector<32x128xf32>
    %cst_111 = arith.constant dense<0.000000e+00> : vector<1x128xf32>
    %108 = tpu.matmul %106, %107, %cst_111 {dimension_numbers = #tpu.dot_dimension_numbers<[1], [0], [0], [1], [0, 0, 1, 1], [], []>} : vector<1x32xf32>, vector<32x128xf32>, vector<1x128xf32> -> vector<1x128xf32>
    %c0_112 = arith.constant 0 : index
    %c0_113 = arith.constant 0 : index
    %109 = vector.load %arg9[%c0_112, %c0_113] : memref<1x128xf32, #tpu.memory_space<vmem>>, vector<1x128xf32>
    %110 = arith.addf %108, %109 : vector<1x128xf32>
    %c0_114 = arith.constant 0 : index
    %c0_115 = arith.constant 0 : index
    %111 = vector.load %arg10[%c0_114, %c0_115] : memref<2x128xf32, #tpu.memory_space<vmem>>, vector<1x128xf32>
    tpu.vector_store %arg10[%c0_114, %c0_115], %110 {strides = array<i32>} : memref<2x128xf32, #tpu.memory_space<vmem>>, vector<1x128xf32>,
    %c0_116 = arith.constant 0 : index
    %c0_117 = arith.constant 0 : index
    %112 = vector.load %arg7[%c0_116, %c0_117] : memref<1x32xf32, #tpu.memory_space<vmem>>, vector<1x32xf32>
    %c42 = arith.constant 42 : index
    %c0_118 = arith.constant 0 : index
    %113 = vector.load %arg12[%c42, %c0_118] : memref<88x32xf32, #tpu.memory_space<vmem>>, vector<1x32xf32>
    %c0_119 = arith.constant 0 : index
    %c0_120 = arith.constant 0 : index
    %114 = vector.load %arg6[%c0_119, %c0_120] : memref<192x32xf32, #tpu.memory_space<vmem>>, vector<32x32xf32>
    %cst_121 = arith.constant dense<0.000000e+00> : vector<1x32xf32>
    %115 = tpu.matmul %113, %114, %cst_121 {dimension_numbers = #tpu.dot_dimension_numbers<[1], [0], [0], [1], [0, 0, 1, 1], [], []>} : vector<1x32xf32>, vector<32x32xf32>, vector<1x32xf32> -> vector<1x32xf32>
    %116 = arith.addf %112, %115 : vector<1x32xf32>
    %c43 = arith.constant 43 : index
    %c0_122 = arith.constant 0 : index
    %117 = vector.load %arg12[%c43, %c0_122] : memref<88x32xf32, #tpu.memory_space<vmem>>, vector<1x32xf32>
    %c32_123 = arith.constant 32 : index
    %c0_124 = arith.constant 0 : index
    %118 = vector.load %arg6[%c32_123, %c0_124] : memref<192x32xf32, #tpu.memory_space<vmem>>, vector<32x32xf32>
    %cst_125 = arith.constant dense<0.000000e+00> : vector<1x32xf32>
    %119 = tpu.matmul %117, %118, %cst_125 {dimension_numbers = #tpu.dot_dimension_numbers<[1], [0], [0], [1], [0, 0, 1, 1], [], []>} : vector<1x32xf32>, vector<32x32xf32>, vector<1x32xf32> -> vector<1x32xf32>
    %120 = arith.addf %116, %119 : vector<1x32xf32>
    %c44 = arith.constant 44 : index
    %c0_126 = arith.constant 0 : index
    %121 = vector.load %arg12[%c44, %c0_126] : memref<88x32xf32, #tpu.memory_space<vmem>>, vector<1x32xf32>
    %c64_127 = arith.constant 64 : index
    %c0_128 = arith.constant 0 : index
    %122 = vector.load %arg6[%c64_127, %c0_128] : memref<192x32xf32, #tpu.memory_space<vmem>>, vector<32x32xf32>
    %cst_129 = arith.constant dense<0.000000e+00> : vector<1x32xf32>
    %123 = tpu.matmul %121, %122, %cst_129 {dimension_numbers = #tpu.dot_dimension_numbers<[1], [0], [0], [1], [0, 0, 1, 1], [], []>} : vector<1x32xf32>, vector<32x32xf32>, vector<1x32xf32> -> vector<1x32xf32>
    %124 = arith.addf %120, %123 : vector<1x32xf32>
    %c49 = arith.constant 49 : index
    %c0_130 = arith.constant 0 : index
    %125 = vector.load %arg12[%c49, %c0_130] : memref<88x32xf32, #tpu.memory_space<vmem>>, vector<1x32xf32>
    %c96_131 = arith.constant 96 : index
    %c0_132 = arith.constant 0 : index
    %126 = vector.load %arg6[%c96_131, %c0_132] : memref<192x32xf32, #tpu.memory_space<vmem>>, vector<32x32xf32>
    %cst_133 = arith.constant dense<0.000000e+00> : vector<1x32xf32>
    %127 = tpu.matmul %125, %126, %cst_133 {dimension_numbers = #tpu.dot_dimension_numbers<[1], [0], [0], [1], [0, 0, 1, 1], [], []>} : vector<1x32xf32>, vector<32x32xf32>, vector<1x32xf32> -> vector<1x32xf32>
    %128 = arith.addf %124, %127 : vector<1x32xf32>
    %c50 = arith.constant 50 : index
    %c0_134 = arith.constant 0 : index
    %129 = vector.load %arg12[%c50, %c0_134] : memref<88x32xf32, #tpu.memory_space<vmem>>, vector<1x32xf32>
    %c128_135 = arith.constant 128 : index
    %c0_136 = arith.constant 0 : index
    %130 = vector.load %arg6[%c128_135, %c0_136] : memref<192x32xf32, #tpu.memory_space<vmem>>, vector<32x32xf32>
    %cst_137 = arith.constant dense<0.000000e+00> : vector<1x32xf32>
    %131 = tpu.matmul %129, %130, %cst_137 {dimension_numbers = #tpu.dot_dimension_numbers<[1], [0], [0], [1], [0, 0, 1, 1], [], []>} : vector<1x32xf32>, vector<32x32xf32>, vector<1x32xf32> -> vector<1x32xf32>
    %132 = arith.addf %128, %131 : vector<1x32xf32>
    %c51 = arith.constant 51 : index
    %c0_138 = arith.constant 0 : index
    %133 = vector.load %arg12[%c51, %c0_138] : memref<88x32xf32, #tpu.memory_space<vmem>>, vector<1x32xf32>
    %c160_139 = arith.constant 160 : index
    %c0_140 = arith.constant 0 : index
    %134 = vector.load %arg6[%c160_139, %c0_140] : memref<192x32xf32, #tpu.memory_space<vmem>>, vector<32x32xf32>
    %cst_141 = arith.constant dense<0.000000e+00> : vector<1x32xf32>
    %135 = tpu.matmul %133, %134, %cst_141 {dimension_numbers = #tpu.dot_dimension_numbers<[1], [0], [0], [1], [0, 0, 1, 1], [], []>} : vector<1x32xf32>, vector<32x32xf32>, vector<1x32xf32> -> vector<1x32xf32>
    %136 = arith.addf %132, %135 : vector<1x32xf32>
    %c0_142 = arith.constant 0 : index
    %c0_143 = arith.constant 0 : index
    %137 = vector.load %arg8[%c0_142, %c0_143] : memref<32x128xf32, #tpu.memory_space<vmem>>, vector<32x128xf32>
    %cst_144 = arith.constant dense<0.000000e+00> : vector<1x128xf32>
    %138 = tpu.matmul %136, %137, %cst_144 {dimension_numbers = #tpu.dot_dimension_numbers<[1], [0], [0], [1], [0, 0, 1, 1], [], []>} : vector<1x32xf32>, vector<32x128xf32>, vector<1x128xf32> -> vector<1x128xf32>
    %c0_145 = arith.constant 0 : index
    %c0_146 = arith.constant 0 : index
    %139 = vector.load %arg9[%c0_145, %c0_146] : memref<1x128xf32, #tpu.memory_space<vmem>>, vector<1x128xf32>
    %140 = arith.addf %138, %139 : vector<1x128xf32>
    %c1_147 = arith.constant 1 : index
    %c0_148 = arith.constant 0 : index
    %141 = vector.load %arg10[%c1_147, %c0_148] : memref<2x128xf32, #tpu.memory_space<vmem>>, vector<1x128xf32>
    tpu.vector_store %arg10[%c1_147, %c0_148], %140 {strides = array<i32>} : memref<2x128xf32, #tpu.memory_space<vmem>>, vector<1x128xf32>,
    return
  }
  func.func @transform_0(%arg0: i32) -> (i32, i32) {
    %c0_i32 = arith.constant 0 : i32
    %c0_i32_0 = arith.constant 0 : i32
    %c0_i32_1 = arith.constant 0 : i32
    return %c0_i32, %c0_i32_0 : i32, i32
  }
  func.func @transform_1(%arg0: i32) -> (i32, i32) {
    %c0_i32 = arith.constant 0 : i32
    %c0_i32_0 = arith.constant 0 : i32
    %c0_i32_1 = arith.constant 0 : i32
    return %c0_i32, %c0_i32_0 : i32, i32
  }
  func.func @transform_2(%arg0: i32) -> (i32, i32) {
    %c0_i32 = arith.constant 0 : i32
    %c0_i32_0 = arith.constant 0 : i32
    %c0_i32_1 = arith.constant 0 : i32
    return %c0_i32, %c0_i32_0 : i32, i32
  }
  func.func @transform_3(%arg0: i32) -> (i32, i32) {
    %c0_i32 = arith.constant 0 : i32
    %c0_i32_0 = arith.constant 0 : i32
    %c0_i32_1 = arith.constant 0 : i32
    return %c0_i32, %c0_i32_0 : i32, i32
  }
  func.func @transform_4(%arg0: i32) -> (i32, i32) {
    %c0_i32 = arith.constant 0 : i32
    %c0_i32_0 = arith.constant 0 : i32
    %c0_i32_1 = arith.constant 0 : i32
    return %c0_i32, %c0_i32_0 : i32, i32
  }
  func.func @transform_5(%arg0: i32) -> (i32, i32) {
    %c0_i32 = arith.constant 0 : i32
    %c0_i32_0 = arith.constant 0 : i32
    %c0_i32_1 = arith.constant 0 : i32
    return %c0_i32, %c0_i32_0 : i32, i32
  }
  func.func @transform_6(%arg0: i32) -> (i32, i32) {
    %c0_i32 = arith.constant 0 : i32
    %c0_i32_0 = arith.constant 0 : i32
    %c0_i32_1 = arith.constant 0 : i32
    return %c0_i32, %c0_i32_0 : i32, i32
  }
  func.func @transform_7(%arg0: i32) -> (i32, i32) {
    %c0_i32 = arith.constant 0 : i32
    %c0_i32_0 = arith.constant 0 : i32
    %c0_i32_1 = arith.constant 0 : i32
    return %c0_i32, %c0_i32_0 : i32, i32
  }
  func.func @transform_8(%arg0: i32) -> (i32, i32) {
    %c0_i32 = arith.constant 0 : i32
    %c0_i32_0 = arith.constant 0 : i32
    %c0_i32_1 = arith.constant 0 : i32
    return %c0_i32, %c0_i32_0 : i32, i32
  }
  func.func @transform_9(%arg0: i32) -> (i32, i32) {
    %c0_i32 = arith.constant 0 : i32
    %c0_i32_0 = arith.constant 0 : i32
    %c0_i32_1 = arith.constant 0 : i32
    return %c0_i32, %c0_i32_0 : i32, i32
  }
}

</mosaic_0001>

<llo_original>
// kernel: cnn_forward.1
$region0: #{cnn_forward.1}
  #allocation0 [shape = 'u32[]', space=smem, size = 0x4, offset = 0x4, fixed_abs, tag = 'smem constant byte address 0x4 - core index']
  #allocation1 [shape = 'u32[144,128]{1,0:T(1,128)}', space=vmem, size = 0x12000, scoped, tag = 'internal scratch']
  #allocation2 [shape = 'f32[104,16]{1,0:T(8,128)}', space=vmem, size = 0xd000, scoped, tag = 'scratch operand']
  #allocation3 [shape = 'f32[88,32]{1,0:T(8,128)}', space=vmem, size = 0xb000, scoped, tag = 'scratch operand']
  %s0 = inlined_call_operand.vmem [shape: f32[120,4], index: 0, kind: input, shape index: {}]
  %s1 = inlined_call_operand.vmem [shape: f32[36,16], index: 1, kind: input, shape index: {}]
  %s2 = inlined_call_operand.vmem [shape: f32[1,16], index: 2, kind: input, shape index: {}]
  %s3 = inlined_call_operand.vmem [shape: f32[144,32], index: 3, kind: input, shape index: {}]
  %s4 = inlined_call_operand.vmem [shape: f32[1,32], index: 4, kind: input, shape index: {}]
  %s5 = inlined_call_operand.vmem [shape: f32[192,32], index: 5, kind: input, shape index: {}]
  %s6 = inlined_call_operand.vmem [shape: f32[1,32], index: 6, kind: input, shape index: {}]
  %s7 = inlined_call_operand.vmem [shape: f32[32,128], index: 7, kind: input, shape index: {}]
  %s8 = inlined_call_operand.vmem [shape: f32[1,128], index: 8, kind: input, shape index: {}]
  %s9 = inlined_call_operand.hbm [shape: f32[2,128], index: 9, kind: output, shape index: {}]
  %s10 = sld [smem:[#allocation0]]
  $region46: #{cnn_forward.1} parent=0
    _
  %s12 = ssub.s32 1, %s10
  %s13 = scalar_select 0, %s12, %s10
  $region1: #{cnn_forward.1} parent=0
    #allocation4 [shape = 'u8[1024]{0}', space=vmem, size = 0x400, scoped, tag = 'output window, operand 0, single buffered']
    #allocation5 [shape = 's32[1]{0}', space=sflag, size = 0x4, scoped, tag = 'scoped memory for cnn_forward.1']
    %14 = vsyncpa [#allocation5], 0
    // Predicated region
    $region2: #{cnn_forward.1} parent=1 // pred_check
      _
    $region3: #{cnn_forward.1} parent=1 // pred_check_branch
      %16 = sbr.rel (0) target = $region5
    $region4: #{cnn_forward.1} parent=1 // pred_region
      _
    $region5: #{cnn_forward.1} parent=1 // pred_fallthru
      _
    // Predicated region
    $region6: #{cnn_forward.1} parent=1 // pred_check
      _
    $region7: #{cnn_forward.1} parent=1 // pred_check_branch
      %18 = sbr.rel (0) target = $region9
    $region8: #{cnn_forward.1} parent=1 // pred_region
      _
    $region9: #{cnn_forward.1} parent=1 // pred_fallthru
      _
    // Predicated region
    $region10: #{cnn_forward.1} parent=1 // pred_check
      _
    $region11: #{cnn_forward.1} parent=1 // pred_check_branch
      %20 = sbr.rel (0) target = $region13
    $region12: #{cnn_forward.1} parent=1 // pred_region
      _
    $region13: #{cnn_forward.1} parent=1 // pred_fallthru
      _
    // Predicated region
    $region14: #{cnn_forward.1} parent=1 // pred_check
      _
    $region15: #{cnn_forward.1} parent=1 // pred_check_branch
      %22 = sbr.rel (0) target = $region17
    $region16: #{cnn_forward.1} parent=1 // pred_region
      _
    $region17: #{cnn_forward.1} parent=1 // pred_fallthru
      _
    // Predicated region
    $region18: #{cnn_forward.1} parent=1 // pred_check
      _
    $region19: #{cnn_forward.1} parent=1 // pred_check_branch
      %24 = sbr.rel (0) target = $region21
    $region20: #{cnn_forward.1} parent=1 // pred_region
      _
    $region21: #{cnn_forward.1} parent=1 // pred_fallthru
      _
    // Predicated region
    $region22: #{cnn_forward.1} parent=1 // pred_check
      _
    $region23: #{cnn_forward.1} parent=1 // pred_check_branch
      %26 = sbr.rel (0) target = $region25
    $region24: #{cnn_forward.1} parent=1 // pred_region
      _
    $region25: #{cnn_forward.1} parent=1 // pred_fallthru
      _
    // Predicated region
    $region26: #{cnn_forward.1} parent=1 // pred_check
      _
    $region27: #{cnn_forward.1} parent=1 // pred_check_branch
      %28 = sbr.rel (0) target = $region29
    $region28: #{cnn_forward.1} parent=1 // pred_region
      _
    $region29: #{cnn_forward.1} parent=1 // pred_fallthru
      _
    // Predicated region
    $region30: #{cnn_forward.1} parent=1 // pred_check
      _
    $region31: #{cnn_forward.1} parent=1 // pred_check_branch
      %30 = sbr.rel (0) target = $region33
    $region32: #{cnn_forward.1} parent=1 // pred_region
      _
    $region33: #{cnn_forward.1} parent=1 // pred_fallthru
      _
    // Predicated region
    $region34: #{cnn_forward.1} parent=1 // pred_check
      _
    $region35: #{cnn_forward.1} parent=1 // pred_check_branch
      %32 = sbr.rel (0) target = $region37
    $region36: #{cnn_forward.1} parent=1 // pred_region
      _
    $region37: #{cnn_forward.1} parent=1 // pred_fallthru
      _
    %v33 = vld [vmem:[%s2] sm:$0x1]
    %v34 = vld [vmem:[%s0] sm:$0xff]
    %v35 = vld [vmem:[%s0 + $0x8] sm:$0xff]
    %v36 = vld [vmem:[%s0 + $0x10] sm:$0xff]
    %v37 = vld [vmem:[%s0 + $0x18] sm:$0xff]
    %v38 = vld [vmem:[%s0 + $0x20] sm:$0xff]
    %v39 = vld [vmem:[%s0 + $0x28] sm:$0xff]
    %v40 = vld [vmem:[%s0 + $0x30] sm:$0xff]
    %v41 = vld [vmem:[%s0 + $0x38] sm:$0xff]
    %v42 = vld [vmem:[%s0 + $0x40] sm:$0xff]
    %v43 = vld [vmem:[%s0 + $0x48] sm:$0xff]
    %v44 = vld [vmem:[%s0 + $0x50] sm:$0xff]
    %v45 = vld [vmem:[%s0 + $0x58] sm:$0xff]
    %v46 = vld [vmem:[%s0 + $0x60] sm:$0xff]
    %v47 = vld [vmem:[%s1] sm:$0xf]
    %v48 = vld [vmem:[%s0 + $0x1] sm:$0xff]
    %v49 = vld [vmem:[%s0 + $0x9] sm:$0xff]
    %v50 = vld [vmem:[%s0 + $0x11] sm:$0xff]
    %v51 = vld [vmem:[%s0 + $0x19] sm:$0xff]
    %v52 = vld [vmem:[%s0 + $0x21] sm:$0xff]
    %v53 = vld [vmem:[%s0 + $0x29] sm:$0xff]
    %v54 = vld [vmem:[%s0 + $0x31] sm:$0xff]
    %v55 = vld [vmem:[%s0 + $0x39] sm:$0xff]
    %v56 = vld [vmem:[%s0 + $0x41] sm:$0xff]
    %v57 = vld [vmem:[%s0 + $0x49] sm:$0xff]
    %v58 = vld [vmem:[%s0 + $0x51] sm:$0xff]
    %v59 = vld [vmem:[%s0 + $0x59] sm:$0xff]
    %v60 = vld [vmem:[%s0 + $0x61] sm:$0xff]
    %v61 = vld [vmem:[%s1 + $0x4] sm:$0xf]
    %vm62 = vcmask 31744
    %v64 = vsel %vm62, %v48, 0
    %v67 = vsel %vm62, %v49, 0
    %v70 = vsel %vm62, %v50, 0
    %v73 = vsel %vm62, %v51, 0
    %v76 = vsel %vm62, %v52, 0
    %v79 = vsel %vm62, %v53, 0
    %v82 = vsel %vm62, %v54, 0
    %v85 = vsel %vm62, %v55, 0
    %v88 = vsel %vm62, %v56, 0
    %v91 = vsel %vm62, %v57, 0
    %v94 = vsel %vm62, %v58, 0
    %v97 = vsel %vm62, %v59, 0
    %v100 = vsel %vm62, %v60, 0
    %vm102 = vcmask 1043456
    %v104 = vsel %vm102, %v61, 0
    %106 = vmatprep.subr.mxu0 0.0
    %107 = vmatpush1.msra.mxu0 0.0
    %108 = vmatprep.subr.mxu0 0.0
    %109 = vmatpush1.msra.mxu0 0.0
    %110 = vmatprep.subr.mxu0 0.0
    %111 = vmatpush1.msra.mxu0 0.0
    %112 = vmatprep.subr.mxu0 0.0
    %113 = vmatpush1.msra.mxu0 0.0
    %114 = vmatprep.subr.mxu0 0.0
    %115 = vmatpush1.msra.mxu0 0.0
    %116 = vmatprep.subr.mxu0 0.0
    %117 = vmatpush1.msra.mxu0 0.0
    %118 = vmatprep.subr.mxu0 0.0
    %119 = vmatpush1.msra.mxu0 0.0
    %120 = vmatprep.subr.mxu0 0.0
    %121 = vmatpush1.msra.mxu0 0.0
    %122 = vmatprep.subr.mxu0 0.0
    %123 = vmatpush1.msra.mxu0 0.0
    %124 = vmatprep.subr.mxu0 0.0
    %125 = vmatpush1.msra.mxu0 0.0
    %126 = vmatprep.subr.mxu0 0.0
    %127 = vmatpush1.msra.mxu0 0.0
    %128 = vmatprep.subr.mxu0 0.0
    %129 = vmatpush1.msra.mxu0 0.0
    %130 = vmatprep.subr.mxu0 0.0
    %131 = vmatpush1.msra.mxu0 0.0
    %132 = vmatprep.subr.mxu0 0.0
    %133 = vmatpush1.msra.mxu0 0.0
    %134 = vmatprep.subr.mxu0 0.0
    %135 = vmatpush1.msra.mxu0 0.0
    %136 = vmatprep.subr.mxu0 0.0
    %137 = vmatpush1.msra.mxu0 %v104
    %138 = vmatprep.subr.mxu0 0.0
    %139 = vmatpush2.msra.mxu0 0.0
    %140 = vmatprep.subr.mxu0 0.0
    %141 = vmatpush2.msra.mxu0 0.0
    %142 = vmatprep.subr.mxu0 0.0
    %143 = vmatpush2.msra.mxu0 0.0
    %144 = vmatprep.subr.mxu0 0.0
    %145 = vmatpush2.msra.mxu0 0.0
    %146 = vmatprep.subr.mxu0 0.0
    %147 = vmatpush2.msra.mxu0 0.0
    %148 = vmatprep.subr.mxu0 0.0
    %149 = vmatpush2.msra.mxu0 0.0
    %150 = vmatprep.subr.mxu0 0.0
    %151 = vmatpush2.msra.mxu0 0.0
    %152 = vmatprep.subr.mxu0 0.0
    %153 = vmatpush2.msra.mxu0 0.0
    %154 = vmatprep.subr.mxu0 0.0
    %155 = vmatpush2.msra.mxu0 0.0
    %156 = vmatprep.subr.mxu0 0.0
    %157 = vmatpush2.msra.mxu0 0.0
    %158 = vmatprep.subr.mxu0 0.0
    %159 = vmatpush2.msra.mxu0 0.0
    %160 = vmatprep.subr.mxu0 0.0
    %161 = vmatpush2.msra.mxu0 0.0
    %162 = vmatprep.subr.mxu0 0.0
    %163 = vmatpush2.msra.mxu0 0.0
    %164 = vmatprep.subr.mxu0 0.0
    %165 = vmatpush2.msra.mxu0 0.0
    %166 = vmatprep.subr.mxu0 0.0
    %167 = vmatpush2.msra.mxu0 0.0
    %168 = vmatprep.subr.mxu0 0.0
    %169 = vmatpush2.msra.mxu0 0.0
    %170 = vmatprep.mubr.f32.mxu0 0.0
    %171 = vmatmul.mubr.f32.gmra.mxu0 %v64
    %v172 = vpop.f32.mrf.mxu0
    %v173 = vadd.f32 0.0, %v172
    %v174 = vpop.f32.mrf.mxu0
    %175 = vmatprep.mubr.f32.mxu0 0.0
    %176 = vmatmul.mubr.f32.gmra.mxu0 %v67
    %v177 = vpop.f32.mrf.mxu0
    %v178 = vadd.f32 0.0, %v177
    %v179 = vpop.f32.mrf.mxu0
    %180 = vmatprep.mubr.f32.mxu0 0.0
    %181 = vmatmul.mubr.f32.gmra.mxu0 %v70
    %v182 = vpop.f32.mrf.mxu0
    %v183 = vadd.f32 0.0, %v182
    %v184 = vpop.f32.mrf.mxu0
    %185 = vmatprep.mubr.f32.mxu0 0.0
    %186 = vmatmul.mubr.f32.gmra.mxu0 %v73
    %v187 = vpop.f32.mrf.mxu0
    %v188 = vadd.f32 0.0, %v187
    %v189 = vpop.f32.mrf.mxu0
    %190 = vmatprep.mubr.f32.mxu0 0.0
    %191 = vmatmul.mubr.f32.gmra.mxu0 %v76
    %v192 = vpop.f32.mrf.mxu0
    %v193 = vadd.f32 0.0, %v192
    %v194 = vpop.f32.mrf.mxu0
    %195 = vmatprep.mubr.f32.mxu0 0.0
    %196 = vmatmul.mubr.f32.gmra.mxu0 %v79
    %v197 = vpop.f32.mrf.mxu0
    %v198 = vadd.f32 0.0, %v197
    %v199 = vpop.f32.mrf.mxu0
    %200 = vmatprep.mubr.f32.mxu0 0.0
    %201 = vmatmul.mubr.f32.gmra.mxu0 %v82
    %v202 = vpop.f32.mrf.mxu0
    %v203 = vadd.f32 0.0, %v202
    %v204 = vpop.f32.mrf.mxu0
    %205 = vmatprep.mubr.f32.mxu0 0.0
    %206 = vmatmul.mubr.f32.gmra.mxu0 %v85
    %v207 = vpop.f32.mrf.mxu0
    %v208 = vadd.f32 0.0, %v207
    %v209 = vpop.f32.mrf.mxu0
    %210 = vmatprep.mubr.f32.mxu0 0.0
    %211 = vmatmul.mubr.f32.gmra.mxu0 %v88
    %v212 = vpop.f32.mrf.mxu0
    %v213 = vadd.f32 0.0, %v212
    %v214 = vpop.f32.mrf.mxu0
    %215 = vmatprep.mubr.f32.mxu0 0.0
    %216 = vmatmul.mubr.f32.gmra.mxu0 %v91
    %v217 = vpop.f32.mrf.mxu0
    %v218 = vadd.f32 0.0, %v217
    %v219 = vpop.f32.mrf.mxu0
    %220 = vmatprep.mubr.f32.mxu0 0.0
    %221 = vmatmul.mubr.f32.gmra.mxu0 %v94
    %v222 = vpop.f32.mrf.mxu0
    %v223 = vadd.f32 0.0, %v222
    %v224 = vpop.f32.mrf.mxu0
    %225 = vmatprep.mubr.f32.mxu0 0.0
    %226 = vmatmul.mubr.f32.gmra.mxu0 %v97
    %v227 = vpop.f32.mrf.mxu0
    %v228 = vadd.f32 0.0, %v227
    %v229 = vpop.f32.mrf.mxu0
    %230 = vmatprep.mubr.f32.mxu0 0.0
    %231 = vmatmul.mubr.f32.gmra.mxu0 %v100
    %v232 = vpop.f32.mrf.mxu0
    %v233 = vadd.f32 0.0, %v232
    %v234 = vpop.f32.mrf.mxu0
    %235 = vdwg.mxu0
    %v237 = vsel %vm62, %v34, 0
    %v240 = vsel %vm62, %v35, 0
    %v243 = vsel %vm62, %v36, 0
    %v246 = vsel %vm62, %v37, 0
    %v249 = vsel %vm62, %v38, 0
    %v252 = vsel %vm62, %v39, 0
    %v255 = vsel %vm62, %v40, 0
    %v258 = vsel %vm62, %v41, 0
    %v261 = vsel %vm62, %v42, 0
    %v264 = vsel %vm62, %v43, 0
    %v267 = vsel %vm62, %v44, 0
    %v270 = vsel %vm62, %v45, 0
    %v273 = vsel %vm62, %v46, 0
    %v276 = vsel %vm102, %v47, 0
    %278 = vmatprep.subr.mxu0 0.0
    %279 = vmatpush1.msra.mxu0 0.0
    %280 = vmatprep.subr.mxu0 0.0
    %281 = vmatpush1.msra.mxu0 0.0
    %282 = vmatprep.subr.mxu0 0.0
    %283 = vmatpush1.msra.mxu0 0.0
    %284 = vmatprep.subr.mxu0 0.0
    %285 = vmatpush1.msra.mxu0 0.0
    %286 = vmatprep.subr.mxu0 0.0
    %287 = vmatpush1.msra.mxu0 0.0
    %288 = vmatprep.subr.mxu0 0.0
    %289 = vmatpush1.msra.mxu0 0.0
    %290 = vmatprep.subr.mxu0 0.0
    %291 = vmatpush1.msra.mxu0 0.0
    %292 = vmatprep.subr.mxu0 0.0
    %293 = vmatpush1.msra.mxu0 0.0
    %294 = vmatprep.subr.mxu0 0.0
    %295 = vmatpush1.msra.mxu0 0.0
    %296 = vmatprep.subr.mxu0 0.0
    %297 = vmatpush1.msra.mxu0 0.0
    %298 = vmatprep.subr.mxu0 0.0
    %299 = vmatpush1.msra.mxu0 0.0
    %300 = vmatprep.subr.mxu0 0.0
    %301 = vmatpush1.msra.mxu0 0.0
    %302 = vmatprep.subr.mxu0 0.0
    %303 = vmatpush1.msra.mxu0 0.0
    %304 = vmatprep.subr.mxu0 0.0
    %305 = vmatpush1.msra.mxu0 0.0
    %306 = vmatprep.subr.mxu0 0.0
    %307 = vmatpush1.msra.mxu0 0.0
    %308 = vmatprep.subr.mxu0 0.0
    %309 = vmatpush1.msra.mxu0 %v276
    %310 = vmatprep.subr.mxu0 0.0
    %311 = vmatpush2.msra.mxu0 0.0
    %312 = vmatprep.subr.mxu0 0.0
    %313 = vmatpush2.msra.mxu0 0.0
    %314 = vmatprep.subr.mxu0 0.0
    %315 = vmatpush2.msra.mxu0 0.0
    %316 = vmatprep.subr.mxu0 0.0
    %317 = vmatpush2.msra.mxu0 0.0
    %318 = vmatprep.subr.mxu0 0.0
    %319 = vmatpush2.msra.mxu0 0.0
    %320 = vmatprep.subr.mxu0 0.0
    %321 = vmatpush2.msra.mxu0 0.0
    %322 = vmatprep.subr.mxu0 0.0
    %323 = vmatpush2.msra.mxu0 0.0
    %324 = vmatprep.subr.mxu0 0.0
    %325 = vmatpush2.msra.mxu0 0.0
    %326 = vmatprep.subr.mxu0 0.0
    %327 = vmatpush2.msra.mxu0 0.0
    %328 = vmatprep.subr.mxu0 0.0
    %329 = vmatpush2.msra.mxu0 0.0
    %330 = vmatprep.subr.mxu0 0.0
    %331 = vmatpush2.msra.mxu0 0.0
    %332 = vmatprep.subr.mxu0 0.0
    %333 = vmatpush2.msra.mxu0 0.0
    %334 = vmatprep.subr.mxu0 0.0
    %335 = vmatpush2.msra.mxu0 0.0
    %336 = vmatprep.subr.mxu0 0.0
    %337 = vmatpush2.msra.mxu0 0.0
    %338 = vmatprep.subr.mxu0 0.0
    %339 = vmatpush2.msra.mxu0 0.0
    %340 = vmatprep.subr.mxu0 0.0
    %341 = vmatpush2.msra.mxu0 0.0
    %342 = vmatprep.mubr.f32.mxu0 0.0
    %343 = vmatmul.mubr.f32.gmra.mxu0 %v237
    %v344 = vpop.f32.mrf.mxu0
    %v345 = vadd.f32 %v173, %v344
    %v346 = vpop.f32.mrf.mxu0
    %347 = vmatprep.mubr.f32.mxu0 0.0
    %348 = vmatmul.mubr.f32.gmra.mxu0 %v240
    %v349 = vpop.f32.mrf.mxu0
    %v350 = vadd.f32 %v178, %v349
    %v351 = vpop.f32.mrf.mxu0
    %352 = vmatprep.mubr.f32.mxu0 0.0
    %353 = vmatmul.mubr.f32.gmra.mxu0 %v243
    %v354 = vpop.f32.mrf.mxu0
    %v355 = vadd.f32 %v183, %v354
    %v356 = vpop.f32.mrf.mxu0
    %357 = vmatprep.mubr.f32.mxu0 0.0
    %358 = vmatmul.mubr.f32.gmra.mxu0 %v246
    %v359 = vpop.f32.mrf.mxu0
    %v360 = vadd.f32 %v188, %v359
    %v361 = vpop.f32.mrf.mxu0
    %362 = vmatprep.mubr.f32.mxu0 0.0
    %363 = vmatmul.mubr.f32.gmra.mxu0 %v249
    %v364 = vpop.f32.mrf.mxu0
    %v365 = vadd.f32 %v193, %v364
    %v366 = vpop.f32.mrf.mxu0
    %367 = vmatprep.mubr.f32.mxu0 0.0
    %368 = vmatmul.mubr.f32.gmra.mxu0 %v252
    %v369 = vpop.f32.mrf.mxu0
    %v370 = vadd.f32 %v198, %v369
    %v371 = vpop.f32.mrf.mxu0
    %372 = vmatprep.mubr.f32.mxu0 0.0
    %373 = vmatmul.mubr.f32.gmra.mxu0 %v255
    %v374 = vpop.f32.mrf.mxu0
    %v375 = vadd.f32 %v203, %v374
    %v376 = vpop.f32.mrf.mxu0
    %377 = vmatprep.mubr.f32.mxu0 0.0
    %378 = vmatmul.mubr.f32.gmra.mxu0 %v258
    %v379 = vpop.f32.mrf.mxu0
    %v380 = vadd.f32 %v208, %v379
    %v381 = vpop.f32.mrf.mxu0
    %382 = vmatprep.mubr.f32.mxu0 0.0
    %383 = vmatmul.mubr.f32.gmra.mxu0 %v261
    %v384 = vpop.f32.mrf.mxu0
    %v385 = vadd.f32 %v213, %v384
    %v386 = vpop.f32.mrf.mxu0
    %387 = vmatprep.mubr.f32.mxu0 0.0
    %388 = vmatmul.mubr.f32.gmra.mxu0 %v264
    %v389 = vpop.f32.mrf.mxu0
    %v390 = vadd.f32 %v218, %v389
    %v391 = vpop.f32.mrf.mxu0
    %392 = vmatprep.mubr.f32.mxu0 0.0
    %393 = vmatmul.mubr.f32.gmra.mxu0 %v267
    %v394 = vpop.f32.mrf.mxu0
    %v395 = vadd.f32 %v223, %v394
    %v396 = vpop.f32.mrf.mxu0
    %397 = vmatprep.mubr.f32.mxu0 0.0
    %398 = vmatmul.mubr.f32.gmra.mxu0 %v270
    %v399 = vpop.f32.mrf.mxu0
    %v400 = vadd.f32 %v228, %v399
    %v401 = vpop.f32.mrf.mxu0
    %402 = vmatprep.mubr.f32.mxu0 0.0
    %403 = vmatmul.mubr.f32.gmra.mxu0 %v273
    %v404 = vpop.f32.mrf.mxu0
    %v405 = vadd.f32 %v233, %v404
    %v406 = vpop.f32.mrf.mxu0
    %407 = vdwg.mxu0
    %v408 = vld [vmem:[%s0 + $0x2] sm:$0xff]
    %v409 = vld [vmem:[%s0 + $0xa] sm:$0xff]
    %v410 = vld [vmem:[%s0 + $0x12] sm:$0xff]
    %v411 = vld [vmem:[%s0 + $0x1a] sm:$0xff]
    %v412 = vld [vmem:[%s0 + $0x22] sm:$0xff]
    %v413 = vld [vmem:[%s0 + $0x2a] sm:$0xff]
    %v414 = vld [vmem:[%s0 + $0x32] sm:$0xff]
    %v415 = vld [vmem:[%s0 + $0x3a] sm:$0xff]
    %v416 = vld [vmem:[%s0 + $0x42] sm:$0xff]
    %v417 = vld [vmem:[%s0 + $0x4a] sm:$0xff]
    %v418 = vld [vmem:[%s0 + $0x52] sm:$0xff]
    %v419 = vld [vmem:[%s0 + $0x5a] sm:$0xff]
    %v420 = vld [vmem:[%s0 + $0x62] sm:$0xff]
    %v421 = vld [vmem:[%s1 + $0x8] sm:$0xf]
    %v423 = vsel %vm62, %v408, 0
    %v426 = vsel %vm62, %v409, 0
    %v429 = vsel %vm62, %v410, 0
    %v432 = vsel %vm62, %v411, 0
    %v435 = vsel %vm62, %v412, 0
    %v438 = vsel %vm62, %v413, 0
    %v441 = vsel %vm62, %v414, 0
    %v444 = vsel %vm62, %v415, 0
    %v447 = vsel %vm62, %v416, 0
    %v450 = vsel %vm62, %v417, 0
    %v453 = vsel %vm62, %v418, 0
    %v456 = vsel %vm62, %v419, 0
    %v459 = vsel %vm62, %v420, 0
    %v462 = vsel %vm102, %v421, 0
    %464 = vmatprep.subr.mxu0 0.0
    %465 = vmatpush1.msra.mxu0 0.0
    %466 = vmatprep.subr.mxu0 0.0
    %467 = vmatpush1.msra.mxu0 0.0
    %468 = vmatprep.subr.mxu0 0.0
    %469 = vmatpush1.msra.mxu0 0.0
    %470 = vmatprep.subr.mxu0 0.0
    %471 = vmatpush1.msra.mxu0 0.0
    %472 = vmatprep.subr.mxu0 0.0
    %473 = vmatpush1.msra.mxu0 0.0
    %474 = vmatprep.subr.mxu0 0.0
    %475 = vmatpush1.msra.mxu0 0.0
    %476 = vmatprep.subr.mxu0 0.0
    %477 = vmatpush1.msra.mxu0 0.0
    %478 = vmatprep.subr.mxu0 0.0
    %479 = vmatpush1.msra.mxu0 0.0
    %480 = vmatprep.subr.mxu0 0.0
    %481 = vmatpush1.msra.mxu0 0.0
    %482 = vmatprep.subr.mxu0 0.0
    %483 = vmatpush1.msra.mxu0 0.0
    %484 = vmatprep.subr.mxu0 0.0
    %485 = vmatpush1.msra.mxu0 0.0
    %486 = vmatprep.subr.mxu0 0.0
    %487 = vmatpush1.msra.mxu0 0.0
    %488 = vmatprep.subr.mxu0 0.0
    %489 = vmatpush1.msra.mxu0 0.0
    %490 = vmatprep.subr.mxu0 0.0
    %491 = vmatpush1.msra.mxu0 0.0
    %492 = vmatprep.subr.mxu0 0.0
    %493 = vmatpush1.msra.mxu0 0.0
    %494 = vmatprep.subr.mxu0 0.0
    %495 = vmatpush1.msra.mxu0 %v462
    %496 = vmatprep.subr.mxu0 0.0
    %497 = vmatpush2.msra.mxu0 0.0
    %498 = vmatprep.subr.mxu0 0.0
    %499 = vmatpush2.msra.mxu0 0.0
    %500 = vmatprep.subr.mxu0 0.0
    %501 = vmatpush2.msra.mxu0 0.0
    %502 = vmatprep.subr.mxu0 0.0
    %503 = vmatpush2.msra.mxu0 0.0
    %504 = vmatprep.subr.mxu0 0.0
    %505 = vmatpush2.msra.mxu0 0.0
    %506 = vmatprep.subr.mxu0 0.0
    %507 = vmatpush2.msra.mxu0 0.0
    %508 = vmatprep.subr.mxu0 0.0
    %509 = vmatpush2.msra.mxu0 0.0
    %510 = vmatprep.subr.mxu0 0.0
    %511 = vmatpush2.msra.mxu0 0.0
    %512 = vmatprep.subr.mxu0 0.0
    %513 = vmatpush2.msra.mxu0 0.0
    %514 = vmatprep.subr.mxu0 0.0
    %515 = vmatpush2.msra.mxu0 0.0
    %516 = vmatprep.subr.mxu0 0.0
    %517 = vmatpush2.msra.mxu0 0.0
    %518 = vmatprep.subr.mxu0 0.0
    %519 = vmatpush2.msra.mxu0 0.0
    %520 = vmatprep.subr.mxu0 0.0
    %521 = vmatpush2.msra.mxu0 0.0
    %522 = vmatprep.subr.mxu0 0.0
    %523 = vmatpush2.msra.mxu0 0.0
    %524 = vmatprep.subr.mxu0 0.0
    %525 = vmatpush2.msra.mxu0 0.0
    %526 = vmatprep.subr.mxu0 0.0
    %527 = vmatpush2.msra.mxu0 0.0
    %528 = vmatprep.mubr.f32.mxu0 0.0
    %529 = vmatmul.mubr.f32.gmra.mxu0 %v423
    %v530 = vpop.f32.mrf.mxu0
    %v531 = vadd.f32 0.0, %v530
    %v532 = vpop.f32.mrf.mxu0
    %533 = vmatprep.mubr.f32.mxu0 0.0
    %534 = vmatmul.mubr.f32.gmra.mxu0 %v426
    %v535 = vpop.f32.mrf.mxu0
    %v536 = vadd.f32 0.0, %v535
    %v537 = vpop.f32.mrf.mxu0
    %538 = vmatprep.mubr.f32.mxu0 0.0
    %539 = vmatmul.mubr.f32.gmra.mxu0 %v429
    %v540 = vpop.f32.mrf.mxu0
    %v541 = vadd.f32 0.0, %v540
    %v542 = vpop.f32.mrf.mxu0
    %543 = vmatprep.mubr.f32.mxu0 0.0
    %544 = vmatmul.mubr.f32.gmra.mxu0 %v432
    %v545 = vpop.f32.mrf.mxu0
    %v546 = vadd.f32 0.0, %v545
    %v547 = vpop.f32.mrf.mxu0
    %548 = vmatprep.mubr.f32.mxu0 0.0
    %549 = vmatmul.mubr.f32.gmra.mxu0 %v435
    %v550 = vpop.f32.mrf.mxu0
    %v551 = vadd.f32 0.0, %v550
    %v552 = vpop.f32.mrf.mxu0
    %553 = vmatprep.mubr.f32.mxu0 0.0
    %554 = vmatmul.mubr.f32.gmra.mxu0 %v438
    %v555 = vpop.f32.mrf.mxu0
    %v556 = vadd.f32 0.0, %v555
    %v557 = vpop.f32.mrf.mxu0
    %558 = vmatprep.mubr.f32.mxu0 0.0
    %559 = vmatmul.mubr.f32.gmra.mxu0 %v441
    %v560 = vpop.f32.mrf.mxu0
    %v561 = vadd.f32 0.0, %v560
    %v562 = vpop.f32.mrf.mxu0
    %563 = vmatprep.mubr.f32.mxu0 0.0
    %564 = vmatmul.mubr.f32.gmra.mxu0 %v444
    %v565 = vpop.f32.mrf.mxu0
    %v566 = vadd.f32 0.0, %v565
    %v567 = vpop.f32.mrf.mxu0
    %568 = vmatprep.mubr.f32.mxu0 0.0
    %569 = vmatmul.mubr.f32.gmra.mxu0 %v447
    %v570 = vpop.f32.mrf.mxu0
    %v571 = vadd.f32 0.0, %v570
    %v572 = vpop.f32.mrf.mxu0
    %573 = vmatprep.mubr.f32.mxu0 0.0
    %574 = vmatmul.mubr.f32.gmra.mxu0 %v450
    %v575 = vpop.f32.mrf.mxu0
    %v576 = vadd.f32 0.0, %v575
    %v577 = vpop.f32.mrf.mxu0
    %578 = vmatprep.mubr.f32.mxu0 0.0
    %579 = vmatmul.mubr.f32.gmra.mxu0 %v453
    %v580 = vpop.f32.mrf.mxu0
    %v581 = vadd.f32 0.0, %v580
    %v582 = vpop.f32.mrf.mxu0
    %583 = vmatprep.mubr.f32.mxu0 0.0
    %584 = vmatmul.mubr.f32.gmra.mxu0 %v456
    %v585 = vpop.f32.mrf.mxu0
    %v586 = vadd.f32 0.0, %v585
    %v587 = vpop.f32.mrf.mxu0
    %588 = vmatprep.mubr.f32.mxu0 0.0
    %589 = vmatmul.mubr.f32.gmra.mxu0 %v459
    %v590 = vpop.f32.mrf.mxu0
    %v591 = vadd.f32 0.0, %v590
    %v592 = vpop.f32.mrf.mxu0
    %593 = vdwg.mxu0
    %v594 = vadd.f32 %v345, %v531
    %v595 = vadd.f32 %v350, %v536
    %v596 = vadd.f32 %v355, %v541
    %v597 = vadd.f32 %v360, %v546
    %v598 = vadd.f32 %v365, %v551
    %v599 = vadd.f32 %v370, %v556
    %v600 = vadd.f32 %v375, %v561
    %v601 = vadd.f32 %v380, %v566
    %v602 = vadd.f32 %v385, %v571
    %v603 = vadd.f32 %v390, %v576
    %v604 = vadd.f32 %v395, %v581
    %v605 = vadd.f32 %v400, %v586
    %v606 = vadd.f32 %v405, %v591
    %v607 = vld [vmem:[%s0 + $0x7] sm:$0xff]
    %v608 = vld [vmem:[%s0 + $0xf] sm:$0xff]
    %v609 = vld [vmem:[%s0 + $0x17] sm:$0xff]
    %v610 = vld [vmem:[%s0 + $0x1f] sm:$0xff]
    %v611 = vld [vmem:[%s0 + $0x27] sm:$0xff]
    %v612 = vld [vmem:[%s0 + $0x2f] sm:$0xff]
    %v613 = vld [vmem:[%s0 + $0x37] sm:$0xff]
    %v614 = vld [vmem:[%s0 + $0x3f] sm:$0xff]
    %v615 = vld [vmem:[%s0 + $0x47] sm:$0xff]
    %v616 = vld [vmem:[%s0 + $0x4f] sm:$0xff]
    %v617 = vld [vmem:[%s0 + $0x57] sm:$0xff]
    %v618 = vld [vmem:[%s0 + $0x5f] sm:$0xff]
    %v619 = vld [vmem:[%s0 + $0x67] sm:$0xff]
    %v620 = vld [vmem:[%s1 + $0xc] sm:$0xf]
    %v622 = vsel %vm62, %v607, 0
    %v625 = vsel %vm62, %v608, 0
    %v628 = vsel %vm62, %v609, 0
    %v631 = vsel %vm62, %v610, 0
    %v634 = vsel %vm62, %v611, 0
    %v637 = vsel %vm62, %v612, 0
    %v640 = vsel %vm62, %v613, 0
    %v643 = vsel %vm62, %v614, 0
    %v646 = vsel %vm62, %v615, 0
    %v649 = vsel %vm62, %v616, 0
    %v652 = vsel %vm62, %v617, 0
    %v655 = vsel %vm62, %v618, 0
    %v658 = vsel %vm62, %v619, 0
    %v661 = vsel %vm102, %v620, 0
    %663 = vmatprep.subr.mxu0 0.0
    %664 = vmatpush1.msra.mxu0 0.0
    %665 = vmatprep.subr.mxu0 0.0
    %666 = vmatpush1.msra.mxu0 0.0
    %667 = vmatprep.subr.mxu0 0.0
    %668 = vmatpush1.msra.mxu0 0.0
    %669 = vmatprep.subr.mxu0 0.0
    %670 = vmatpush1.msra.mxu0 0.0
    %671 = vmatprep.subr.mxu0 0.0
    %672 = vmatpush1.msra.mxu0 0.0
    %673 = vmatprep.subr.mxu0 0.0
    %674 = vmatpush1.msra.mxu0 0.0
    %675 = vmatprep.subr.mxu0 0.0
    %676 = vmatpush1.msra.mxu0 0.0
    %677 = vmatprep.subr.mxu0 0.0
    %678 = vmatpush1.msra.mxu0 0.0
    %679 = vmatprep.subr.mxu0 0.0
    %680 = vmatpush1.msra.mxu0 0.0
    %681 = vmatprep.subr.mxu0 0.0
    %682 = vmatpush1.msra.mxu0 0.0
    %683 = vmatprep.subr.mxu0 0.0
    %684 = vmatpush1.msra.mxu0 0.0
    %685 = vmatprep.subr.mxu0 0.0
    %686 = vmatpush1.msra.mxu0 0.0
    %687 = vmatprep.subr.mxu0 0.0
    %688 = vmatpush1.msra.mxu0 0.0
    %689 = vmatprep.subr.mxu0 0.0
    %690 = vmatpush1.msra.mxu0 0.0
    %691 = vmatprep.subr.mxu0 0.0
    %692 = vmatpush1.msra.mxu0 0.0
    %693 = vmatprep.subr.mxu0 0.0
    %694 = vmatpush1.msra.mxu0 %v661
    %695 = vmatprep.subr.mxu0 0.0
    %696 = vmatpush2.msra.mxu0 0.0
    %697 = vmatprep.subr.mxu0 0.0
    %698 = vmatpush2.msra.mxu0 0.0
    %699 = vmatprep.subr.mxu0 0.0
    %700 = vmatpush2.msra.mxu0 0.0
    %701 = vmatprep.subr.mxu0 0.0
    %702 = vmatpush2.msra.mxu0 0.0
    %703 = vmatprep.subr.mxu0 0.0
    %704 = vmatpush2.msra.mxu0 0.0
    %705 = vmatprep.subr.mxu0 0.0
    %706 = vmatpush2.msra.mxu0 0.0
    %707 = vmatprep.subr.mxu0 0.0
    %708 = vmatpush2.msra.mxu0 0.0
    %709 = vmatprep.subr.mxu0 0.0
    %710 = vmatpush2.msra.mxu0 0.0
    %711 = vmatprep.subr.mxu0 0.0
    %712 = vmatpush2.msra.mxu0 0.0
    %713 = vmatprep.subr.mxu0 0.0
    %714 = vmatpush2.msra.mxu0 0.0
    %715 = vmatprep.subr.mxu0 0.0
    %716 = vmatpush2.msra.mxu0 0.0
    %717 = vmatprep.subr.mxu0 0.0
    %718 = vmatpush2.msra.mxu0 0.0
    %719 = vmatprep.subr.mxu0 0.0
    %720 = vmatpush2.msra.mxu0 0.0
    %721 = vmatprep.subr.mxu0 0.0
    %722 = vmatpush2.msra.mxu0 0.0
    %723 = vmatprep.subr.mxu0 0.0
    %724 = vmatpush2.msra.mxu0 0.0
    %725 = vmatprep.subr.mxu0 0.0
    %726 = vmatpush2.msra.mxu0 0.0
    %727 = vmatprep.mubr.f32.mxu0 0.0
    %728 = vmatmul.mubr.f32.gmra.mxu0 %v622
    %v729 = vpop.f32.mrf.mxu0
    %v730 = vadd.f32 0.0, %v729
    %v731 = vpop.f32.mrf.mxu0
    %732 = vmatprep.mubr.f32.mxu0 0.0
    %733 = vmatmul.mubr.f32.gmra.mxu0 %v625
    %v734 = vpop.f32.mrf.mxu0
    %v735 = vadd.f32 0.0, %v734
    %v736 = vpop.f32.mrf.mxu0
    %737 = vmatprep.mubr.f32.mxu0 0.0
    %738 = vmatmul.mubr.f32.gmra.mxu0 %v628
    %v739 = vpop.f32.mrf.mxu0
    %v740 = vadd.f32 0.0, %v739
    %v741 = vpop.f32.mrf.mxu0
    %742 = vmatprep.mubr.f32.mxu0 0.0
    %743 = vmatmul.mubr.f32.gmra.mxu0 %v631
    %v744 = vpop.f32.mrf.mxu0
    %v745 = vadd.f32 0.0, %v744
    %v746 = vpop.f32.mrf.mxu0
    %747 = vmatprep.mubr.f32.mxu0 0.0
    %748 = vmatmul.mubr.f32.gmra.mxu0 %v634
    %v749 = vpop.f32.mrf.mxu0
    %v750 = vadd.f32 0.0, %v749
    %v751 = vpop.f32.mrf.mxu0
    %752 = vmatprep.mubr.f32.mxu0 0.0
    %753 = vmatmul.mubr.f32.gmra.mxu0 %v637
    %v754 = vpop.f32.mrf.mxu0
    %v755 = vadd.f32 0.0, %v754
    %v756 = vpop.f32.mrf.mxu0
    %757 = vmatprep.mubr.f32.mxu0 0.0
    %758 = vmatmul.mubr.f32.gmra.mxu0 %v640
    %v759 = vpop.f32.mrf.mxu0
    %v760 = vadd.f32 0.0, %v759
    %v761 = vpop.f32.mrf.mxu0
    %762 = vmatprep.mubr.f32.mxu0 0.0
    %763 = vmatmul.mubr.f32.gmra.mxu0 %v643
    %v764 = vpop.f32.mrf.mxu0
    %v765 = vadd.f32 0.0, %v764
    %v766 = vpop.f32.mrf.mxu0
    %767 = vmatprep.mubr.f32.mxu0 0.0
    %768 = vmatmul.mubr.f32.gmra.mxu0 %v646
    %v769 = vpop.f32.mrf.mxu0
    %v770 = vadd.f32 0.0, %v769
    %v771 = vpop.f32.mrf.mxu0
    %772 = vmatprep.mubr.f32.mxu0 0.0
    %773 = vmatmul.mubr.f32.gmra.mxu0 %v649
    %v774 = vpop.f32.mrf.mxu0
    %v775 = vadd.f32 0.0, %v774
    %v776 = vpop.f32.mrf.mxu0
    %777 = vmatprep.mubr.f32.mxu0 0.0
    %778 = vmatmul.mubr.f32.gmra.mxu0 %v652
    %v779 = vpop.f32.mrf.mxu0
    %v780 = vadd.f32 0.0, %v779
    %v781 = vpop.f32.mrf.mxu0
    %782 = vmatprep.mubr.f32.mxu0 0.0
    %783 = vmatmul.mubr.f32.gmra.mxu0 %v655
    %v784 = vpop.f32.mrf.mxu0
    %v785 = vadd.f32 0.0, %v784
    %v786 = vpop.f32.mrf.mxu0
    %787 = vmatprep.mubr.f32.mxu0 0.0
    %788 = vmatmul.mubr.f32.gmra.mxu0 %v658
    %v789 = vpop.f32.mrf.mxu0
    %v790 = vadd.f32 0.0, %v789
    %v791 = vpop.f32.mrf.mxu0
    %792 = vdwg.mxu0
    %v793 = vadd.f32 %v594, %v730
    %v794 = vadd.f32 %v595, %v735
    %v795 = vadd.f32 %v596, %v740
    %v796 = vadd.f32 %v597, %v745
    %v797 = vadd.f32 %v598, %v750
    %v798 = vadd.f32 %v599, %v755
    %v799 = vadd.f32 %v600, %v760
    %v800 = vadd.f32 %v601, %v765
    %v801 = vadd.f32 %v602, %v770
    %v802 = vadd.f32 %v603, %v775
    %v803 = vadd.f32 %v604, %v780
    %v804 = vadd.f32 %v605, %v785
    %v805 = vadd.f32 %v606, %v790
    %v806 = vld [vmem:[%s0 + $0x8] sm:$0xff]
    %v807 = vld [vmem:[%s0 + $0x10] sm:$0xff]
    %v808 = vld [vmem:[%s0 + $0x18] sm:$0xff]
    %v809 = vld [vmem:[%s0 + $0x20] sm:$0xff]
    %v810 = vld [vmem:[%s0 + $0x28] sm:$0xff]
    %v811 = vld [vmem:[%s0 + $0x30] sm:$0xff]
    %v812 = vld [vmem:[%s0 + $0x38] sm:$0xff]
    %v813 = vld [vmem:[%s0 + $0x40] sm:$0xff]
    %v814 = vld [vmem:[%s0 + $0x48] sm:$0xff]
    %v815 = vld [vmem:[%s0 + $0x50] sm:$0xff]
    %v816 = vld [vmem:[%s0 + $0x58] sm:$0xff]
    %v817 = vld [vmem:[%s0 + $0x60] sm:$0xff]
    %v818 = vld [vmem:[%s0 + $0x68] sm:$0xff]
    %v819 = vld [vmem:[%s1 + $0x10] sm:$0xf]
    %v821 = vsel %vm62, %v806, 0
    %v824 = vsel %vm62, %v807, 0
    %v827 = vsel %vm62, %v808, 0
    %v830 = vsel %vm62, %v809, 0
    %v833 = vsel %vm62, %v810, 0
    %v836 = vsel %vm62, %v811, 0
    %v839 = vsel %vm62, %v812, 0
    %v842 = vsel %vm62, %v813, 0
    %v845 = vsel %vm62, %v814, 0
    %v848 = vsel %vm62, %v815, 0
    %v851 = vsel %vm62, %v816, 0
    %v854 = vsel %vm62, %v817, 0
    %v857 = vsel %vm62, %v818, 0
    %v860 = vsel %vm102, %v819, 0
    %862 = vmatprep.subr.mxu0 0.0
    %863 = vmatpush1.msra.mxu0 0.0
    %864 = vmatprep.subr.mxu0 0.0
    %865 = vmatpush1.msra.mxu0 0.0
    %866 = vmatprep.subr.mxu0 0.0
    %867 = vmatpush1.msra.mxu0 0.0
    %868 = vmatprep.subr.mxu0 0.0
    %869 = vmatpush1.msra.mxu0 0.0
    %870 = vmatprep.subr.mxu0 0.0
    %871 = vmatpush1.msra.mxu0 0.0
    %872 = vmatprep.subr.mxu0 0.0
    %873 = vmatpush1.msra.mxu0 0.0
    %874 = vmatprep.subr.mxu0 0.0
    %875 = vmatpush1.msra.mxu0 0.0
    %876 = vmatprep.subr.mxu0 0.0
    %877 = vmatpush1.msra.mxu0 0.0
    %878 = vmatprep.subr.mxu0 0.0
    %879 = vmatpush1.msra.mxu0 0.0
    %880 = vmatprep.subr.mxu0 0.0
    %881 = vmatpush1.msra.mxu0 0.0
    %882 = vmatprep.subr.mxu0 0.0
    %883 = vmatpush1.msra.mxu0 0.0
    %884 = vmatprep.subr.mxu0 0.0
    %885 = vmatpush1.msra.mxu0 0.0
    %886 = vmatprep.subr.mxu0 0.0
    %887 = vmatpush1.msra.mxu0 0.0
    %888 = vmatprep.subr.mxu0 0.0
    %889 = vmatpush1.msra.mxu0 0.0
    %890 = vmatprep.subr.mxu0 0.0
    %891 = vmatpush1.msra.mxu0 0.0
    %892 = vmatprep.subr.mxu0 0.0
    %893 = vmatpush1.msra.mxu0 %v860
    %894 = vmatprep.subr.mxu0 0.0
    %895 = vmatpush2.msra.mxu0 0.0
    %896 = vmatprep.subr.mxu0 0.0
    %897 = vmatpush2.msra.mxu0 0.0
    %898 = vmatprep.subr.mxu0 0.0
    %899 = vmatpush2.msra.mxu0 0.0
    %900 = vmatprep.subr.mxu0 0.0
    %901 = vmatpush2.msra.mxu0 0.0
    %902 = vmatprep.subr.mxu0 0.0
    %903 = vmatpush2.msra.mxu0 0.0
    %904 = vmatprep.subr.mxu0 0.0
    %905 = vmatpush2.msra.mxu0 0.0
    %906 = vmatprep.subr.mxu0 0.0
    %907 = vmatpush2.msra.mxu0 0.0
    %908 = vmatprep.subr.mxu0 0.0
    %909 = vmatpush2.msra.mxu0 0.0
    %910 = vmatprep.subr.mxu0 0.0
    %911 = vmatpush2.msra.mxu0 0.0
    %912 = vmatprep.subr.mxu0 0.0
    %913 = vmatpush2.msra.mxu0 0.0
    %914 = vmatprep.subr.mxu0 0.0
    %915 = vmatpush2.msra.mxu0 0.0
    %916 = vmatprep.subr.mxu0 0.0
    %917 = vmatpush2.msra.mxu0 0.0
    %918 = vmatprep.subr.mxu0 0.0
    %919 = vmatpush2.msra.mxu0 0.0
    %920 = vmatprep.subr.mxu0 0.0
    %921 = vmatpush2.msra.mxu0 0.0
    %922 = vmatprep.subr.mxu0 0.0
    %923 = vmatpush2.msra.mxu0 0.0
    %924 = vmatprep.subr.mxu0 0.0
    %925 = vmatpush2.msra.mxu0 0.0
    %926 = vmatprep.mubr.f32.mxu0 0.0
    %927 = vmatmul.mubr.f32.gmra.mxu0 %v821
    %v928 = vpop.f32.mrf.mxu0
    %v929 = vadd.f32 0.0, %v928
    %v930 = vpop.f32.mrf.mxu0
    %931 = vmatprep.mubr.f32.mxu0 0.0
    %932 = vmatmul.mubr.f32.gmra.mxu0 %v824
    %v933 = vpop.f32.mrf.mxu0
    %v934 = vadd.f32 0.0, %v933
    %v935 = vpop.f32.mrf.mxu0
    %936 = vmatprep.mubr.f32.mxu0 0.0
    %937 = vmatmul.mubr.f32.gmra.mxu0 %v827
    %v938 = vpop.f32.mrf.mxu0
    %v939 = vadd.f32 0.0, %v938
    %v940 = vpop.f32.mrf.mxu0
    %941 = vmatprep.mubr.f32.mxu0 0.0
    %942 = vmatmul.mubr.f32.gmra.mxu0 %v830
    %v943 = vpop.f32.mrf.mxu0
    %v944 = vadd.f32 0.0, %v943
    %v945 = vpop.f32.mrf.mxu0
    %946 = vmatprep.mubr.f32.mxu0 0.0
    %947 = vmatmul.mubr.f32.gmra.mxu0 %v833
    %v948 = vpop.f32.mrf.mxu0
    %v949 = vadd.f32 0.0, %v948
    %v950 = vpop.f32.mrf.mxu0
    %951 = vmatprep.mubr.f32.mxu0 0.0
    %952 = vmatmul.mubr.f32.gmra.mxu0 %v836
    %v953 = vpop.f32.mrf.mxu0
    %v954 = vadd.f32 0.0, %v953
    %v955 = vpop.f32.mrf.mxu0
    %956 = vmatprep.mubr.f32.mxu0 0.0
    %957 = vmatmul.mubr.f32.gmra.mxu0 %v839
    %v958 = vpop.f32.mrf.mxu0
    %v959 = vadd.f32 0.0, %v958
    %v960 = vpop.f32.mrf.mxu0
    %961 = vmatprep.mubr.f32.mxu0 0.0
    %962 = vmatmul.mubr.f32.gmra.mxu0 %v842
    %v963 = vpop.f32.mrf.mxu0
    %v964 = vadd.f32 0.0, %v963
    %v965 = vpop.f32.mrf.mxu0
    %966 = vmatprep.mubr.f32.mxu0 0.0
    %967 = vmatmul.mubr.f32.gmra.mxu0 %v845
    %v968 = vpop.f32.mrf.mxu0
    %v969 = vadd.f32 0.0, %v968
    %v970 = vpop.f32.mrf.mxu0
    %971 = vmatprep.mubr.f32.mxu0 0.0
    %972 = vmatmul.mubr.f32.gmra.mxu0 %v848
    %v973 = vpop.f32.mrf.mxu0
    %v974 = vadd.f32 0.0, %v973
    %v975 = vpop.f32.mrf.mxu0
    %976 = vmatprep.mubr.f32.mxu0 0.0
    %977 = vmatmul.mubr.f32.gmra.mxu0 %v851
    %v978 = vpop.f32.mrf.mxu0
    %v979 = vadd.f32 0.0, %v978
    %v980 = vpop.f32.mrf.mxu0
    %981 = vmatprep.mubr.f32.mxu0 0.0
    %982 = vmatmul.mubr.f32.gmra.mxu0 %v854
    %v983 = vpop.f32.mrf.mxu0
    %v984 = vadd.f32 0.0, %v983
    %v985 = vpop.f32.mrf.mxu0
    %986 = vmatprep.mubr.f32.mxu0 0.0
    %987 = vmatmul.mubr.f32.gmra.mxu0 %v857
    %v988 = vpop.f32.mrf.mxu0
    %v989 = vadd.f32 0.0, %v988
    %v990 = vpop.f32.mrf.mxu0
    %991 = vdwg.mxu0
    %v992 = vadd.f32 %v793, %v929
    %v993 = vadd.f32 %v794, %v934
    %v994 = vadd.f32 %v795, %v939
    %v995 = vadd.f32 %v796, %v944
    %v996 = vadd.f32 %v797, %v949
    %v997 = vadd.f32 %v798, %v954
    %v998 = vadd.f32 %v799, %v959
    %v999 = vadd.f32 %v800, %v964
    %v1000 = vadd.f32 %v801, %v969
    %v1001 = vadd.f32 %v802, %v974
    %v1002 = vadd.f32 %v803, %v979
    %v1003 = vadd.f32 %v804, %v984
    %v1004 = vadd.f32 %v805, %v989
    %v1005 = vld [vmem:[%s0 + $0x9] sm:$0xff]
    %v1006 = vld [vmem:[%s0 + $0x11] sm:$0xff]
    %v1007 = vld [vmem:[%s0 + $0x19] sm:$0xff]
    %v1008 = vld [vmem:[%s0 + $0x21] sm:$0xff]
    %v1009 = vld [vmem:[%s0 + $0x29] sm:$0xff]
    %v1010 = vld [vmem:[%s0 + $0x31] sm:$0xff]
    %v1011 = vld [vmem:[%s0 + $0x39] sm:$0xff]
    %v1012 = vld [vmem:[%s0 + $0x41] sm:$0xff]
    %v1013 = vld [vmem:[%s0 + $0x49] sm:$0xff]
    %v1014 = vld [vmem:[%s0 + $0x51] sm:$0xff]
    %v1015 = vld [vmem:[%s0 + $0x59] sm:$0xff]
    %v1016 = vld [vmem:[%s0 + $0x61] sm:$0xff]
    %v1017 = vld [vmem:[%s0 + $0x69] sm:$0xff]
    %v1018 = vld [vmem:[%s1 + $0x14] sm:$0xf]
    %v1020 = vsel %vm62, %v1005, 0
    %v1023 = vsel %vm62, %v1006, 0
    %v1026 = vsel %vm62, %v1007, 0
    %v1029 = vsel %vm62, %v1008, 0
    %v1032 = vsel %vm62, %v1009, 0
    %v1035 = vsel %vm62, %v1010, 0
    %v1038 = vsel %vm62, %v1011, 0
    %v1041 = vsel %vm62, %v1012, 0
    %v1044 = vsel %vm62, %v1013, 0
    %v1047 = vsel %vm62, %v1014, 0
    %v1050 = vsel %vm62, %v1015, 0
    %v1053 = vsel %vm62, %v1016, 0
    %v1056 = vsel %vm62, %v1017, 0
    %v1059 = vsel %vm102, %v1018, 0
    %1061 = vmatprep.subr.mxu0 0.0
    %1062 = vmatpush1.msra.mxu0 0.0
    %1063 = vmatprep.subr.mxu0 0.0
    %1064 = vmatpush1.msra.mxu0 0.0
    %1065 = vmatprep.subr.mxu0 0.0
    %1066 = vmatpush1.msra.mxu0 0.0
    %1067 = vmatprep.subr.mxu0 0.0
    %1068 = vmatpush1.msra.mxu0 0.0
    %1069 = vmatprep.subr.mxu0 0.0
    %1070 = vmatpush1.msra.mxu0 0.0
    %1071 = vmatprep.subr.mxu0 0.0
    %1072 = vmatpush1.msra.mxu0 0.0
    %1073 = vmatprep.subr.mxu0 0.0
    %1074 = vmatpush1.msra.mxu0 0.0
    %1075 = vmatprep.subr.mxu0 0.0
    %1076 = vmatpush1.msra.mxu0 0.0
    %1077 = vmatprep.subr.mxu0 0.0
    %1078 = vmatpush1.msra.mxu0 0.0
    %1079 = vmatprep.subr.mxu0 0.0
    %1080 = vmatpush1.msra.mxu0 0.0
    %1081 = vmatprep.subr.mxu0 0.0
    %1082 = vmatpush1.msra.mxu0 0.0
    %1083 = vmatprep.subr.mxu0 0.0
    %1084 = vmatpush1.msra.mxu0 0.0
    %1085 = vmatprep.subr.mxu0 0.0
    %1086 = vmatpush1.msra.mxu0 0.0
    %1087 = vmatprep.subr.mxu0 0.0
    %1088 = vmatpush1.msra.mxu0 0.0
    %1089 = vmatprep.subr.mxu0 0.0
    %1090 = vmatpush1.msra.mxu0 0.0
    %1091 = vmatprep.subr.mxu0 0.0
    %1092 = vmatpush1.msra.mxu0 %v1059
    %1093 = vmatprep.subr.mxu0 0.0
    %1094 = vmatpush2.msra.mxu0 0.0
    %1095 = vmatprep.subr.mxu0 0.0
    %1096 = vmatpush2.msra.mxu0 0.0
    %1097 = vmatprep.subr.mxu0 0.0
    %1098 = vmatpush2.msra.mxu0 0.0
    %1099 = vmatprep.subr.mxu0 0.0
    %1100 = vmatpush2.msra.mxu0 0.0
    %1101 = vmatprep.subr.mxu0 0.0
    %1102 = vmatpush2.msra.mxu0 0.0
    %1103 = vmatprep.subr.mxu0 0.0
    %1104 = vmatpush2.msra.mxu0 0.0
    %1105 = vmatprep.subr.mxu0 0.0
    %1106 = vmatpush2.msra.mxu0 0.0
    %1107 = vmatprep.subr.mxu0 0.0
    %1108 = vmatpush2.msra.mxu0 0.0
    %1109 = vmatprep.subr.mxu0 0.0
    %1110 = vmatpush2.msra.mxu0 0.0
    %1111 = vmatprep.subr.mxu0 0.0
    %1112 = vmatpush2.msra.mxu0 0.0
    %1113 = vmatprep.subr.mxu0 0.0
    %1114 = vmatpush2.msra.mxu0 0.0
    %1115 = vmatprep.subr.mxu0 0.0
    %1116 = vmatpush2.msra.mxu0 0.0
    %1117 = vmatprep.subr.mxu0 0.0
    %1118 = vmatpush2.msra.mxu0 0.0
    %1119 = vmatprep.subr.mxu0 0.0
    %1120 = vmatpush2.msra.mxu0 0.0
    %1121 = vmatprep.subr.mxu0 0.0
    %1122 = vmatpush2.msra.mxu0 0.0
    %1123 = vmatprep.subr.mxu0 0.0
    %1124 = vmatpush2.msra.mxu0 0.0
    %1125 = vmatprep.mubr.f32.mxu0 0.0
    %1126 = vmatmul.mubr.f32.gmra.mxu0 %v1020
    %v1127 = vpop.f32.mrf.mxu0
    %v1128 = vadd.f32 0.0, %v1127
    %v1129 = vpop.f32.mrf.mxu0
    %1130 = vmatprep.mubr.f32.mxu0 0.0
    %1131 = vmatmul.mubr.f32.gmra.mxu0 %v1023
    %v1132 = vpop.f32.mrf.mxu0
    %v1133 = vadd.f32 0.0, %v1132
    %v1134 = vpop.f32.mrf.mxu0
    %1135 = vmatprep.mubr.f32.mxu0 0.0
    %1136 = vmatmul.mubr.f32.gmra.mxu0 %v1026
    %v1137 = vpop.f32.mrf.mxu0
    %v1138 = vadd.f32 0.0, %v1137
    %v1139 = vpop.f32.mrf.mxu0
    %1140 = vmatprep.mubr.f32.mxu0 0.0
    %1141 = vmatmul.mubr.f32.gmra.mxu0 %v1029
    %v1142 = vpop.f32.mrf.mxu0
    %v1143 = vadd.f32 0.0, %v1142
    %v1144 = vpop.f32.mrf.mxu0
    %1145 = vmatprep.mubr.f32.mxu0 0.0
    %1146 = vmatmul.mubr.f32.gmra.mxu0 %v1032
    %v1147 = vpop.f32.mrf.mxu0
    %v1148 = vadd.f32 0.0, %v1147
    %v1149 = vpop.f32.mrf.mxu0
    %1150 = vmatprep.mubr.f32.mxu0 0.0
    %1151 = vmatmul.mubr.f32.gmra.mxu0 %v1035
    %v1152 = vpop.f32.mrf.mxu0
    %v1153 = vadd.f32 0.0, %v1152
    %v1154 = vpop.f32.mrf.mxu0
    %1155 = vmatprep.mubr.f32.mxu0 0.0
    %1156 = vmatmul.mubr.f32.gmra.mxu0 %v1038
    %v1157 = vpop.f32.mrf.mxu0
    %v1158 = vadd.f32 0.0, %v1157
    %v1159 = vpop.f32.mrf.mxu0
    %1160 = vmatprep.mubr.f32.mxu0 0.0
    %1161 = vmatmul.mubr.f32.gmra.mxu0 %v1041
    %v1162 = vpop.f32.mrf.mxu0
    %v1163 = vadd.f32 0.0, %v1162
    %v1164 = vpop.f32.mrf.mxu0
    %1165 = vmatprep.mubr.f32.mxu0 0.0
    %1166 = vmatmul.mubr.f32.gmra.mxu0 %v1044
    %v1167 = vpop.f32.mrf.mxu0
    %v1168 = vadd.f32 0.0, %v1167
    %v1169 = vpop.f32.mrf.mxu0
    %1170 = vmatprep.mubr.f32.mxu0 0.0
    %1171 = vmatmul.mubr.f32.gmra.mxu0 %v1047
    %v1172 = vpop.f32.mrf.mxu0
    %v1173 = vadd.f32 0.0, %v1172
    %v1174 = vpop.f32.mrf.mxu0
    %1175 = vmatprep.mubr.f32.mxu0 0.0
    %1176 = vmatmul.mubr.f32.gmra.mxu0 %v1050
    %v1177 = vpop.f32.mrf.mxu0
    %v1178 = vadd.f32 0.0, %v1177
    %v1179 = vpop.f32.mrf.mxu0
    %1180 = vmatprep.mubr.f32.mxu0 0.0
    %1181 = vmatmul.mubr.f32.gmra.mxu0 %v1053
    %v1182 = vpop.f32.mrf.mxu0
    %v1183 = vadd.f32 0.0, %v1182
    %v1184 = vpop.f32.mrf.mxu0
    %1185 = vmatprep.mubr.f32.mxu0 0.0
    %1186 = vmatmul.mubr.f32.gmra.mxu0 %v1056
    %v1187 = vpop.f32.mrf.mxu0
    %v1188 = vadd.f32 0.0, %v1187
    %v1189 = vpop.f32.mrf.mxu0
    %1190 = vdwg.mxu0
    %v1191 = vadd.f32 %v992, %v1128
    %v1192 = vadd.f32 %v993, %v1133
    %v1193 = vadd.f32 %v994, %v1138
    %v1194 = vadd.f32 %v995, %v1143
    %v1195 = vadd.f32 %v996, %v1148
    %v1196 = vadd.f32 %v997, %v1153
    %v1197 = vadd.f32 %v998, %v1158
    %v1198 = vadd.f32 %v999, %v1163
    %v1199 = vadd.f32 %v1000, %v1168
    %v1200 = vadd.f32 %v1001, %v1173
    %v1201 = vadd.f32 %v1002, %v1178
    %v1202 = vadd.f32 %v1003, %v1183
    %v1203 = vadd.f32 %v1004, %v1188
    %v1204 = vld [vmem:[%s0 + $0xe] sm:$0xff]
    %v1205 = vld [vmem:[%s0 + $0x16] sm:$0xff]
    %v1206 = vld [vmem:[%s0 + $0x1e] sm:$0xff]
    %v1207 = vld [vmem:[%s0 + $0x26] sm:$0xff]
    %v1208 = vld [vmem:[%s0 + $0x2e] sm:$0xff]
    %v1209 = vld [vmem:[%s0 + $0x36] sm:$0xff]
    %v1210 = vld [vmem:[%s0 + $0x3e] sm:$0xff]
    %v1211 = vld [vmem:[%s0 + $0x46] sm:$0xff]
    %v1212 = vld [vmem:[%s0 + $0x4e] sm:$0xff]
    %v1213 = vld [vmem:[%s0 + $0x56] sm:$0xff]
    %v1214 = vld [vmem:[%s0 + $0x5e] sm:$0xff]
    %v1215 = vld [vmem:[%s0 + $0x66] sm:$0xff]
    %v1216 = vld [vmem:[%s0 + $0x6e] sm:$0xff]
    %v1217 = vld [vmem:[%s1 + $0x18] sm:$0xf]
    %v1219 = vsel %vm62, %v1204, 0
    %v1222 = vsel %vm62, %v1205, 0
    %v1225 = vsel %vm62, %v1206, 0
    %v1228 = vsel %vm62, %v1207, 0
    %v1231 = vsel %vm62, %v1208, 0
    %v1234 = vsel %vm62, %v1209, 0
    %v1237 = vsel %vm62, %v1210, 0
    %v1240 = vsel %vm62, %v1211, 0
    %v1243 = vsel %vm62, %v1212, 0
    %v1246 = vsel %vm62, %v1213, 0
    %v1249 = vsel %vm62, %v1214, 0
    %v1252 = vsel %vm62, %v1215, 0
    %v1255 = vsel %vm62, %v1216, 0
    %v1258 = vsel %vm102, %v1217, 0
    %1260 = vmatprep.subr.mxu0 0.0
    %1261 = vmatpush1.msra.mxu0 0.0
    %1262 = vmatprep.subr.mxu0 0.0
    %1263 = vmatpush1.msra.mxu0 0.0
    %1264 = vmatprep.subr.mxu0 0.0
    %1265 = vmatpush1.msra.mxu0 0.0
    %1266 = vmatprep.subr.mxu0 0.0
    %1267 = vmatpush1.msra.mxu0 0.0
    %1268 = vmatprep.subr.mxu0 0.0
    %1269 = vmatpush1.msra.mxu0 0.0
    %1270 = vmatprep.subr.mxu0 0.0
    %1271 = vmatpush1.msra.mxu0 0.0
    %1272 = vmatprep.subr.mxu0 0.0
    %1273 = vmatpush1.msra.mxu0 0.0
    %1274 = vmatprep.subr.mxu0 0.0
    %1275 = vmatpush1.msra.mxu0 0.0
    %1276 = vmatprep.subr.mxu0 0.0
    %1277 = vmatpush1.msra.mxu0 0.0
    %1278 = vmatprep.subr.mxu0 0.0
    %1279 = vmatpush1.msra.mxu0 0.0
    %1280 = vmatprep.subr.mxu0 0.0
    %1281 = vmatpush1.msra.mxu0 0.0
    %1282 = vmatprep.subr.mxu0 0.0
    %1283 = vmatpush1.msra.mxu0 0.0
    %1284 = vmatprep.subr.mxu0 0.0
    %1285 = vmatpush1.msra.mxu0 0.0
    %1286 = vmatprep.subr.mxu0 0.0
    %1287 = vmatpush1.msra.mxu0 0.0
    %1288 = vmatprep.subr.mxu0 0.0
    %1289 = vmatpush1.msra.mxu0 0.0
    %1290 = vmatprep.subr.mxu0 0.0
    %1291 = vmatpush1.msra.mxu0 %v1258
    %1292 = vmatprep.subr.mxu0 0.0
    %1293 = vmatpush2.msra.mxu0 0.0
    %1294 = vmatprep.subr.mxu0 0.0
    %1295 = vmatpush2.msra.mxu0 0.0
    %1296 = vmatprep.subr.mxu0 0.0
    %1297 = vmatpush2.msra.mxu0 0.0
    %1298 = vmatprep.subr.mxu0 0.0
    %1299 = vmatpush2.msra.mxu0 0.0
    %1300 = vmatprep.subr.mxu0 0.0
    %1301 = vmatpush2.msra.mxu0 0.0
    %1302 = vmatprep.subr.mxu0 0.0
    %1303 = vmatpush2.msra.mxu0 0.0
    %1304 = vmatprep.subr.mxu0 0.0
    %1305 = vmatpush2.msra.mxu0 0.0
    %1306 = vmatprep.subr.mxu0 0.0
    %1307 = vmatpush2.msra.mxu0 0.0
    %1308 = vmatprep.subr.mxu0 0.0
    %1309 = vmatpush2.msra.mxu0 0.0
    %1310 = vmatprep.subr.mxu0 0.0
    %1311 = vmatpush2.msra.mxu0 0.0
    %1312 = vmatprep.subr.mxu0 0.0
    %1313 = vmatpush2.msra.mxu0 0.0
    %1314 = vmatprep.subr.mxu0 0.0
    %1315 = vmatpush2.msra.mxu0 0.0
    %1316 = vmatprep.subr.mxu0 0.0
    %1317 = vmatpush2.msra.mxu0 0.0
    %1318 = vmatprep.subr.mxu0 0.0
    %1319 = vmatpush2.msra.mxu0 0.0
    %1320 = vmatprep.subr.mxu0 0.0
    %1321 = vmatpush2.msra.mxu0 0.0
    %1322 = vmatprep.subr.mxu0 0.0
    %1323 = vmatpush2.msra.mxu0 0.0
    %1324 = vmatprep.mubr.f32.mxu0 0.0
    %1325 = vmatmul.mubr.f32.gmra.mxu0 %v1219
    %v1326 = vpop.f32.mrf.mxu0
    %v1327 = vadd.f32 0.0, %v1326
    %v1328 = vpop.f32.mrf.mxu0
    %1329 = vmatprep.mubr.f32.mxu0 0.0
    %1330 = vmatmul.mubr.f32.gmra.mxu0 %v1222
    %v1331 = vpop.f32.mrf.mxu0
    %v1332 = vadd.f32 0.0, %v1331
    %v1333 = vpop.f32.mrf.mxu0
    %1334 = vmatprep.mubr.f32.mxu0 0.0
    %1335 = vmatmul.mubr.f32.gmra.mxu0 %v1225
    %v1336 = vpop.f32.mrf.mxu0
    %v1337 = vadd.f32 0.0, %v1336
    %v1338 = vpop.f32.mrf.mxu0
    %1339 = vmatprep.mubr.f32.mxu0 0.0
    %1340 = vmatmul.mubr.f32.gmra.mxu0 %v1228
    %v1341 = vpop.f32.mrf.mxu0
    %v1342 = vadd.f32 0.0, %v1341
    %v1343 = vpop.f32.mrf.mxu0
    %1344 = vmatprep.mubr.f32.mxu0 0.0
    %1345 = vmatmul.mubr.f32.gmra.mxu0 %v1231
    %v1346 = vpop.f32.mrf.mxu0
    %v1347 = vadd.f32 0.0, %v1346
    %v1348 = vpop.f32.mrf.mxu0
    %1349 = vmatprep.mubr.f32.mxu0 0.0
    %1350 = vmatmul.mubr.f32.gmra.mxu0 %v1234
    %v1351 = vpop.f32.mrf.mxu0
    %v1352 = vadd.f32 0.0, %v1351
    %v1353 = vpop.f32.mrf.mxu0
    %1354 = vmatprep.mubr.f32.mxu0 0.0
    %1355 = vmatmul.mubr.f32.gmra.mxu0 %v1237
    %v1356 = vpop.f32.mrf.mxu0
    %v1357 = vadd.f32 0.0, %v1356
    %v1358 = vpop.f32.mrf.mxu0
    %1359 = vmatprep.mubr.f32.mxu0 0.0
    %1360 = vmatmul.mubr.f32.gmra.mxu0 %v1240
    %v1361 = vpop.f32.mrf.mxu0
    %v1362 = vadd.f32 0.0, %v1361
    %v1363 = vpop.f32.mrf.mxu0
    %1364 = vmatprep.mubr.f32.mxu0 0.0
    %1365 = vmatmul.mubr.f32.gmra.mxu0 %v1243
    %v1366 = vpop.f32.mrf.mxu0
    %v1367 = vadd.f32 0.0, %v1366
    %v1368 = vpop.f32.mrf.mxu0
    %1369 = vmatprep.mubr.f32.mxu0 0.0
    %1370 = vmatmul.mubr.f32.gmra.mxu0 %v1246
    %v1371 = vpop.f32.mrf.mxu0
    %v1372 = vadd.f32 0.0, %v1371
    %v1373 = vpop.f32.mrf.mxu0
    %1374 = vmatprep.mubr.f32.mxu0 0.0
    %1375 = vmatmul.mubr.f32.gmra.mxu0 %v1249
    %v1376 = vpop.f32.mrf.mxu0
    %v1377 = vadd.f32 0.0, %v1376
    %v1378 = vpop.f32.mrf.mxu0
    %1379 = vmatprep.mubr.f32.mxu0 0.0
    %1380 = vmatmul.mubr.f32.gmra.mxu0 %v1252
    %v1381 = vpop.f32.mrf.mxu0
    %v1382 = vadd.f32 0.0, %v1381
    %v1383 = vpop.f32.mrf.mxu0
    %1384 = vmatprep.mubr.f32.mxu0 0.0
    %1385 = vmatmul.mubr.f32.gmra.mxu0 %v1255
    %v1386 = vpop.f32.mrf.mxu0
    %v1387 = vadd.f32 0.0, %v1386
    %v1388 = vpop.f32.mrf.mxu0
    %1389 = vdwg.mxu0
    %v1390 = vadd.f32 %v1191, %v1327
    %v1391 = vadd.f32 %v1192, %v1332
    %v1392 = vadd.f32 %v1193, %v1337
    %v1393 = vadd.f32 %v1194, %v1342
    %v1394 = vadd.f32 %v1195, %v1347
    %v1395 = vadd.f32 %v1196, %v1352
    %v1396 = vadd.f32 %v1197, %v1357
    %v1397 = vadd.f32 %v1198, %v1362
    %v1398 = vadd.f32 %v1199, %v1367
    %v1399 = vadd.f32 %v1200, %v1372
    %v1400 = vadd.f32 %v1201, %v1377
    %v1401 = vadd.f32 %v1202, %v1382
    %v1402 = vadd.f32 %v1203, %v1387
    %v1403 = vld [vmem:[%s0 + $0xf] sm:$0xff]
    %v1404 = vld [vmem:[%s0 + $0x17] sm:$0xff]
    %v1405 = vld [vmem:[%s0 + $0x1f] sm:$0xff]
    %v1406 = vld [vmem:[%s0 + $0x27] sm:$0xff]
    %v1407 = vld [vmem:[%s0 + $0x2f] sm:$0xff]
    %v1408 = vld [vmem:[%s0 + $0x37] sm:$0xff]
    %v1409 = vld [vmem:[%s0 + $0x3f] sm:$0xff]
    %v1410 = vld [vmem:[%s0 + $0x47] sm:$0xff]
    %v1411 = vld [vmem:[%s0 + $0x4f] sm:$0xff]
    %v1412 = vld [vmem:[%s0 + $0x57] sm:$0xff]
    %v1413 = vld [vmem:[%s0 + $0x5f] sm:$0xff]
    %v1414 = vld [vmem:[%s0 + $0x67] sm:$0xff]
    %v1415 = vld [vmem:[%s0 + $0x6f] sm:$0xff]
    %v1416 = vld [vmem:[%s1 + $0x1c] sm:$0xf]
    %v1418 = vsel %vm62, %v1403, 0
    %v1421 = vsel %vm62, %v1404, 0
    %v1424 = vsel %vm62, %v1405, 0
    %v1427 = vsel %vm62, %v1406, 0
    %v1430 = vsel %vm62, %v1407, 0
    %v1433 = vsel %vm62, %v1408, 0
    %v1436 = vsel %vm62, %v1409, 0
    %v1439 = vsel %vm62, %v1410, 0
    %v1442 = vsel %vm62, %v1411, 0
    %v1445 = vsel %vm62, %v1412, 0
    %v1448 = vsel %vm62, %v1413, 0
    %v1451 = vsel %vm62, %v1414, 0
    %v1454 = vsel %vm62, %v1415, 0
    %v1457 = vsel %vm102, %v1416, 0
    %1459 = vmatprep.subr.mxu0 0.0
    %1460 = vmatpush1.msra.mxu0 0.0
    %1461 = vmatprep.subr.mxu0 0.0
    %1462 = vmatpush1.msra.mxu0 0.0
    %1463 = vmatprep.subr.mxu0 0.0
    %1464 = vmatpush1.msra.mxu0 0.0
    %1465 = vmatprep.subr.mxu0 0.0
    %1466 = vmatpush1.msra.mxu0 0.0
    %1467 = vmatprep.subr.mxu0 0.0
    %1468 = vmatpush1.msra.mxu0 0.0
    %1469 = vmatprep.subr.mxu0 0.0
    %1470 = vmatpush1.msra.mxu0 0.0
    %1471 = vmatprep.subr.mxu0 0.0
    %1472 = vmatpush1.msra.mxu0 0.0
    %1473 = vmatprep.subr.mxu0 0.0
    %1474 = vmatpush1.msra.mxu0 0.0
    %1475 = vmatprep.subr.mxu0 0.0
    %1476 = vmatpush1.msra.mxu0 0.0
    %1477 = vmatprep.subr.mxu0 0.0
    %1478 = vmatpush1.msra.mxu0 0.0
    %1479 = vmatprep.subr.mxu0 0.0
    %1480 = vmatpush1.msra.mxu0 0.0
    %1481 = vmatprep.subr.mxu0 0.0
    %1482 = vmatpush1.msra.mxu0 0.0
    %1483 = vmatprep.subr.mxu0 0.0
    %1484 = vmatpush1.msra.mxu0 0.0
    %1485 = vmatprep.subr.mxu0 0.0
    %1486 = vmatpush1.msra.mxu0 0.0
    %1487 = vmatprep.subr.mxu0 0.0
    %1488 = vmatpush1.msra.mxu0 0.0
    %1489 = vmatprep.subr.mxu0 0.0
    %1490 = vmatpush1.msra.mxu0 %v1457
    %1491 = vmatprep.subr.mxu0 0.0
    %1492 = vmatpush2.msra.mxu0 0.0
    %1493 = vmatprep.subr.mxu0 0.0
    %1494 = vmatpush2.msra.mxu0 0.0
    %1495 = vmatprep.subr.mxu0 0.0
    %1496 = vmatpush2.msra.mxu0 0.0
    %1497 = vmatprep.subr.mxu0 0.0
    %1498 = vmatpush2.msra.mxu0 0.0
    %1499 = vmatprep.subr.mxu0 0.0
    %1500 = vmatpush2.msra.mxu0 0.0
    %1501 = vmatprep.subr.mxu0 0.0
    %1502 = vmatpush2.msra.mxu0 0.0
    %1503 = vmatprep.subr.mxu0 0.0
    %1504 = vmatpush2.msra.mxu0 0.0
    %1505 = vmatprep.subr.mxu0 0.0
    %1506 = vmatpush2.msra.mxu0 0.0
    %1507 = vmatprep.subr.mxu0 0.0
    %1508 = vmatpush2.msra.mxu0 0.0
    %1509 = vmatprep.subr.mxu0 0.0
    %1510 = vmatpush2.msra.mxu0 0.0
    %1511 = vmatprep.subr.mxu0 0.0
    %1512 = vmatpush2.msra.mxu0 0.0
    %1513 = vmatprep.subr.mxu0 0.0
    %1514 = vmatpush2.msra.mxu0 0.0
    %1515 = vmatprep.subr.mxu0 0.0
    %1516 = vmatpush2.msra.mxu0 0.0
    %1517 = vmatprep.subr.mxu0 0.0
    %1518 = vmatpush2.msra.mxu0 0.0
    %1519 = vmatprep.subr.mxu0 0.0
    %1520 = vmatpush2.msra.mxu0 0.0
    %1521 = vmatprep.subr.mxu0 0.0
    %1522 = vmatpush2.msra.mxu0 0.0
    %1523 = vmatprep.mubr.f32.mxu0 0.0
    %1524 = vmatmul.mubr.f32.gmra.mxu0 %v1418
    %v1525 = vpop.f32.mrf.mxu0
    %v1526 = vadd.f32 0.0, %v1525
    %v1527 = vpop.f32.mrf.mxu0
    %1528 = vmatprep.mubr.f32.mxu0 0.0
    %1529 = vmatmul.mubr.f32.gmra.mxu0 %v1421
    %v1530 = vpop.f32.mrf.mxu0
    %v1531 = vadd.f32 0.0, %v1530
    %v1532 = vpop.f32.mrf.mxu0
    %1533 = vmatprep.mubr.f32.mxu0 0.0
    %1534 = vmatmul.mubr.f32.gmra.mxu0 %v1424
    %v1535 = vpop.f32.mrf.mxu0
    %v1536 = vadd.f32 0.0, %v1535
    %v1537 = vpop.f32.mrf.mxu0
    %1538 = vmatprep.mubr.f32.mxu0 0.0
    %1539 = vmatmul.mubr.f32.gmra.mxu0 %v1427
    %v1540 = vpop.f32.mrf.mxu0
    %v1541 = vadd.f32 0.0, %v1540
    %v1542 = vpop.f32.mrf.mxu0
    %1543 = vmatprep.mubr.f32.mxu0 0.0
    %1544 = vmatmul.mubr.f32.gmra.mxu0 %v1430
    %v1545 = vpop.f32.mrf.mxu0
    %v1546 = vadd.f32 0.0, %v1545
    %v1547 = vpop.f32.mrf.mxu0
    %1548 = vmatprep.mubr.f32.mxu0 0.0
    %1549 = vmatmul.mubr.f32.gmra.mxu0 %v1433
    %v1550 = vpop.f32.mrf.mxu0
    %v1551 = vadd.f32 0.0, %v1550
    %v1552 = vpop.f32.mrf.mxu0
    %1553 = vmatprep.mubr.f32.mxu0 0.0
    %1554 = vmatmul.mubr.f32.gmra.mxu0 %v1436
    %v1555 = vpop.f32.mrf.mxu0
    %v1556 = vadd.f32 0.0, %v1555
    %v1557 = vpop.f32.mrf.mxu0
    %1558 = vmatprep.mubr.f32.mxu0 0.0
    %1559 = vmatmul.mubr.f32.gmra.mxu0 %v1439
    %v1560 = vpop.f32.mrf.mxu0
    %v1561 = vadd.f32 0.0, %v1560
    %v1562 = vpop.f32.mrf.mxu0
    %1563 = vmatprep.mubr.f32.mxu0 0.0
    %1564 = vmatmul.mubr.f32.gmra.mxu0 %v1442
    %v1565 = vpop.f32.mrf.mxu0
    %v1566 = vadd.f32 0.0, %v1565
    %v1567 = vpop.f32.mrf.mxu0
    %1568 = vmatprep.mubr.f32.mxu0 0.0
    %1569 = vmatmul.mubr.f32.gmra.mxu0 %v1445
    %v1570 = vpop.f32.mrf.mxu0
    %v1571 = vadd.f32 0.0, %v1570
    %v1572 = vpop.f32.mrf.mxu0
    %1573 = vmatprep.mubr.f32.mxu0 0.0
    %1574 = vmatmul.mubr.f32.gmra.mxu0 %v1448
    %v1575 = vpop.f32.mrf.mxu0
    %v1576 = vadd.f32 0.0, %v1575
    %v1577 = vpop.f32.mrf.mxu0
    %1578 = vmatprep.mubr.f32.mxu0 0.0
    %1579 = vmatmul.mubr.f32.gmra.mxu0 %v1451
    %v1580 = vpop.f32.mrf.mxu0
    %v1581 = vadd.f32 0.0, %v1580
    %v1582 = vpop.f32.mrf.mxu0
    %1583 = vmatprep.mubr.f32.mxu0 0.0
    %1584 = vmatmul.mubr.f32.gmra.mxu0 %v1454
    %v1585 = vpop.f32.mrf.mxu0
    %v1586 = vadd.f32 0.0, %v1585
    %v1587 = vpop.f32.mrf.mxu0
    %1588 = vdwg.mxu0
    %v1589 = vadd.f32 %v1390, %v1526
    %v1590 = vadd.f32 %v1391, %v1531
    %v1591 = vadd.f32 %v1392, %v1536
    %v1592 = vadd.f32 %v1393, %v1541
    %v1593 = vadd.f32 %v1394, %v1546
    %v1594 = vadd.f32 %v1395, %v1551
    %v1595 = vadd.f32 %v1396, %v1556
    %v1596 = vadd.f32 %v1397, %v1561
    %v1597 = vadd.f32 %v1398, %v1566
    %v1598 = vadd.f32 %v1399, %v1571
    %v1599 = vadd.f32 %v1400, %v1576
    %v1600 = vadd.f32 %v1401, %v1581
    %v1601 = vadd.f32 %v1402, %v1586
    %v1602 = vld [vmem:[%s0 + $0x10] sm:$0xff]
    %v1603 = vld [vmem:[%s0 + $0x18] sm:$0xff]
    %v1604 = vld [vmem:[%s0 + $0x20] sm:$0xff]
    %v1605 = vld [vmem:[%s0 + $0x28] sm:$0xff]
    %v1606 = vld [vmem:[%s0 + $0x30] sm:$0xff]
    %v1607 = vld [vmem:[%s0 + $0x38] sm:$0xff]
    %v1608 = vld [vmem:[%s0 + $0x40] sm:$0xff]
    %v1609 = vld [vmem:[%s0 + $0x48] sm:$0xff]
    %v1610 = vld [vmem:[%s0 + $0x50] sm:$0xff]
    %v1611 = vld [vmem:[%s0 + $0x58] sm:$0xff]
    %v1612 = vld [vmem:[%s0 + $0x60] sm:$0xff]
    %v1613 = vld [vmem:[%s0 + $0x68] sm:$0xff]
    %v1614 = vld [vmem:[%s0 + $0x70] sm:$0xff]
    %v1615 = vld [vmem:[%s1 + $0x20] sm:$0xf]
    %v1617 = vsel %vm62, %v1602, 0
    %v1620 = vsel %vm62, %v1603, 0
    %v1623 = vsel %vm62, %v1604, 0
    %v1626 = vsel %vm62, %v1605, 0
    %v1629 = vsel %vm62, %v1606, 0
    %v1632 = vsel %vm62, %v1607, 0
    %v1635 = vsel %vm62, %v1608, 0
    %v1638 = vsel %vm62, %v1609, 0
    %v1641 = vsel %vm62, %v1610, 0
    %v1644 = vsel %vm62, %v1611, 0
    %v1647 = vsel %vm62, %v1612, 0
    %v1650 = vsel %vm62, %v1613, 0
    %v1653 = vsel %vm62, %v1614, 0
    %v1656 = vsel %vm102, %v1615, 0
    %1658 = vmatprep.subr.mxu0 0.0
    %1659 = vmatpush1.msra.mxu0 0.0
    %1660 = vmatprep.subr.mxu0 0.0
    %1661 = vmatpush1.msra.mxu0 0.0
    %1662 = vmatprep.subr.mxu0 0.0
    %1663 = vmatpush1.msra.mxu0 0.0
    %1664 = vmatprep.subr.mxu0 0.0
    %1665 = vmatpush1.msra.mxu0 0.0
    %1666 = vmatprep.subr.mxu0 0.0
    %1667 = vmatpush1.msra.mxu0 0.0
    %1668 = vmatprep.subr.mxu0 0.0
    %1669 = vmatpush1.msra.mxu0 0.0
    %1670 = vmatprep.subr.mxu0 0.0
    %1671 = vmatpush1.msra.mxu0 0.0
    %1672 = vmatprep.subr.mxu0 0.0
    %1673 = vmatpush1.msra.mxu0 0.0
    %1674 = vmatprep.subr.mxu0 0.0
    %1675 = vmatpush1.msra.mxu0 0.0
    %1676 = vmatprep.subr.mxu0 0.0
    %1677 = vmatpush1.msra.mxu0 0.0
    %1678 = vmatprep.subr.mxu0 0.0
    %1679 = vmatpush1.msra.mxu0 0.0
    %1680 = vmatprep.subr.mxu0 0.0
    %1681 = vmatpush1.msra.mxu0 0.0
    %1682 = vmatprep.subr.mxu0 0.0
    %1683 = vmatpush1.msra.mxu0 0.0
    %1684 = vmatprep.subr.mxu0 0.0
    %1685 = vmatpush1.msra.mxu0 0.0
    %1686 = vmatprep.subr.mxu0 0.0
    %1687 = vmatpush1.msra.mxu0 0.0
    %1688 = vmatprep.subr.mxu0 0.0
    %1689 = vmatpush1.msra.mxu0 %v1656
    %1690 = vmatprep.subr.mxu0 0.0
    %1691 = vmatpush2.msra.mxu0 0.0
    %1692 = vmatprep.subr.mxu0 0.0
    %1693 = vmatpush2.msra.mxu0 0.0
    %1694 = vmatprep.subr.mxu0 0.0
    %1695 = vmatpush2.msra.mxu0 0.0
    %1696 = vmatprep.subr.mxu0 0.0
    %1697 = vmatpush2.msra.mxu0 0.0
    %1698 = vmatprep.subr.mxu0 0.0
    %1699 = vmatpush2.msra.mxu0 0.0
    %1700 = vmatprep.subr.mxu0 0.0
    %1701 = vmatpush2.msra.mxu0 0.0
    %1702 = vmatprep.subr.mxu0 0.0
    %1703 = vmatpush2.msra.mxu0 0.0
    %1704 = vmatprep.subr.mxu0 0.0
    %1705 = vmatpush2.msra.mxu0 0.0
    %1706 = vmatprep.subr.mxu0 0.0
    %1707 = vmatpush2.msra.mxu0 0.0
    %1708 = vmatprep.subr.mxu0 0.0
    %1709 = vmatpush2.msra.mxu0 0.0
    %1710 = vmatprep.subr.mxu0 0.0
    %1711 = vmatpush2.msra.mxu0 0.0
    %1712 = vmatprep.subr.mxu0 0.0
    %1713 = vmatpush2.msra.mxu0 0.0
    %1714 = vmatprep.subr.mxu0 0.0
    %1715 = vmatpush2.msra.mxu0 0.0
    %1716 = vmatprep.subr.mxu0 0.0
    %1717 = vmatpush2.msra.mxu0 0.0
    %1718 = vmatprep.subr.mxu0 0.0
    %1719 = vmatpush2.msra.mxu0 0.0
    %1720 = vmatprep.subr.mxu0 0.0
    %1721 = vmatpush2.msra.mxu0 0.0
    %1722 = vmatprep.mubr.f32.mxu0 0.0
    %1723 = vmatmul.mubr.f32.gmra.mxu0 %v1617
    %v1724 = vpop.f32.mrf.mxu0
    %v1725 = vadd.f32 0.0, %v1724
    %v1726 = vpop.f32.mrf.mxu0
    %1727 = vmatprep.mubr.f32.mxu0 0.0
    %1728 = vmatmul.mubr.f32.gmra.mxu0 %v1620
    %v1729 = vpop.f32.mrf.mxu0
    %v1730 = vadd.f32 0.0, %v1729
    %v1731 = vpop.f32.mrf.mxu0
    %1732 = vmatprep.mubr.f32.mxu0 0.0
    %1733 = vmatmul.mubr.f32.gmra.mxu0 %v1623
    %v1734 = vpop.f32.mrf.mxu0
    %v1735 = vadd.f32 0.0, %v1734
    %v1736 = vpop.f32.mrf.mxu0
    %1737 = vmatprep.mubr.f32.mxu0 0.0
    %1738 = vmatmul.mubr.f32.gmra.mxu0 %v1626
    %v1739 = vpop.f32.mrf.mxu0
    %v1740 = vadd.f32 0.0, %v1739
    %v1741 = vpop.f32.mrf.mxu0
    %1742 = vmatprep.mubr.f32.mxu0 0.0
    %1743 = vmatmul.mubr.f32.gmra.mxu0 %v1629
    %v1744 = vpop.f32.mrf.mxu0
    %v1745 = vadd.f32 0.0, %v1744
    %v1746 = vpop.f32.mrf.mxu0
    %1747 = vmatprep.mubr.f32.mxu0 0.0
    %1748 = vmatmul.mubr.f32.gmra.mxu0 %v1632
    %v1749 = vpop.f32.mrf.mxu0
    %v1750 = vadd.f32 0.0, %v1749
    %v1751 = vpop.f32.mrf.mxu0
    %1752 = vmatprep.mubr.f32.mxu0 0.0
    %1753 = vmatmul.mubr.f32.gmra.mxu0 %v1635
    %v1754 = vpop.f32.mrf.mxu0
    %v1755 = vadd.f32 0.0, %v1754
    %v1756 = vpop.f32.mrf.mxu0
    %1757 = vmatprep.mubr.f32.mxu0 0.0
    %1758 = vmatmul.mubr.f32.gmra.mxu0 %v1638
    %v1759 = vpop.f32.mrf.mxu0
    %v1760 = vadd.f32 0.0, %v1759
    %v1761 = vpop.f32.mrf.mxu0
    %1762 = vmatprep.mubr.f32.mxu0 0.0
    %1763 = vmatmul.mubr.f32.gmra.mxu0 %v1641
    %v1764 = vpop.f32.mrf.mxu0
    %v1765 = vadd.f32 0.0, %v1764
    %v1766 = vpop.f32.mrf.mxu0
    %1767 = vmatprep.mubr.f32.mxu0 0.0
    %1768 = vmatmul.mubr.f32.gmra.mxu0 %v1644
    %v1769 = vpop.f32.mrf.mxu0
    %v1770 = vadd.f32 0.0, %v1769
    %v1771 = vpop.f32.mrf.mxu0
    %1772 = vmatprep.mubr.f32.mxu0 0.0
    %1773 = vmatmul.mubr.f32.gmra.mxu0 %v1647
    %v1774 = vpop.f32.mrf.mxu0
    %v1775 = vadd.f32 0.0, %v1774
    %v1776 = vpop.f32.mrf.mxu0
    %1777 = vmatprep.mubr.f32.mxu0 0.0
    %1778 = vmatmul.mubr.f32.gmra.mxu0 %v1650
    %v1779 = vpop.f32.mrf.mxu0
    %v1780 = vadd.f32 0.0, %v1779
    %v1781 = vpop.f32.mrf.mxu0
    %1782 = vmatprep.mubr.f32.mxu0 0.0
    %1783 = vmatmul.mubr.f32.gmra.mxu0 %v1653
    %v1784 = vpop.f32.mrf.mxu0
    %v1785 = vadd.f32 0.0, %v1784
    %v1786 = vpop.f32.mrf.mxu0
    %1787 = vdwg.mxu0
    %v1788 = vadd.f32 %v1589, %v1725
    %v1789 = vadd.f32 %v1590, %v1730
    %v1790 = vadd.f32 %v1591, %v1735
    %v1791 = vadd.f32 %v1592, %v1740
    %v1792 = vadd.f32 %v1593, %v1745
    %v1793 = vadd.f32 %v1594, %v1750
    %v1794 = vadd.f32 %v1595, %v1755
    %v1795 = vadd.f32 %v1596, %v1760
    %v1796 = vadd.f32 %v1597, %v1765
    %v1797 = vadd.f32 %v1598, %v1770
    %v1798 = vadd.f32 %v1599, %v1775
    %v1799 = vadd.f32 %v1600, %v1780
    %v1800 = vadd.f32 %v1601, %v1785
    %v1802 = vlaneseq
    %v1803 = vshrl.u32 %v1802, 7
    %v1804 = vsub.s32 0, %v1803
    %v1805 = vrot.slane %v33, %v1804
    %v1807 = vadd.f32 %v1788, %v1805
    %v1808 = vadd.f32 %v1789, %v1805
    %v1809 = vadd.f32 %v1790, %v1805
    %v1810 = vadd.f32 %v1791, %v1805
    %v1811 = vadd.f32 %v1792, %v1805
    %v1812 = vadd.f32 %v1793, %v1805
    %v1813 = vadd.f32 %v1794, %v1805
    %v1814 = vadd.f32 %v1795, %v1805
    %v1815 = vadd.f32 %v1796, %v1805
    %v1816 = vadd.f32 %v1797, %v1805
    %v1817 = vadd.f32 %v1798, %v1805
    %v1818 = vadd.f32 %v1799, %v1805
    %v1819 = vadd.f32 %v1800, %v1805
    %v1820 = vmax.f32 %v1807, 0.0
    %v1821 = vmax.f32 %v1808, 0.0
    %v1822 = vmax.f32 %v1809, 0.0
    %v1823 = vmax.f32 %v1810, 0.0
    %v1824 = vmax.f32 %v1811, 0.0
    %v1825 = vmax.f32 %v1812, 0.0
    %v1826 = vmax.f32 %v1813, 0.0
    %v1827 = vmax.f32 %v1814, 0.0
    %v1828 = vmax.f32 %v1815, 0.0
    %v1829 = vmax.f32 %v1816, 0.0
    %v1830 = vmax.f32 %v1817, 0.0
    %v1831 = vmax.f32 %v1818, 0.0
    %v1832 = vmax.f32 %v1819, 0.0
    %vm1833 = vcmask 130048
    %1834 = vst.msk [vmem:[#allocation2] sm:$0xff] %vm1833, %v1820
    %1835 = vst.msk [vmem:[#allocation2 + $0x8] sm:$0xff] %vm1833, %v1821
    %1836 = vst.msk [vmem:[#allocation2 + $0x10] sm:$0xff] %vm1833, %v1822
    %1837 = vst.msk [vmem:[#allocation2 + $0x18] sm:$0xff] %vm1833, %v1823
    %1838 = vst.msk [vmem:[#allocation2 + $0x20] sm:$0xff] %vm1833, %v1824
    %1839 = vst.msk [vmem:[#allocation2 + $0x28] sm:$0xff] %vm1833, %v1825
    %1840 = vst.msk [vmem:[#allocation2 + $0x30] sm:$0xff] %vm1833, %v1826
    %1841 = vst.msk [vmem:[#allocation2 + $0x38] sm:$0xff] %vm1833, %v1827
    %1842 = vst.msk [vmem:[#allocation2 + $0x40] sm:$0xff] %vm1833, %v1828
    %1843 = vst.msk [vmem:[#allocation2 + $0x48] sm:$0xff] %vm1833, %v1829
    %1844 = vst.msk [vmem:[#allocation2 + $0x50] sm:$0xff] %vm1833, %v1830
    %1845 = vst.msk [vmem:[#allocation2 + $0x58] sm:$0xff] %vm1833, %v1831
    %1846 = vst.msk [vmem:[#allocation2 + $0x60] sm:$0xff] %vm1833, %v1832
    %v1847 = vld [vmem:[%s4] sm:$0x1]
    %v1848 = vld [vmem:[#allocation2] sm:$0xff]
    %v1849 = vld [vmem:[#allocation2 + $0x8] sm:$0xff]
    %v1850 = vld [vmem:[#allocation2 + $0x10] sm:$0xff]
    %v1851 = vld [vmem:[#allocation2 + $0x18] sm:$0xff]
    %v1852 = vld [vmem:[#allocation2 + $0x20] sm:$0xff]
    %v1853 = vld [vmem:[#allocation2 + $0x28] sm:$0xff]
    %v1854 = vld [vmem:[#allocation2 + $0x30] sm:$0xff]
    %v1855 = vld [vmem:[#allocation2 + $0x38] sm:$0xff]
    %v1856 = vld [vmem:[#allocation2 + $0x40] sm:$0xff]
    %v1857 = vld [vmem:[#allocation2 + $0x48] sm:$0xff]
    %v1858 = vld [vmem:[#allocation2 + $0x50] sm:$0xff]
    %v1859 = vld [vmem:[%s3] sm:$0xff]
    %v1860 = vld [vmem:[%s3 + $0x8] sm:$0xff]
    %v1861 = vld [vmem:[#allocation2 + $0x1] sm:$0xff]
    %v1862 = vld [vmem:[#allocation2 + $0x9] sm:$0xff]
    %v1863 = vld [vmem:[#allocation2 + $0x11] sm:$0xff]
    %v1864 = vld [vmem:[#allocation2 + $0x19] sm:$0xff]
    %v1865 = vld [vmem:[#allocation2 + $0x21] sm:$0xff]
    %v1866 = vld [vmem:[#allocation2 + $0x29] sm:$0xff]
    %v1867 = vld [vmem:[#allocation2 + $0x31] sm:$0xff]
    %v1868 = vld [vmem:[#allocation2 + $0x39] sm:$0xff]
    %v1869 = vld [vmem:[#allocation2 + $0x41] sm:$0xff]
    %v1870 = vld [vmem:[#allocation2 + $0x49] sm:$0xff]
    %v1871 = vld [vmem:[#allocation2 + $0x51] sm:$0xff]
    %v1872 = vld [vmem:[%s3 + $0x10] sm:$0xff]
    %v1873 = vld [vmem:[%s3 + $0x18] sm:$0xff]
    %v1875 = vsel %vm1833, %v1861, 0
    %v1878 = vsel %vm1833, %v1862, 0
    %v1881 = vsel %vm1833, %v1863, 0
    %v1884 = vsel %vm1833, %v1864, 0
    %v1887 = vsel %vm1833, %v1865, 0
    %v1890 = vsel %vm1833, %v1866, 0
    %v1893 = vsel %vm1833, %v1867, 0
    %v1896 = vsel %vm1833, %v1868, 0
    %v1899 = vsel %vm1833, %v1869, 0
    %v1902 = vsel %vm1833, %v1870, 0
    %v1905 = vsel %vm1833, %v1871, 0
    %1907 = vmatprep.subr.mxu0 0.0
    %1908 = vmatpush1.msra.mxu0 0.0
    %1909 = vmatprep.subr.mxu0 0.0
    %1910 = vmatpush1.msra.mxu0 0.0
    %1911 = vmatprep.subr.mxu0 0.0
    %1912 = vmatpush1.msra.mxu0 0.0
    %1913 = vmatprep.subr.mxu0 0.0
    %1914 = vmatpush1.msra.mxu0 0.0
    %1915 = vmatprep.subr.mxu0 0.0
    %1916 = vmatpush1.msra.mxu0 0.0
    %1917 = vmatprep.subr.mxu0 0.0
    %1918 = vmatpush1.msra.mxu0 0.0
    %1919 = vmatprep.subr.mxu0 0.0
    %1920 = vmatpush1.msra.mxu0 0.0
    %1921 = vmatprep.subr.mxu0 0.0
    %1922 = vmatpush1.msra.mxu0 0.0
    %1923 = vmatprep.subr.mxu0 0.0
    %1924 = vmatpush1.msra.mxu0 0.0
    %1925 = vmatprep.subr.mxu0 0.0
    %1926 = vmatpush1.msra.mxu0 0.0
    %1927 = vmatprep.subr.mxu0 0.0
    %1928 = vmatpush1.msra.mxu0 0.0
    %1929 = vmatprep.subr.mxu0 0.0
    %1930 = vmatpush1.msra.mxu0 0.0
    %1931 = vmatprep.subr.mxu0 0.0
    %1932 = vmatpush1.msra.mxu0 0.0
    %1933 = vmatprep.subr.mxu0 0.0
    %1934 = vmatpush1.msra.mxu0 0.0
    %1935 = vmatprep.subr.mxu0 0.0
    %1936 = vmatpush1.msra.mxu0 %v1873
    %1937 = vmatprep.subr.mxu0 0.0
    %1938 = vmatpush1.msra.mxu0 %v1872
    %1939 = vmatprep.subr.mxu0 0.0
    %1940 = vmatpush2.msra.mxu0 0.0
    %1941 = vmatprep.subr.mxu0 0.0
    %1942 = vmatpush2.msra.mxu0 0.0
    %1943 = vmatprep.subr.mxu0 0.0
    %1944 = vmatpush2.msra.mxu0 0.0
    %1945 = vmatprep.subr.mxu0 0.0
    %1946 = vmatpush2.msra.mxu0 0.0
    %1947 = vmatprep.subr.mxu0 0.0
    %1948 = vmatpush2.msra.mxu0 0.0
    %1949 = vmatprep.subr.mxu0 0.0
    %1950 = vmatpush2.msra.mxu0 0.0
    %1951 = vmatprep.subr.mxu0 0.0
    %1952 = vmatpush2.msra.mxu0 0.0
    %1953 = vmatprep.subr.mxu0 0.0
    %1954 = vmatpush2.msra.mxu0 0.0
    %1955 = vmatprep.subr.mxu0 0.0
    %1956 = vmatpush2.msra.mxu0 0.0
    %1957 = vmatprep.subr.mxu0 0.0
    %1958 = vmatpush2.msra.mxu0 0.0
    %1959 = vmatprep.subr.mxu0 0.0
    %1960 = vmatpush2.msra.mxu0 0.0
    %1961 = vmatprep.subr.mxu0 0.0
    %1962 = vmatpush2.msra.mxu0 0.0
    %1963 = vmatprep.subr.mxu0 0.0
    %1964 = vmatpush2.msra.mxu0 0.0
    %1965 = vmatprep.subr.mxu0 0.0
    %1966 = vmatpush2.msra.mxu0 0.0
    %1967 = vmatprep.subr.mxu0 0.0
    %1968 = vmatpush2.msra.mxu0 0.0
    %1969 = vmatprep.subr.mxu0 0.0
    %1970 = vmatpush2.msra.mxu0 0.0
    %1971 = vmatprep.mubr.f32.mxu0 0.0
    %1972 = vmatmul.mubr.f32.gmra.mxu0 %v1875
    %v1973 = vpop.f32.mrf.mxu0
    %v1974 = vadd.f32 0.0, %v1973
    %v1975 = vpop.f32.mrf.mxu0
    %1976 = vmatprep.mubr.f32.mxu0 0.0
    %1977 = vmatmul.mubr.f32.gmra.mxu0 %v1878
    %v1978 = vpop.f32.mrf.mxu0
    %v1979 = vadd.f32 0.0, %v1978
    %v1980 = vpop.f32.mrf.mxu0
    %1981 = vmatprep.mubr.f32.mxu0 0.0
    %1982 = vmatmul.mubr.f32.gmra.mxu0 %v1881
    %v1983 = vpop.f32.mrf.mxu0
    %v1984 = vadd.f32 0.0, %v1983
    %v1985 = vpop.f32.mrf.mxu0
    %1986 = vmatprep.mubr.f32.mxu0 0.0
    %1987 = vmatmul.mubr.f32.gmra.mxu0 %v1884
    %v1988 = vpop.f32.mrf.mxu0
    %v1989 = vadd.f32 0.0, %v1988
    %v1990 = vpop.f32.mrf.mxu0
    %1991 = vmatprep.mubr.f32.mxu0 0.0
    %1992 = vmatmul.mubr.f32.gmra.mxu0 %v1887
    %v1993 = vpop.f32.mrf.mxu0
    %v1994 = vadd.f32 0.0, %v1993
    %v1995 = vpop.f32.mrf.mxu0
    %1996 = vmatprep.mubr.f32.mxu0 0.0
    %1997 = vmatmul.mubr.f32.gmra.mxu0 %v1890
    %v1998 = vpop.f32.mrf.mxu0
    %v1999 = vadd.f32 0.0, %v1998
    %v2000 = vpop.f32.mrf.mxu0
    %2001 = vmatprep.mubr.f32.mxu0 0.0
    %2002 = vmatmul.mubr.f32.gmra.mxu0 %v1893
    %v2003 = vpop.f32.mrf.mxu0
    %v2004 = vadd.f32 0.0, %v2003
    %v2005 = vpop.f32.mrf.mxu0
    %2006 = vmatprep.mubr.f32.mxu0 0.0
    %2007 = vmatmul.mubr.f32.gmra.mxu0 %v1896
    %v2008 = vpop.f32.mrf.mxu0
    %v2009 = vadd.f32 0.0, %v2008
    %v2010 = vpop.f32.mrf.mxu0
    %2011 = vmatprep.mubr.f32.mxu0 0.0
    %2012 = vmatmul.mubr.f32.gmra.mxu0 %v1899
    %v2013 = vpop.f32.mrf.mxu0
    %v2014 = vadd.f32 0.0, %v2013
    %v2015 = vpop.f32.mrf.mxu0
    %2016 = vmatprep.mubr.f32.mxu0 0.0
    %2017 = vmatmul.mubr.f32.gmra.mxu0 %v1902
    %v2018 = vpop.f32.mrf.mxu0
    %v2019 = vadd.f32 0.0, %v2018
    %v2020 = vpop.f32.mrf.mxu0
    %2021 = vmatprep.mubr.f32.mxu0 0.0
    %2022 = vmatmul.mubr.f32.gmra.mxu0 %v1905
    %v2023 = vpop.f32.mrf.mxu0
    %v2024 = vadd.f32 0.0, %v2023
    %v2025 = vpop.f32.mrf.mxu0
    %2026 = vdwg.mxu0
    %v2028 = vsel %vm1833, %v1848, 0
    %v2031 = vsel %vm1833, %v1849, 0
    %v2034 = vsel %vm1833, %v1850, 0
    %v2037 = vsel %vm1833, %v1851, 0
    %v2040 = vsel %vm1833, %v1852, 0
    %v2043 = vsel %vm1833, %v1853, 0
    %v2046 = vsel %vm1833, %v1854, 0
    %v2049 = vsel %vm1833, %v1855, 0
    %v2052 = vsel %vm1833, %v1856, 0
    %v2055 = vsel %vm1833, %v1857, 0
    %v2058 = vsel %vm1833, %v1858, 0
    %2060 = vmatprep.subr.mxu0 0.0
    %2061 = vmatpush1.msra.mxu0 0.0
    %2062 = vmatprep.subr.mxu0 0.0
    %2063 = vmatpush1.msra.mxu0 0.0
    %2064 = vmatprep.subr.mxu0 0.0
    %2065 = vmatpush1.msra.mxu0 0.0
    %2066 = vmatprep.subr.mxu0 0.0
    %2067 = vmatpush1.msra.mxu0 0.0
    %2068 = vmatprep.subr.mxu0 0.0
    %2069 = vmatpush1.msra.mxu0 0.0
    %2070 = vmatprep.subr.mxu0 0.0
    %2071 = vmatpush1.msra.mxu0 0.0
    %2072 = vmatprep.subr.mxu0 0.0
    %2073 = vmatpush1.msra.mxu0 0.0
    %2074 = vmatprep.subr.mxu0 0.0
    %2075 = vmatpush1.msra.mxu0 0.0
    %2076 = vmatprep.subr.mxu0 0.0
    %2077 = vmatpush1.msra.mxu0 0.0
    %2078 = vmatprep.subr.mxu0 0.0
    %2079 = vmatpush1.msra.mxu0 0.0
    %2080 = vmatprep.subr.mxu0 0.0
    %2081 = vmatpush1.msra.mxu0 0.0
    %2082 = vmatprep.subr.mxu0 0.0
    %2083 = vmatpush1.msra.mxu0 0.0
    %2084 = vmatprep.subr.mxu0 0.0
    %2085 = vmatpush1.msra.mxu0 0.0
    %2086 = vmatprep.subr.mxu0 0.0
    %2087 = vmatpush1.msra.mxu0 0.0
    %2088 = vmatprep.subr.mxu0 0.0
    %2089 = vmatpush1.msra.mxu0 %v1860
    %2090 = vmatprep.subr.mxu0 0.0
    %2091 = vmatpush1.msra.mxu0 %v1859
    %2092 = vmatprep.subr.mxu0 0.0
    %2093 = vmatpush2.msra.mxu0 0.0
    %2094 = vmatprep.subr.mxu0 0.0
    %2095 = vmatpush2.msra.mxu0 0.0
    %2096 = vmatprep.subr.mxu0 0.0
    %2097 = vmatpush2.msra.mxu0 0.0
    %2098 = vmatprep.subr.mxu0 0.0
    %2099 = vmatpush2.msra.mxu0 0.0
    %2100 = vmatprep.subr.mxu0 0.0
    %2101 = vmatpush2.msra.mxu0 0.0
    %2102 = vmatprep.subr.mxu0 0.0
    %2103 = vmatpush2.msra.mxu0 0.0
    %2104 = vmatprep.subr.mxu0 0.0
    %2105 = vmatpush2.msra.mxu0 0.0
    %2106 = vmatprep.subr.mxu0 0.0
    %2107 = vmatpush2.msra.mxu0 0.0
    %2108 = vmatprep.subr.mxu0 0.0
    %2109 = vmatpush2.msra.mxu0 0.0
    %2110 = vmatprep.subr.mxu0 0.0
    %2111 = vmatpush2.msra.mxu0 0.0
    %2112 = vmatprep.subr.mxu0 0.0
    %2113 = vmatpush2.msra.mxu0 0.0
    %2114 = vmatprep.subr.mxu0 0.0
    %2115 = vmatpush2.msra.mxu0 0.0
    %2116 = vmatprep.subr.mxu0 0.0
    %2117 = vmatpush2.msra.mxu0 0.0
    %2118 = vmatprep.subr.mxu0 0.0
    %2119 = vmatpush2.msra.mxu0 0.0
    %2120 = vmatprep.subr.mxu0 0.0
    %2121 = vmatpush2.msra.mxu0 0.0
    %2122 = vmatprep.subr.mxu0 0.0
    %2123 = vmatpush2.msra.mxu0 0.0
    %2124 = vmatprep.mubr.f32.mxu0 0.0
    %2125 = vmatmul.mubr.f32.gmra.mxu0 %v2028
    %v2126 = vpop.f32.mrf.mxu0
    %v2127 = vadd.f32 %v1974, %v2126
    %v2128 = vpop.f32.mrf.mxu0
    %2129 = vmatprep.mubr.f32.mxu0 0.0
    %2130 = vmatmul.mubr.f32.gmra.mxu0 %v2031
    %v2131 = vpop.f32.mrf.mxu0
    %v2132 = vadd.f32 %v1979, %v2131
    %v2133 = vpop.f32.mrf.mxu0
    %2134 = vmatprep.mubr.f32.mxu0 0.0
    %2135 = vmatmul.mubr.f32.gmra.mxu0 %v2034
    %v2136 = vpop.f32.mrf.mxu0
    %v2137 = vadd.f32 %v1984, %v2136
    %v2138 = vpop.f32.mrf.mxu0
    %2139 = vmatprep.mubr.f32.mxu0 0.0
    %2140 = vmatmul.mubr.f32.gmra.mxu0 %v2037
    %v2141 = vpop.f32.mrf.mxu0
    %v2142 = vadd.f32 %v1989, %v2141
    %v2143 = vpop.f32.mrf.mxu0
    %2144 = vmatprep.mubr.f32.mxu0 0.0
    %2145 = vmatmul.mubr.f32.gmra.mxu0 %v2040
    %v2146 = vpop.f32.mrf.mxu0
    %v2147 = vadd.f32 %v1994, %v2146
    %v2148 = vpop.f32.mrf.mxu0
    %2149 = vmatprep.mubr.f32.mxu0 0.0
    %2150 = vmatmul.mubr.f32.gmra.mxu0 %v2043
    %v2151 = vpop.f32.mrf.mxu0
    %v2152 = vadd.f32 %v1999, %v2151
    %v2153 = vpop.f32.mrf.mxu0
    %2154 = vmatprep.mubr.f32.mxu0 0.0
    %2155 = vmatmul.mubr.f32.gmra.mxu0 %v2046
    %v2156 = vpop.f32.mrf.mxu0
    %v2157 = vadd.f32 %v2004, %v2156
    %v2158 = vpop.f32.mrf.mxu0
    %2159 = vmatprep.mubr.f32.mxu0 0.0
    %2160 = vmatmul.mubr.f32.gmra.mxu0 %v2049
    %v2161 = vpop.f32.mrf.mxu0
    %v2162 = vadd.f32 %v2009, %v2161
    %v2163 = vpop.f32.mrf.mxu0
    %2164 = vmatprep.mubr.f32.mxu0 0.0
    %2165 = vmatmul.mubr.f32.gmra.mxu0 %v2052
    %v2166 = vpop.f32.mrf.mxu0
    %v2167 = vadd.f32 %v2014, %v2166
    %v2168 = vpop.f32.mrf.mxu0
    %2169 = vmatprep.mubr.f32.mxu0 0.0
    %2170 = vmatmul.mubr.f32.gmra.mxu0 %v2055
    %v2171 = vpop.f32.mrf.mxu0
    %v2172 = vadd.f32 %v2019, %v2171
    %v2173 = vpop.f32.mrf.mxu0
    %2174 = vmatprep.mubr.f32.mxu0 0.0
    %2175 = vmatmul.mubr.f32.gmra.mxu0 %v2058
    %v2176 = vpop.f32.mrf.mxu0
    %v2177 = vadd.f32 %v2024, %v2176
    %v2178 = vpop.f32.mrf.mxu0
    %2179 = vdwg.mxu0
    %v2180 = vld [vmem:[#allocation2 + $0x2] sm:$0xff]
    %v2181 = vld [vmem:[#allocation2 + $0xa] sm:$0xff]
    %v2182 = vld [vmem:[#allocation2 + $0x12] sm:$0xff]
    %v2183 = vld [vmem:[#allocation2 + $0x1a] sm:$0xff]
    %v2184 = vld [vmem:[#allocation2 + $0x22] sm:$0xff]
    %v2185 = vld [vmem:[#allocation2 + $0x2a] sm:$0xff]
    %v2186 = vld [vmem:[#allocation2 + $0x32] sm:$0xff]
    %v2187 = vld [vmem:[#allocation2 + $0x3a] sm:$0xff]
    %v2188 = vld [vmem:[#allocation2 + $0x42] sm:$0xff]
    %v2189 = vld [vmem:[#allocation2 + $0x4a] sm:$0xff]
    %v2190 = vld [vmem:[#allocation2 + $0x52] sm:$0xff]
    %v2191 = vld [vmem:[%s3 + $0x20] sm:$0xff]
    %v2192 = vld [vmem:[%s3 + $0x28] sm:$0xff]
    %v2194 = vsel %vm1833, %v2180, 0
    %v2197 = vsel %vm1833, %v2181, 0
    %v2200 = vsel %vm1833, %v2182, 0
    %v2203 = vsel %vm1833, %v2183, 0
    %v2206 = vsel %vm1833, %v2184, 0
    %v2209 = vsel %vm1833, %v2185, 0
    %v2212 = vsel %vm1833, %v2186, 0
    %v2215 = vsel %vm1833, %v2187, 0
    %v2218 = vsel %vm1833, %v2188, 0
    %v2221 = vsel %vm1833, %v2189, 0
    %v2224 = vsel %vm1833, %v2190, 0
    %2226 = vmatprep.subr.mxu0 0.0
    %2227 = vmatpush1.msra.mxu0 0.0
    %2228 = vmatprep.subr.mxu0 0.0
    %2229 = vmatpush1.msra.mxu0 0.0
    %2230 = vmatprep.subr.mxu0 0.0
    %2231 = vmatpush1.msra.mxu0 0.0
    %2232 = vmatprep.subr.mxu0 0.0
    %2233 = vmatpush1.msra.mxu0 0.0
    %2234 = vmatprep.subr.mxu0 0.0
    %2235 = vmatpush1.msra.mxu0 0.0
    %2236 = vmatprep.subr.mxu0 0.0
    %2237 = vmatpush1.msra.mxu0 0.0
    %2238 = vmatprep.subr.mxu0 0.0
    %2239 = vmatpush1.msra.mxu0 0.0
    %2240 = vmatprep.subr.mxu0 0.0
    %2241 = vmatpush1.msra.mxu0 0.0
    %2242 = vmatprep.subr.mxu0 0.0
    %2243 = vmatpush1.msra.mxu0 0.0
    %2244 = vmatprep.subr.mxu0 0.0
    %2245 = vmatpush1.msra.mxu0 0.0
    %2246 = vmatprep.subr.mxu0 0.0
    %2247 = vmatpush1.msra.mxu0 0.0
    %2248 = vmatprep.subr.mxu0 0.0
    %2249 = vmatpush1.msra.mxu0 0.0
    %2250 = vmatprep.subr.mxu0 0.0
    %2251 = vmatpush1.msra.mxu0 0.0
    %2252 = vmatprep.subr.mxu0 0.0
    %2253 = vmatpush1.msra.mxu0 0.0
    %2254 = vmatprep.subr.mxu0 0.0
    %2255 = vmatpush1.msra.mxu0 %v2192
    %2256 = vmatprep.subr.mxu0 0.0
    %2257 = vmatpush1.msra.mxu0 %v2191
    %2258 = vmatprep.subr.mxu0 0.0
    %2259 = vmatpush2.msra.mxu0 0.0
    %2260 = vmatprep.subr.mxu0 0.0
    %2261 = vmatpush2.msra.mxu0 0.0
    %2262 = vmatprep.subr.mxu0 0.0
    %2263 = vmatpush2.msra.mxu0 0.0
    %2264 = vmatprep.subr.mxu0 0.0
    %2265 = vmatpush2.msra.mxu0 0.0
    %2266 = vmatprep.subr.mxu0 0.0
    %2267 = vmatpush2.msra.mxu0 0.0
    %2268 = vmatprep.subr.mxu0 0.0
    %2269 = vmatpush2.msra.mxu0 0.0
    %2270 = vmatprep.subr.mxu0 0.0
    %2271 = vmatpush2.msra.mxu0 0.0
    %2272 = vmatprep.subr.mxu0 0.0
    %2273 = vmatpush2.msra.mxu0 0.0
    %2274 = vmatprep.subr.mxu0 0.0
    %2275 = vmatpush2.msra.mxu0 0.0
    %2276 = vmatprep.subr.mxu0 0.0
    %2277 = vmatpush2.msra.mxu0 0.0
    %2278 = vmatprep.subr.mxu0 0.0
    %2279 = vmatpush2.msra.mxu0 0.0
    %2280 = vmatprep.subr.mxu0 0.0
    %2281 = vmatpush2.msra.mxu0 0.0
    %2282 = vmatprep.subr.mxu0 0.0
    %2283 = vmatpush2.msra.mxu0 0.0
    %2284 = vmatprep.subr.mxu0 0.0
    %2285 = vmatpush2.msra.mxu0 0.0
    %2286 = vmatprep.subr.mxu0 0.0
    %2287 = vmatpush2.msra.mxu0 0.0
    %2288 = vmatprep.subr.mxu0 0.0
    %2289 = vmatpush2.msra.mxu0 0.0
    %2290 = vmatprep.mubr.f32.mxu0 0.0
    %2291 = vmatmul.mubr.f32.gmra.mxu0 %v2194
    %v2292 = vpop.f32.mrf.mxu0
    %v2293 = vadd.f32 0.0, %v2292
    %v2294 = vpop.f32.mrf.mxu0
    %2295 = vmatprep.mubr.f32.mxu0 0.0
    %2296 = vmatmul.mubr.f32.gmra.mxu0 %v2197
    %v2297 = vpop.f32.mrf.mxu0
    %v2298 = vadd.f32 0.0, %v2297
    %v2299 = vpop.f32.mrf.mxu0
    %2300 = vmatprep.mubr.f32.mxu0 0.0
    %2301 = vmatmul.mubr.f32.gmra.mxu0 %v2200
    %v2302 = vpop.f32.mrf.mxu0
    %v2303 = vadd.f32 0.0, %v2302
    %v2304 = vpop.f32.mrf.mxu0
    %2305 = vmatprep.mubr.f32.mxu0 0.0
    %2306 = vmatmul.mubr.f32.gmra.mxu0 %v2203
    %v2307 = vpop.f32.mrf.mxu0
    %v2308 = vadd.f32 0.0, %v2307
    %v2309 = vpop.f32.mrf.mxu0
    %2310 = vmatprep.mubr.f32.mxu0 0.0
    %2311 = vmatmul.mubr.f32.gmra.mxu0 %v2206
    %v2312 = vpop.f32.mrf.mxu0
    %v2313 = vadd.f32 0.0, %v2312
    %v2314 = vpop.f32.mrf.mxu0
    %2315 = vmatprep.mubr.f32.mxu0 0.0
    %2316 = vmatmul.mubr.f32.gmra.mxu0 %v2209
    %v2317 = vpop.f32.mrf.mxu0
    %v2318 = vadd.f32 0.0, %v2317
    %v2319 = vpop.f32.mrf.mxu0
    %2320 = vmatprep.mubr.f32.mxu0 0.0
    %2321 = vmatmul.mubr.f32.gmra.mxu0 %v2212
    %v2322 = vpop.f32.mrf.mxu0
    %v2323 = vadd.f32 0.0, %v2322
    %v2324 = vpop.f32.mrf.mxu0
    %2325 = vmatprep.mubr.f32.mxu0 0.0
    %2326 = vmatmul.mubr.f32.gmra.mxu0 %v2215
    %v2327 = vpop.f32.mrf.mxu0
    %v2328 = vadd.f32 0.0, %v2327
    %v2329 = vpop.f32.mrf.mxu0
    %2330 = vmatprep.mubr.f32.mxu0 0.0
    %2331 = vmatmul.mubr.f32.gmra.mxu0 %v2218
    %v2332 = vpop.f32.mrf.mxu0
    %v2333 = vadd.f32 0.0, %v2332
    %v2334 = vpop.f32.mrf.mxu0
    %2335 = vmatprep.mubr.f32.mxu0 0.0
    %2336 = vmatmul.mubr.f32.gmra.mxu0 %v2221
    %v2337 = vpop.f32.mrf.mxu0
    %v2338 = vadd.f32 0.0, %v2337
    %v2339 = vpop.f32.mrf.mxu0
    %2340 = vmatprep.mubr.f32.mxu0 0.0
    %2341 = vmatmul.mubr.f32.gmra.mxu0 %v2224
    %v2342 = vpop.f32.mrf.mxu0
    %v2343 = vadd.f32 0.0, %v2342
    %v2344 = vpop.f32.mrf.mxu0
    %2345 = vdwg.mxu0
    %v2346 = vadd.f32 %v2127, %v2293
    %v2347 = vadd.f32 %v2132, %v2298
    %v2348 = vadd.f32 %v2137, %v2303
    %v2349 = vadd.f32 %v2142, %v2308
    %v2350 = vadd.f32 %v2147, %v2313
    %v2351 = vadd.f32 %v2152, %v2318
    %v2352 = vadd.f32 %v2157, %v2323
    %v2353 = vadd.f32 %v2162, %v2328
    %v2354 = vadd.f32 %v2167, %v2333
    %v2355 = vadd.f32 %v2172, %v2338
    %v2356 = vadd.f32 %v2177, %v2343
    %v2357 = vld [vmem:[#allocation2 + $0x7] sm:$0xff]
    %v2358 = vld [vmem:[#allocation2 + $0xf] sm:$0xff]
    %v2359 = vld [vmem:[#allocation2 + $0x17] sm:$0xff]
    %v2360 = vld [vmem:[#allocation2 + $0x1f] sm:$0xff]
    %v2361 = vld [vmem:[#allocation2 + $0x27] sm:$0xff]
    %v2362 = vld [vmem:[#allocation2 + $0x2f] sm:$0xff]
    %v2363 = vld [vmem:[#allocation2 + $0x37] sm:$0xff]
    %v2364 = vld [vmem:[#allocation2 + $0x3f] sm:$0xff]
    %v2365 = vld [vmem:[#allocation2 + $0x47] sm:$0xff]
    %v2366 = vld [vmem:[#allocation2 + $0x4f] sm:$0xff]
    %v2367 = vld [vmem:[#allocation2 + $0x57] sm:$0xff]
    %v2368 = vld [vmem:[%s3 + $0x30] sm:$0xff]
    %v2369 = vld [vmem:[%s3 + $0x38] sm:$0xff]
    %v2371 = vsel %vm1833, %v2357, 0
    %v2374 = vsel %vm1833, %v2358, 0
    %v2377 = vsel %vm1833, %v2359, 0
    %v2380 = vsel %vm1833, %v2360, 0
    %v2383 = vsel %vm1833, %v2361, 0
    %v2386 = vsel %vm1833, %v2362, 0
    %v2389 = vsel %vm1833, %v2363, 0
    %v2392 = vsel %vm1833, %v2364, 0
    %v2395 = vsel %vm1833, %v2365, 0
    %v2398 = vsel %vm1833, %v2366, 0
    %v2401 = vsel %vm1833, %v2367, 0
    %2403 = vmatprep.subr.mxu0 0.0
    %2404 = vmatpush1.msra.mxu0 0.0
    %2405 = vmatprep.subr.mxu0 0.0
    %2406 = vmatpush1.msra.mxu0 0.0
    %2407 = vmatprep.subr.mxu0 0.0
    %2408 = vmatpush1.msra.mxu0 0.0
    %2409 = vmatprep.subr.mxu0 0.0
    %2410 = vmatpush1.msra.mxu0 0.0
    %2411 = vmatprep.subr.mxu0 0.0
    %2412 = vmatpush1.msra.mxu0 0.0
    %2413 = vmatprep.subr.mxu0 0.0
    %2414 = vmatpush1.msra.mxu0 0.0
    %2415 = vmatprep.subr.mxu0 0.0
    %2416 = vmatpush1.msra.mxu0 0.0
    %2417 = vmatprep.subr.mxu0 0.0
    %2418 = vmatpush1.msra.mxu0 0.0
    %2419 = vmatprep.subr.mxu0 0.0
    %2420 = vmatpush1.msra.mxu0 0.0
    %2421 = vmatprep.subr.mxu0 0.0
    %2422 = vmatpush1.msra.mxu0 0.0
    %2423 = vmatprep.subr.mxu0 0.0
    %2424 = vmatpush1.msra.mxu0 0.0
    %2425 = vmatprep.subr.mxu0 0.0
    %2426 = vmatpush1.msra.mxu0 0.0
    %2427 = vmatprep.subr.mxu0 0.0
    %2428 = vmatpush1.msra.mxu0 0.0
    %2429 = vmatprep.subr.mxu0 0.0
    %2430 = vmatpush1.msra.mxu0 0.0
    %2431 = vmatprep.subr.mxu0 0.0
    %2432 = vmatpush1.msra.mxu0 %v2369
    %2433 = vmatprep.subr.mxu0 0.0
    %2434 = vmatpush1.msra.mxu0 %v2368
    %2435 = vmatprep.subr.mxu0 0.0
    %2436 = vmatpush2.msra.mxu0 0.0
    %2437 = vmatprep.subr.mxu0 0.0
    %2438 = vmatpush2.msra.mxu0 0.0
    %2439 = vmatprep.subr.mxu0 0.0
    %2440 = vmatpush2.msra.mxu0 0.0
    %2441 = vmatprep.subr.mxu0 0.0
    %2442 = vmatpush2.msra.mxu0 0.0
    %2443 = vmatprep.subr.mxu0 0.0
    %2444 = vmatpush2.msra.mxu0 0.0
    %2445 = vmatprep.subr.mxu0 0.0
    %2446 = vmatpush2.msra.mxu0 0.0
    %2447 = vmatprep.subr.mxu0 0.0
    %2448 = vmatpush2.msra.mxu0 0.0
    %2449 = vmatprep.subr.mxu0 0.0
    %2450 = vmatpush2.msra.mxu0 0.0
    %2451 = vmatprep.subr.mxu0 0.0
    %2452 = vmatpush2.msra.mxu0 0.0
    %2453 = vmatprep.subr.mxu0 0.0
    %2454 = vmatpush2.msra.mxu0 0.0
    %2455 = vmatprep.subr.mxu0 0.0
    %2456 = vmatpush2.msra.mxu0 0.0
    %2457 = vmatprep.subr.mxu0 0.0
    %2458 = vmatpush2.msra.mxu0 0.0
    %2459 = vmatprep.subr.mxu0 0.0
    %2460 = vmatpush2.msra.mxu0 0.0
    %2461 = vmatprep.subr.mxu0 0.0
    %2462 = vmatpush2.msra.mxu0 0.0
    %2463 = vmatprep.subr.mxu0 0.0
    %2464 = vmatpush2.msra.mxu0 0.0
    %2465 = vmatprep.subr.mxu0 0.0
    %2466 = vmatpush2.msra.mxu0 0.0
    %2467 = vmatprep.mubr.f32.mxu0 0.0
    %2468 = vmatmul.mubr.f32.gmra.mxu0 %v2371
    %v2469 = vpop.f32.mrf.mxu0
    %v2470 = vadd.f32 0.0, %v2469
    %v2471 = vpop.f32.mrf.mxu0
    %2472 = vmatprep.mubr.f32.mxu0 0.0
    %2473 = vmatmul.mubr.f32.gmra.mxu0 %v2374
    %v2474 = vpop.f32.mrf.mxu0
    %v2475 = vadd.f32 0.0, %v2474
    %v2476 = vpop.f32.mrf.mxu0
    %2477 = vmatprep.mubr.f32.mxu0 0.0
    %2478 = vmatmul.mubr.f32.gmra.mxu0 %v2377
    %v2479 = vpop.f32.mrf.mxu0
    %v2480 = vadd.f32 0.0, %v2479
    %v2481 = vpop.f32.mrf.mxu0
    %2482 = vmatprep.mubr.f32.mxu0 0.0
    %2483 = vmatmul.mubr.f32.gmra.mxu0 %v2380
    %v2484 = vpop.f32.mrf.mxu0
    %v2485 = vadd.f32 0.0, %v2484
    %v2486 = vpop.f32.mrf.mxu0
    %2487 = vmatprep.mubr.f32.mxu0 0.0
    %2488 = vmatmul.mubr.f32.gmra.mxu0 %v2383
    %v2489 = vpop.f32.mrf.mxu0
    %v2490 = vadd.f32 0.0, %v2489
    %v2491 = vpop.f32.mrf.mxu0
    %2492 = vmatprep.mubr.f32.mxu0 0.0
    %2493 = vmatmul.mubr.f32.gmra.mxu0 %v2386
    %v2494 = vpop.f32.mrf.mxu0
    %v2495 = vadd.f32 0.0, %v2494
    %v2496 = vpop.f32.mrf.mxu0
    %2497 = vmatprep.mubr.f32.mxu0 0.0
    %2498 = vmatmul.mubr.f32.gmra.mxu0 %v2389
    %v2499 = vpop.f32.mrf.mxu0
    %v2500 = vadd.f32 0.0, %v2499
    %v2501 = vpop.f32.mrf.mxu0
    %2502 = vmatprep.mubr.f32.mxu0 0.0
    %2503 = vmatmul.mubr.f32.gmra.mxu0 %v2392
    %v2504 = vpop.f32.mrf.mxu0
    %v2505 = vadd.f32 0.0, %v2504
    %v2506 = vpop.f32.mrf.mxu0
    %2507 = vmatprep.mubr.f32.mxu0 0.0
    %2508 = vmatmul.mubr.f32.gmra.mxu0 %v2395
    %v2509 = vpop.f32.mrf.mxu0
    %v2510 = vadd.f32 0.0, %v2509
    %v2511 = vpop.f32.mrf.mxu0
    %2512 = vmatprep.mubr.f32.mxu0 0.0
    %2513 = vmatmul.mubr.f32.gmra.mxu0 %v2398
    %v2514 = vpop.f32.mrf.mxu0
    %v2515 = vadd.f32 0.0, %v2514
    %v2516 = vpop.f32.mrf.mxu0
    %2517 = vmatprep.mubr.f32.mxu0 0.0
    %2518 = vmatmul.mubr.f32.gmra.mxu0 %v2401
    %v2519 = vpop.f32.mrf.mxu0
    %v2520 = vadd.f32 0.0, %v2519
    %v2521 = vpop.f32.mrf.mxu0
    %2522 = vdwg.mxu0
    %v2523 = vadd.f32 %v2346, %v2470
    %v2524 = vadd.f32 %v2347, %v2475
    %v2525 = vadd.f32 %v2348, %v2480
    %v2526 = vadd.f32 %v2349, %v2485
    %v2527 = vadd.f32 %v2350, %v2490
    %v2528 = vadd.f32 %v2351, %v2495
    %v2529 = vadd.f32 %v2352, %v2500
    %v2530 = vadd.f32 %v2353, %v2505
    %v2531 = vadd.f32 %v2354, %v2510
    %v2532 = vadd.f32 %v2355, %v2515
    %v2533 = vadd.f32 %v2356, %v2520
    %v2534 = vld [vmem:[#allocation2 + $0x8] sm:$0xff]
    %v2535 = vld [vmem:[#allocation2 + $0x10] sm:$0xff]
    %v2536 = vld [vmem:[#allocation2 + $0x18] sm:$0xff]
    %v2537 = vld [vmem:[#allocation2 + $0x20] sm:$0xff]
    %v2538 = vld [vmem:[#allocation2 + $0x28] sm:$0xff]
    %v2539 = vld [vmem:[#allocation2 + $0x30] sm:$0xff]
    %v2540 = vld [vmem:[#allocation2 + $0x38] sm:$0xff]
    %v2541 = vld [vmem:[#allocation2 + $0x40] sm:$0xff]
    %v2542 = vld [vmem:[#allocation2 + $0x48] sm:$0xff]
    %v2543 = vld [vmem:[#allocation2 + $0x50] sm:$0xff]
    %v2544 = vld [vmem:[#allocation2 + $0x58] sm:$0xff]
    %v2545 = vld [vmem:[%s3 + $0x40] sm:$0xff]
    %v2546 = vld [vmem:[%s3 + $0x48] sm:$0xff]
    %v2548 = vsel %vm1833, %v2534, 0
    %v2551 = vsel %vm1833, %v2535, 0
    %v2554 = vsel %vm1833, %v2536, 0
    %v2557 = vsel %vm1833, %v2537, 0
    %v2560 = vsel %vm1833, %v2538, 0
    %v2563 = vsel %vm1833, %v2539, 0
    %v2566 = vsel %vm1833, %v2540, 0
    %v2569 = vsel %vm1833, %v2541, 0
    %v2572 = vsel %vm1833, %v2542, 0
    %v2575 = vsel %vm1833, %v2543, 0
    %v2578 = vsel %vm1833, %v2544, 0
    %2580 = vmatprep.subr.mxu0 0.0
    %2581 = vmatpush1.msra.mxu0 0.0
    %2582 = vmatprep.subr.mxu0 0.0
    %2583 = vmatpush1.msra.mxu0 0.0
    %2584 = vmatprep.subr.mxu0 0.0
    %2585 = vmatpush1.msra.mxu0 0.0
    %2586 = vmatprep.subr.mxu0 0.0
    %2587 = vmatpush1.msra.mxu0 0.0
    %2588 = vmatprep.subr.mxu0 0.0
    %2589 = vmatpush1.msra.mxu0 0.0
    %2590 = vmatprep.subr.mxu0 0.0
    %2591 = vmatpush1.msra.mxu0 0.0
    %2592 = vmatprep.subr.mxu0 0.0
    %2593 = vmatpush1.msra.mxu0 0.0
    %2594 = vmatprep.subr.mxu0 0.0
    %2595 = vmatpush1.msra.mxu0 0.0
    %2596 = vmatprep.subr.mxu0 0.0
    %2597 = vmatpush1.msra.mxu0 0.0
    %2598 = vmatprep.subr.mxu0 0.0
    %2599 = vmatpush1.msra.mxu0 0.0
    %2600 = vmatprep.subr.mxu0 0.0
    %2601 = vmatpush1.msra.mxu0 0.0
    %2602 = vmatprep.subr.mxu0 0.0
    %2603 = vmatpush1.msra.mxu0 0.0
    %2604 = vmatprep.subr.mxu0 0.0
    %2605 = vmatpush1.msra.mxu0 0.0
    %2606 = vmatprep.subr.mxu0 0.0
    %2607 = vmatpush1.msra.mxu0 0.0
    %2608 = vmatprep.subr.mxu0 0.0
    %2609 = vmatpush1.msra.mxu0 %v2546
    %2610 = vmatprep.subr.mxu0 0.0
    %2611 = vmatpush1.msra.mxu0 %v2545
    %2612 = vmatprep.subr.mxu0 0.0
    %2613 = vmatpush2.msra.mxu0 0.0
    %2614 = vmatprep.subr.mxu0 0.0
    %2615 = vmatpush2.msra.mxu0 0.0
    %2616 = vmatprep.subr.mxu0 0.0
    %2617 = vmatpush2.msra.mxu0 0.0
    %2618 = vmatprep.subr.mxu0 0.0
    %2619 = vmatpush2.msra.mxu0 0.0
    %2620 = vmatprep.subr.mxu0 0.0
    %2621 = vmatpush2.msra.mxu0 0.0
    %2622 = vmatprep.subr.mxu0 0.0
    %2623 = vmatpush2.msra.mxu0 0.0
    %2624 = vmatprep.subr.mxu0 0.0
    %2625 = vmatpush2.msra.mxu0 0.0
    %2626 = vmatprep.subr.mxu0 0.0
    %2627 = vmatpush2.msra.mxu0 0.0
    %2628 = vmatprep.subr.mxu0 0.0
    %2629 = vmatpush2.msra.mxu0 0.0
    %2630 = vmatprep.subr.mxu0 0.0
    %2631 = vmatpush2.msra.mxu0 0.0
    %2632 = vmatprep.subr.mxu0 0.0
    %2633 = vmatpush2.msra.mxu0 0.0
    %2634 = vmatprep.subr.mxu0 0.0
    %2635 = vmatpush2.msra.mxu0 0.0
    %2636 = vmatprep.subr.mxu0 0.0
    %2637 = vmatpush2.msra.mxu0 0.0
    %2638 = vmatprep.subr.mxu0 0.0
    %2639 = vmatpush2.msra.mxu0 0.0
    %2640 = vmatprep.subr.mxu0 0.0
    %2641 = vmatpush2.msra.mxu0 0.0
    %2642 = vmatprep.subr.mxu0 0.0
    %2643 = vmatpush2.msra.mxu0 0.0
    %2644 = vmatprep.mubr.f32.mxu0 0.0
    %2645 = vmatmul.mubr.f32.gmra.mxu0 %v2548
    %v2646 = vpop.f32.mrf.mxu0
    %v2647 = vadd.f32 0.0, %v2646
    %v2648 = vpop.f32.mrf.mxu0
    %2649 = vmatprep.mubr.f32.mxu0 0.0
    %2650 = vmatmul.mubr.f32.gmra.mxu0 %v2551
    %v2651 = vpop.f32.mrf.mxu0
    %v2652 = vadd.f32 0.0, %v2651
    %v2653 = vpop.f32.mrf.mxu0
    %2654 = vmatprep.mubr.f32.mxu0 0.0
    %2655 = vmatmul.mubr.f32.gmra.mxu0 %v2554
    %v2656 = vpop.f32.mrf.mxu0
    %v2657 = vadd.f32 0.0, %v2656
    %v2658 = vpop.f32.mrf.mxu0
    %2659 = vmatprep.mubr.f32.mxu0 0.0
    %2660 = vmatmul.mubr.f32.gmra.mxu0 %v2557
    %v2661 = vpop.f32.mrf.mxu0
    %v2662 = vadd.f32 0.0, %v2661
    %v2663 = vpop.f32.mrf.mxu0
    %2664 = vmatprep.mubr.f32.mxu0 0.0
    %2665 = vmatmul.mubr.f32.gmra.mxu0 %v2560
    %v2666 = vpop.f32.mrf.mxu0
    %v2667 = vadd.f32 0.0, %v2666
    %v2668 = vpop.f32.mrf.mxu0
    %2669 = vmatprep.mubr.f32.mxu0 0.0
    %2670 = vmatmul.mubr.f32.gmra.mxu0 %v2563
    %v2671 = vpop.f32.mrf.mxu0
    %v2672 = vadd.f32 0.0, %v2671
    %v2673 = vpop.f32.mrf.mxu0
    %2674 = vmatprep.mubr.f32.mxu0 0.0
    %2675 = vmatmul.mubr.f32.gmra.mxu0 %v2566
    %v2676 = vpop.f32.mrf.mxu0
    %v2677 = vadd.f32 0.0, %v2676
    %v2678 = vpop.f32.mrf.mxu0
    %2679 = vmatprep.mubr.f32.mxu0 0.0
    %2680 = vmatmul.mubr.f32.gmra.mxu0 %v2569
    %v2681 = vpop.f32.mrf.mxu0
    %v2682 = vadd.f32 0.0, %v2681
    %v2683 = vpop.f32.mrf.mxu0
    %2684 = vmatprep.mubr.f32.mxu0 0.0
    %2685 = vmatmul.mubr.f32.gmra.mxu0 %v2572
    %v2686 = vpop.f32.mrf.mxu0
    %v2687 = vadd.f32 0.0, %v2686
    %v2688 = vpop.f32.mrf.mxu0
    %2689 = vmatprep.mubr.f32.mxu0 0.0
    %2690 = vmatmul.mubr.f32.gmra.mxu0 %v2575
    %v2691 = vpop.f32.mrf.mxu0
    %v2692 = vadd.f32 0.0, %v2691
    %v2693 = vpop.f32.mrf.mxu0
    %2694 = vmatprep.mubr.f32.mxu0 0.0
    %2695 = vmatmul.mubr.f32.gmra.mxu0 %v2578
    %v2696 = vpop.f32.mrf.mxu0
    %v2697 = vadd.f32 0.0, %v2696
    %v2698 = vpop.f32.mrf.mxu0
    %2699 = vdwg.mxu0
    %v2700 = vadd.f32 %v2523, %v2647
    %v2701 = vadd.f32 %v2524, %v2652
    %v2702 = vadd.f32 %v2525, %v2657
    %v2703 = vadd.f32 %v2526, %v2662
    %v2704 = vadd.f32 %v2527, %v2667
    %v2705 = vadd.f32 %v2528, %v2672
    %v2706 = vadd.f32 %v2529, %v2677
    %v2707 = vadd.f32 %v2530, %v2682
    %v2708 = vadd.f32 %v2531, %v2687
    %v2709 = vadd.f32 %v2532, %v2692
    %v2710 = vadd.f32 %v2533, %v2697
    %v2711 = vld [vmem:[#allocation2 + $0x9] sm:$0xff]
    %v2712 = vld [vmem:[#allocation2 + $0x11] sm:$0xff]
    %v2713 = vld [vmem:[#allocation2 + $0x19] sm:$0xff]
    %v2714 = vld [vmem:[#allocation2 + $0x21] sm:$0xff]
    %v2715 = vld [vmem:[#allocation2 + $0x29] sm:$0xff]
    %v2716 = vld [vmem:[#allocation2 + $0x31] sm:$0xff]
    %v2717 = vld [vmem:[#allocation2 + $0x39] sm:$0xff]
    %v2718 = vld [vmem:[#allocation2 + $0x41] sm:$0xff]
    %v2719 = vld [vmem:[#allocation2 + $0x49] sm:$0xff]
    %v2720 = vld [vmem:[#allocation2 + $0x51] sm:$0xff]
    %v2721 = vld [vmem:[#allocation2 + $0x59] sm:$0xff]
    %v2722 = vld [vmem:[%s3 + $0x50] sm:$0xff]
    %v2723 = vld [vmem:[%s3 + $0x58] sm:$0xff]
    %v2725 = vsel %vm1833, %v2711, 0
    %v2728 = vsel %vm1833, %v2712, 0
    %v2731 = vsel %vm1833, %v2713, 0
    %v2734 = vsel %vm1833, %v2714, 0
    %v2737 = vsel %vm1833, %v2715, 0
    %v2740 = vsel %vm1833, %v2716, 0
    %v2743 = vsel %vm1833, %v2717, 0
    %v2746 = vsel %vm1833, %v2718, 0
    %v2749 = vsel %vm1833, %v2719, 0
    %v2752 = vsel %vm1833, %v2720, 0
    %v2755 = vsel %vm1833, %v2721, 0
    %2757 = vmatprep.subr.mxu0 0.0
    %2758 = vmatpush1.msra.mxu0 0.0
    %2759 = vmatprep.subr.mxu0 0.0
    %2760 = vmatpush1.msra.mxu0 0.0
    %2761 = vmatprep.subr.mxu0 0.0
    %2762 = vmatpush1.msra.mxu0 0.0
    %2763 = vmatprep.subr.mxu0 0.0
    %2764 = vmatpush1.msra.mxu0 0.0
    %2765 = vmatprep.subr.mxu0 0.0
    %2766 = vmatpush1.msra.mxu0 0.0
    %2767 = vmatprep.subr.mxu0 0.0
    %2768 = vmatpush1.msra.mxu0 0.0
    %2769 = vmatprep.subr.mxu0 0.0
    %2770 = vmatpush1.msra.mxu0 0.0
    %2771 = vmatprep.subr.mxu0 0.0
    %2772 = vmatpush1.msra.mxu0 0.0
    %2773 = vmatprep.subr.mxu0 0.0
    %2774 = vmatpush1.msra.mxu0 0.0
    %2775 = vmatprep.subr.mxu0 0.0
    %2776 = vmatpush1.msra.mxu0 0.0
    %2777 = vmatprep.subr.mxu0 0.0
    %2778 = vmatpush1.msra.mxu0 0.0
    %2779 = vmatprep.subr.mxu0 0.0
    %2780 = vmatpush1.msra.mxu0 0.0
    %2781 = vmatprep.subr.mxu0 0.0
    %2782 = vmatpush1.msra.mxu0 0.0
    %2783 = vmatprep.subr.mxu0 0.0
    %2784 = vmatpush1.msra.mxu0 0.0
    %2785 = vmatprep.subr.mxu0 0.0
    %2786 = vmatpush1.msra.mxu0 %v2723
    %2787 = vmatprep.subr.mxu0 0.0
    %2788 = vmatpush1.msra.mxu0 %v2722
    %2789 = vmatprep.subr.mxu0 0.0
    %2790 = vmatpush2.msra.mxu0 0.0
    %2791 = vmatprep.subr.mxu0 0.0
    %2792 = vmatpush2.msra.mxu0 0.0
    %2793 = vmatprep.subr.mxu0 0.0
    %2794 = vmatpush2.msra.mxu0 0.0
    %2795 = vmatprep.subr.mxu0 0.0
    %2796 = vmatpush2.msra.mxu0 0.0
    %2797 = vmatprep.subr.mxu0 0.0
    %2798 = vmatpush2.msra.mxu0 0.0
    %2799 = vmatprep.subr.mxu0 0.0
    %2800 = vmatpush2.msra.mxu0 0.0
    %2801 = vmatprep.subr.mxu0 0.0
    %2802 = vmatpush2.msra.mxu0 0.0
    %2803 = vmatprep.subr.mxu0 0.0
    %2804 = vmatpush2.msra.mxu0 0.0
    %2805 = vmatprep.subr.mxu0 0.0
    %2806 = vmatpush2.msra.mxu0 0.0
    %2807 = vmatprep.subr.mxu0 0.0
    %2808 = vmatpush2.msra.mxu0 0.0
    %2809 = vmatprep.subr.mxu0 0.0
    %2810 = vmatpush2.msra.mxu0 0.0
    %2811 = vmatprep.subr.mxu0 0.0
    %2812 = vmatpush2.msra.mxu0 0.0
    %2813 = vmatprep.subr.mxu0 0.0
    %2814 = vmatpush2.msra.mxu0 0.0
    %2815 = vmatprep.subr.mxu0 0.0
    %2816 = vmatpush2.msra.mxu0 0.0
    %2817 = vmatprep.subr.mxu0 0.0
    %2818 = vmatpush2.msra.mxu0 0.0
    %2819 = vmatprep.subr.mxu0 0.0
    %2820 = vmatpush2.msra.mxu0 0.0
    %2821 = vmatprep.mubr.f32.mxu0 0.0
    %2822 = vmatmul.mubr.f32.gmra.mxu0 %v2725
    %v2823 = vpop.f32.mrf.mxu0
    %v2824 = vadd.f32 0.0, %v2823
    %v2825 = vpop.f32.mrf.mxu0
    %2826 = vmatprep.mubr.f32.mxu0 0.0
    %2827 = vmatmul.mubr.f32.gmra.mxu0 %v2728
    %v2828 = vpop.f32.mrf.mxu0
    %v2829 = vadd.f32 0.0, %v2828
    %v2830 = vpop.f32.mrf.mxu0
    %2831 = vmatprep.mubr.f32.mxu0 0.0
    %2832 = vmatmul.mubr.f32.gmra.mxu0 %v2731
    %v2833 = vpop.f32.mrf.mxu0
    %v2834 = vadd.f32 0.0, %v2833
    %v2835 = vpop.f32.mrf.mxu0
    %2836 = vmatprep.mubr.f32.mxu0 0.0
    %2837 = vmatmul.mubr.f32.gmra.mxu0 %v2734
    %v2838 = vpop.f32.mrf.mxu0
    %v2839 = vadd.f32 0.0, %v2838
    %v2840 = vpop.f32.mrf.mxu0
    %2841 = vmatprep.mubr.f32.mxu0 0.0
    %2842 = vmatmul.mubr.f32.gmra.mxu0 %v2737
    %v2843 = vpop.f32.mrf.mxu0
    %v2844 = vadd.f32 0.0, %v2843
    %v2845 = vpop.f32.mrf.mxu0
    %2846 = vmatprep.mubr.f32.mxu0 0.0
    %2847 = vmatmul.mubr.f32.gmra.mxu0 %v2740
    %v2848 = vpop.f32.mrf.mxu0
    %v2849 = vadd.f32 0.0, %v2848
    %v2850 = vpop.f32.mrf.mxu0
    %2851 = vmatprep.mubr.f32.mxu0 0.0
    %2852 = vmatmul.mubr.f32.gmra.mxu0 %v2743
    %v2853 = vpop.f32.mrf.mxu0
    %v2854 = vadd.f32 0.0, %v2853
    %v2855 = vpop.f32.mrf.mxu0
    %2856 = vmatprep.mubr.f32.mxu0 0.0
    %2857 = vmatmul.mubr.f32.gmra.mxu0 %v2746
    %v2858 = vpop.f32.mrf.mxu0
    %v2859 = vadd.f32 0.0, %v2858
    %v2860 = vpop.f32.mrf.mxu0
    %2861 = vmatprep.mubr.f32.mxu0 0.0
    %2862 = vmatmul.mubr.f32.gmra.mxu0 %v2749
    %v2863 = vpop.f32.mrf.mxu0
    %v2864 = vadd.f32 0.0, %v2863
    %v2865 = vpop.f32.mrf.mxu0
    %2866 = vmatprep.mubr.f32.mxu0 0.0
    %2867 = vmatmul.mubr.f32.gmra.mxu0 %v2752
    %v2868 = vpop.f32.mrf.mxu0
    %v2869 = vadd.f32 0.0, %v2868
    %v2870 = vpop.f32.mrf.mxu0
    %2871 = vmatprep.mubr.f32.mxu0 0.0
    %2872 = vmatmul.mubr.f32.gmra.mxu0 %v2755
    %v2873 = vpop.f32.mrf.mxu0
    %v2874 = vadd.f32 0.0, %v2873
    %v2875 = vpop.f32.mrf.mxu0
    %2876 = vdwg.mxu0
    %v2877 = vadd.f32 %v2700, %v2824
    %v2878 = vadd.f32 %v2701, %v2829
    %v2879 = vadd.f32 %v2702, %v2834
    %v2880 = vadd.f32 %v2703, %v2839
    %v2881 = vadd.f32 %v2704, %v2844
    %v2882 = vadd.f32 %v2705, %v2849
    %v2883 = vadd.f32 %v2706, %v2854
    %v2884 = vadd.f32 %v2707, %v2859
    %v2885 = vadd.f32 %v2708, %v2864
    %v2886 = vadd.f32 %v2709, %v2869
    %v2887 = vadd.f32 %v2710, %v2874
    %v2888 = vld [vmem:[#allocation2 + $0xe] sm:$0xff]
    %v2889 = vld [vmem:[#allocation2 + $0x16] sm:$0xff]
    %v2890 = vld [vmem:[#allocation2 + $0x1e] sm:$0xff]
    %v2891 = vld [vmem:[#allocation2 + $0x26] sm:$0xff]
    %v2892 = vld [vmem:[#allocation2 + $0x2e] sm:$0xff]
    %v2893 = vld [vmem:[#allocation2 + $0x36] sm:$0xff]
    %v2894 = vld [vmem:[#allocation2 + $0x3e] sm:$0xff]
    %v2895 = vld [vmem:[#allocation2 + $0x46] sm:$0xff]
    %v2896 = vld [vmem:[#allocation2 + $0x4e] sm:$0xff]
    %v2897 = vld [vmem:[#allocation2 + $0x56] sm:$0xff]
    %v2898 = vld [vmem:[#allocation2 + $0x5e] sm:$0xff]
    %v2899 = vld [vmem:[%s3 + $0x60] sm:$0xff]
    %v2900 = vld [vmem:[%s3 + $0x68] sm:$0xff]
    %v2902 = vsel %vm1833, %v2888, 0
    %v2905 = vsel %vm1833, %v2889, 0
    %v2908 = vsel %vm1833, %v2890, 0
    %v2911 = vsel %vm1833, %v2891, 0
    %v2914 = vsel %vm1833, %v2892, 0
    %v2917 = vsel %vm1833, %v2893, 0
    %v2920 = vsel %vm1833, %v2894, 0
    %v2923 = vsel %vm1833, %v2895, 0
    %v2926 = vsel %vm1833, %v2896, 0
    %v2929 = vsel %vm1833, %v2897, 0
    %v2932 = vsel %vm1833, %v2898, 0
    %2934 = vmatprep.subr.mxu0 0.0
    %2935 = vmatpush1.msra.mxu0 0.0
    %2936 = vmatprep.subr.mxu0 0.0
    %2937 = vmatpush1.msra.mxu0 0.0
    %2938 = vmatprep.subr.mxu0 0.0
    %2939 = vmatpush1.msra.mxu0 0.0
    %2940 = vmatprep.subr.mxu0 0.0
    %2941 = vmatpush1.msra.mxu0 0.0
    %2942 = vmatprep.subr.mxu0 0.0
    %2943 = vmatpush1.msra.mxu0 0.0
    %2944 = vmatprep.subr.mxu0 0.0
    %2945 = vmatpush1.msra.mxu0 0.0
    %2946 = vmatprep.subr.mxu0 0.0
    %2947 = vmatpush1.msra.mxu0 0.0
    %2948 = vmatprep.subr.mxu0 0.0
    %2949 = vmatpush1.msra.mxu0 0.0
    %2950 = vmatprep.subr.mxu0 0.0
    %2951 = vmatpush1.msra.mxu0 0.0
    %2952 = vmatprep.subr.mxu0 0.0
    %2953 = vmatpush1.msra.mxu0 0.0
    %2954 = vmatprep.subr.mxu0 0.0
    %2955 = vmatpush1.msra.mxu0 0.0
    %2956 = vmatprep.subr.mxu0 0.0
    %2957 = vmatpush1.msra.mxu0 0.0
    %2958 = vmatprep.subr.mxu0 0.0
    %2959 = vmatpush1.msra.mxu0 0.0
    %2960 = vmatprep.subr.mxu0 0.0
    %2961 = vmatpush1.msra.mxu0 0.0
    %2962 = vmatprep.subr.mxu0 0.0
    %2963 = vmatpush1.msra.mxu0 %v2900
    %2964 = vmatprep.subr.mxu0 0.0
    %2965 = vmatpush1.msra.mxu0 %v2899
    %2966 = vmatprep.subr.mxu0 0.0
    %2967 = vmatpush2.msra.mxu0 0.0
    %2968 = vmatprep.subr.mxu0 0.0
    %2969 = vmatpush2.msra.mxu0 0.0
    %2970 = vmatprep.subr.mxu0 0.0
    %2971 = vmatpush2.msra.mxu0 0.0
    %2972 = vmatprep.subr.mxu0 0.0
    %2973 = vmatpush2.msra.mxu0 0.0
    %2974 = vmatprep.subr.mxu0 0.0
    %2975 = vmatpush2.msra.mxu0 0.0
    %2976 = vmatprep.subr.mxu0 0.0
    %2977 = vmatpush2.msra.mxu0 0.0
    %2978 = vmatprep.subr.mxu0 0.0
    %2979 = vmatpush2.msra.mxu0 0.0
    %2980 = vmatprep.subr.mxu0 0.0
    %2981 = vmatpush2.msra.mxu0 0.0
    %2982 = vmatprep.subr.mxu0 0.0
    %2983 = vmatpush2.msra.mxu0 0.0
    %2984 = vmatprep.subr.mxu0 0.0
    %2985 = vmatpush2.msra.mxu0 0.0
    %2986 = vmatprep.subr.mxu0 0.0
    %2987 = vmatpush2.msra.mxu0 0.0
    %2988 = vmatprep.subr.mxu0 0.0
    %2989 = vmatpush2.msra.mxu0 0.0
    %2990 = vmatprep.subr.mxu0 0.0
    %2991 = vmatpush2.msra.mxu0 0.0
    %2992 = vmatprep.subr.mxu0 0.0
    %2993 = vmatpush2.msra.mxu0 0.0
    %2994 = vmatprep.subr.mxu0 0.0
    %2995 = vmatpush2.msra.mxu0 0.0
    %2996 = vmatprep.subr.mxu0 0.0
    %2997 = vmatpush2.msra.mxu0 0.0
    %2998 = vmatprep.mubr.f32.mxu0 0.0
    %2999 = vmatmul.mubr.f32.gmra.mxu0 %v2902
    %v3000 = vpop.f32.mrf.mxu0
    %v3001 = vadd.f32 0.0, %v3000
    %v3002 = vpop.f32.mrf.mxu0
    %3003 = vmatprep.mubr.f32.mxu0 0.0
    %3004 = vmatmul.mubr.f32.gmra.mxu0 %v2905
    %v3005 = vpop.f32.mrf.mxu0
    %v3006 = vadd.f32 0.0, %v3005
    %v3007 = vpop.f32.mrf.mxu0
    %3008 = vmatprep.mubr.f32.mxu0 0.0
    %3009 = vmatmul.mubr.f32.gmra.mxu0 %v2908
    %v3010 = vpop.f32.mrf.mxu0
    %v3011 = vadd.f32 0.0, %v3010
    %v3012 = vpop.f32.mrf.mxu0
    %3013 = vmatprep.mubr.f32.mxu0 0.0
    %3014 = vmatmul.mubr.f32.gmra.mxu0 %v2911
    %v3015 = vpop.f32.mrf.mxu0
    %v3016 = vadd.f32 0.0, %v3015
    %v3017 = vpop.f32.mrf.mxu0
    %3018 = vmatprep.mubr.f32.mxu0 0.0
    %3019 = vmatmul.mubr.f32.gmra.mxu0 %v2914
    %v3020 = vpop.f32.mrf.mxu0
    %v3021 = vadd.f32 0.0, %v3020
    %v3022 = vpop.f32.mrf.mxu0
    %3023 = vmatprep.mubr.f32.mxu0 0.0
    %3024 = vmatmul.mubr.f32.gmra.mxu0 %v2917
    %v3025 = vpop.f32.mrf.mxu0
    %v3026 = vadd.f32 0.0, %v3025
    %v3027 = vpop.f32.mrf.mxu0
    %3028 = vmatprep.mubr.f32.mxu0 0.0
    %3029 = vmatmul.mubr.f32.gmra.mxu0 %v2920
    %v3030 = vpop.f32.mrf.mxu0
    %v3031 = vadd.f32 0.0, %v3030
    %v3032 = vpop.f32.mrf.mxu0
    %3033 = vmatprep.mubr.f32.mxu0 0.0
    %3034 = vmatmul.mubr.f32.gmra.mxu0 %v2923
    %v3035 = vpop.f32.mrf.mxu0
    %v3036 = vadd.f32 0.0, %v3035
    %v3037 = vpop.f32.mrf.mxu0
    %3038 = vmatprep.mubr.f32.mxu0 0.0
    %3039 = vmatmul.mubr.f32.gmra.mxu0 %v2926
    %v3040 = vpop.f32.mrf.mxu0
    %v3041 = vadd.f32 0.0, %v3040
    %v3042 = vpop.f32.mrf.mxu0
    %3043 = vmatprep.mubr.f32.mxu0 0.0
    %3044 = vmatmul.mubr.f32.gmra.mxu0 %v2929
    %v3045 = vpop.f32.mrf.mxu0
    %v3046 = vadd.f32 0.0, %v3045
    %v3047 = vpop.f32.mrf.mxu0
    %3048 = vmatprep.mubr.f32.mxu0 0.0
    %3049 = vmatmul.mubr.f32.gmra.mxu0 %v2932
    %v3050 = vpop.f32.mrf.mxu0
    %v3051 = vadd.f32 0.0, %v3050
    %v3052 = vpop.f32.mrf.mxu0
    %3053 = vdwg.mxu0
    %v3054 = vadd.f32 %v2877, %v3001
    %v3055 = vadd.f32 %v2878, %v3006
    %v3056 = vadd.f32 %v2879, %v3011
    %v3057 = vadd.f32 %v2880, %v3016
    %v3058 = vadd.f32 %v2881, %v3021
    %v3059 = vadd.f32 %v2882, %v3026
    %v3060 = vadd.f32 %v2883, %v3031
    %v3061 = vadd.f32 %v2884, %v3036
    %v3062 = vadd.f32 %v2885, %v3041
    %v3063 = vadd.f32 %v2886, %v3046
    %v3064 = vadd.f32 %v2887, %v3051
    %v3065 = vld [vmem:[#allocation2 + $0xf] sm:$0xff]
    %v3066 = vld [vmem:[#allocation2 + $0x17] sm:$0xff]
    %v3067 = vld [vmem:[#allocation2 + $0x1f] sm:$0xff]
    %v3068 = vld [vmem:[#allocation2 + $0x27] sm:$0xff]
    %v3069 = vld [vmem:[#allocation2 + $0x2f] sm:$0xff]
    %v3070 = vld [vmem:[#allocation2 + $0x37] sm:$0xff]
    %v3071 = vld [vmem:[#allocation2 + $0x3f] sm:$0xff]
    %v3072 = vld [vmem:[#allocation2 + $0x47] sm:$0xff]
    %v3073 = vld [vmem:[#allocation2 + $0x4f] sm:$0xff]
    %v3074 = vld [vmem:[#allocation2 + $0x57] sm:$0xff]
    %v3075 = vld [vmem:[#allocation2 + $0x5f] sm:$0xff]
    %v3076 = vld [vmem:[%s3 + $0x70] sm:$0xff]
    %v3077 = vld [vmem:[%s3 + $0x78] sm:$0xff]
    %v3079 = vsel %vm1833, %v3065, 0
    %v3082 = vsel %vm1833, %v3066, 0
    %v3085 = vsel %vm1833, %v3067, 0
    %v3088 = vsel %vm1833, %v3068, 0
    %v3091 = vsel %vm1833, %v3069, 0
    %v3094 = vsel %vm1833, %v3070, 0
    %v3097 = vsel %vm1833, %v3071, 0
    %v3100 = vsel %vm1833, %v3072, 0
    %v3103 = vsel %vm1833, %v3073, 0
    %v3106 = vsel %vm1833, %v3074, 0
    %v3109 = vsel %vm1833, %v3075, 0
    %3111 = vmatprep.subr.mxu0 0.0
    %3112 = vmatpush1.msra.mxu0 0.0
    %3113 = vmatprep.subr.mxu0 0.0
    %3114 = vmatpush1.msra.mxu0 0.0
    %3115 = vmatprep.subr.mxu0 0.0
    %3116 = vmatpush1.msra.mxu0 0.0
    %3117 = vmatprep.subr.mxu0 0.0
    %3118 = vmatpush1.msra.mxu0 0.0
    %3119 = vmatprep.subr.mxu0 0.0
    %3120 = vmatpush1.msra.mxu0 0.0
    %3121 = vmatprep.subr.mxu0 0.0
    %3122 = vmatpush1.msra.mxu0 0.0
    %3123 = vmatprep.subr.mxu0 0.0
    %3124 = vmatpush1.msra.mxu0 0.0
    %3125 = vmatprep.subr.mxu0 0.0
    %3126 = vmatpush1.msra.mxu0 0.0
    %3127 = vmatprep.subr.mxu0 0.0
    %3128 = vmatpush1.msra.mxu0 0.0
    %3129 = vmatprep.subr.mxu0 0.0
    %3130 = vmatpush1.msra.mxu0 0.0
    %3131 = vmatprep.subr.mxu0 0.0
    %3132 = vmatpush1.msra.mxu0 0.0
    %3133 = vmatprep.subr.mxu0 0.0
    %3134 = vmatpush1.msra.mxu0 0.0
    %3135 = vmatprep.subr.mxu0 0.0
    %3136 = vmatpush1.msra.mxu0 0.0
    %3137 = vmatprep.subr.mxu0 0.0
    %3138 = vmatpush1.msra.mxu0 0.0
    %3139 = vmatprep.subr.mxu0 0.0
    %3140 = vmatpush1.msra.mxu0 %v3077
    %3141 = vmatprep.subr.mxu0 0.0
    %3142 = vmatpush1.msra.mxu0 %v3076
    %3143 = vmatprep.subr.mxu0 0.0
    %3144 = vmatpush2.msra.mxu0 0.0
    %3145 = vmatprep.subr.mxu0 0.0
    %3146 = vmatpush2.msra.mxu0 0.0
    %3147 = vmatprep.subr.mxu0 0.0
    %3148 = vmatpush2.msra.mxu0 0.0
    %3149 = vmatprep.subr.mxu0 0.0
    %3150 = vmatpush2.msra.mxu0 0.0
    %3151 = vmatprep.subr.mxu0 0.0
    %3152 = vmatpush2.msra.mxu0 0.0
    %3153 = vmatprep.subr.mxu0 0.0
    %3154 = vmatpush2.msra.mxu0 0.0
    %3155 = vmatprep.subr.mxu0 0.0
    %3156 = vmatpush2.msra.mxu0 0.0
    %3157 = vmatprep.subr.mxu0 0.0
    %3158 = vmatpush2.msra.mxu0 0.0
    %3159 = vmatprep.subr.mxu0 0.0
    %3160 = vmatpush2.msra.mxu0 0.0
    %3161 = vmatprep.subr.mxu0 0.0
    %3162 = vmatpush2.msra.mxu0 0.0
    %3163 = vmatprep.subr.mxu0 0.0
    %3164 = vmatpush2.msra.mxu0 0.0
    %3165 = vmatprep.subr.mxu0 0.0
    %3166 = vmatpush2.msra.mxu0 0.0
    %3167 = vmatprep.subr.mxu0 0.0
    %3168 = vmatpush2.msra.mxu0 0.0
    %3169 = vmatprep.subr.mxu0 0.0
    %3170 = vmatpush2.msra.mxu0 0.0
    %3171 = vmatprep.subr.mxu0 0.0
    %3172 = vmatpush2.msra.mxu0 0.0
    %3173 = vmatprep.subr.mxu0 0.0
    %3174 = vmatpush2.msra.mxu0 0.0
    %3175 = vmatprep.mubr.f32.mxu0 0.0
    %3176 = vmatmul.mubr.f32.gmra.mxu0 %v3079
    %v3177 = vpop.f32.mrf.mxu0
    %v3178 = vadd.f32 0.0, %v3177
    %v3179 = vpop.f32.mrf.mxu0
    %3180 = vmatprep.mubr.f32.mxu0 0.0
    %3181 = vmatmul.mubr.f32.gmra.mxu0 %v3082
    %v3182 = vpop.f32.mrf.mxu0
    %v3183 = vadd.f32 0.0, %v3182
    %v3184 = vpop.f32.mrf.mxu0
    %3185 = vmatprep.mubr.f32.mxu0 0.0
    %3186 = vmatmul.mubr.f32.gmra.mxu0 %v3085
    %v3187 = vpop.f32.mrf.mxu0
    %v3188 = vadd.f32 0.0, %v3187
    %v3189 = vpop.f32.mrf.mxu0
    %3190 = vmatprep.mubr.f32.mxu0 0.0
    %3191 = vmatmul.mubr.f32.gmra.mxu0 %v3088
    %v3192 = vpop.f32.mrf.mxu0
    %v3193 = vadd.f32 0.0, %v3192
    %v3194 = vpop.f32.mrf.mxu0
    %3195 = vmatprep.mubr.f32.mxu0 0.0
    %3196 = vmatmul.mubr.f32.gmra.mxu0 %v3091
    %v3197 = vpop.f32.mrf.mxu0
    %v3198 = vadd.f32 0.0, %v3197
    %v3199 = vpop.f32.mrf.mxu0
    %3200 = vmatprep.mubr.f32.mxu0 0.0
    %3201 = vmatmul.mubr.f32.gmra.mxu0 %v3094
    %v3202 = vpop.f32.mrf.mxu0
    %v3203 = vadd.f32 0.0, %v3202
    %v3204 = vpop.f32.mrf.mxu0
    %3205 = vmatprep.mubr.f32.mxu0 0.0
    %3206 = vmatmul.mubr.f32.gmra.mxu0 %v3097
    %v3207 = vpop.f32.mrf.mxu0
    %v3208 = vadd.f32 0.0, %v3207
    %v3209 = vpop.f32.mrf.mxu0
    %3210 = vmatprep.mubr.f32.mxu0 0.0
    %3211 = vmatmul.mubr.f32.gmra.mxu0 %v3100
    %v3212 = vpop.f32.mrf.mxu0
    %v3213 = vadd.f32 0.0, %v3212
    %v3214 = vpop.f32.mrf.mxu0
    %3215 = vmatprep.mubr.f32.mxu0 0.0
    %3216 = vmatmul.mubr.f32.gmra.mxu0 %v3103
    %v3217 = vpop.f32.mrf.mxu0
    %v3218 = vadd.f32 0.0, %v3217
    %v3219 = vpop.f32.mrf.mxu0
    %3220 = vmatprep.mubr.f32.mxu0 0.0
    %3221 = vmatmul.mubr.f32.gmra.mxu0 %v3106
    %v3222 = vpop.f32.mrf.mxu0
    %v3223 = vadd.f32 0.0, %v3222
    %v3224 = vpop.f32.mrf.mxu0
    %3225 = vmatprep.mubr.f32.mxu0 0.0
    %3226 = vmatmul.mubr.f32.gmra.mxu0 %v3109
    %v3227 = vpop.f32.mrf.mxu0
    %v3228 = vadd.f32 0.0, %v3227
    %v3229 = vpop.f32.mrf.mxu0
    %3230 = vdwg.mxu0
    %v3231 = vadd.f32 %v3054, %v3178
    %v3232 = vadd.f32 %v3055, %v3183
    %v3233 = vadd.f32 %v3056, %v3188
    %v3234 = vadd.f32 %v3057, %v3193
    %v3235 = vadd.f32 %v3058, %v3198
    %v3236 = vadd.f32 %v3059, %v3203
    %v3237 = vadd.f32 %v3060, %v3208
    %v3238 = vadd.f32 %v3061, %v3213
    %v3239 = vadd.f32 %v3062, %v3218
    %v3240 = vadd.f32 %v3063, %v3223
    %v3241 = vadd.f32 %v3064, %v3228
    %v3242 = vld [vmem:[#allocation2 + $0x10] sm:$0xff]
    %v3243 = vld [vmem:[#allocation2 + $0x18] sm:$0xff]
    %v3244 = vld [vmem:[#allocation2 + $0x20] sm:$0xff]
    %v3245 = vld [vmem:[#allocation2 + $0x28] sm:$0xff]
    %v3246 = vld [vmem:[#allocation2 + $0x30] sm:$0xff]
    %v3247 = vld [vmem:[#allocation2 + $0x38] sm:$0xff]
    %v3248 = vld [vmem:[#allocation2 + $0x40] sm:$0xff]
    %v3249 = vld [vmem:[#allocation2 + $0x48] sm:$0xff]
    %v3250 = vld [vmem:[#allocation2 + $0x50] sm:$0xff]
    %v3251 = vld [vmem:[#allocation2 + $0x58] sm:$0xff]
    %v3252 = vld [vmem:[#allocation2 + $0x60] sm:$0xff]
    %v3253 = vld [vmem:[%s3 + $0x80] sm:$0xff]
    %v3254 = vld [vmem:[%s3 + $0x88] sm:$0xff]
    %v3256 = vsel %vm1833, %v3242, 0
    %v3259 = vsel %vm1833, %v3243, 0
    %v3262 = vsel %vm1833, %v3244, 0
    %v3265 = vsel %vm1833, %v3245, 0
    %v3268 = vsel %vm1833, %v3246, 0
    %v3271 = vsel %vm1833, %v3247, 0
    %v3274 = vsel %vm1833, %v3248, 0
    %v3277 = vsel %vm1833, %v3249, 0
    %v3280 = vsel %vm1833, %v3250, 0
    %v3283 = vsel %vm1833, %v3251, 0
    %v3286 = vsel %vm1833, %v3252, 0
    %3288 = vmatprep.subr.mxu0 0.0
    %3289 = vmatpush1.msra.mxu0 0.0
    %3290 = vmatprep.subr.mxu0 0.0
    %3291 = vmatpush1.msra.mxu0 0.0
    %3292 = vmatprep.subr.mxu0 0.0
    %3293 = vmatpush1.msra.mxu0 0.0
    %3294 = vmatprep.subr.mxu0 0.0
    %3295 = vmatpush1.msra.mxu0 0.0
    %3296 = vmatprep.subr.mxu0 0.0
    %3297 = vmatpush1.msra.mxu0 0.0
    %3298 = vmatprep.subr.mxu0 0.0
    %3299 = vmatpush1.msra.mxu0 0.0
    %3300 = vmatprep.subr.mxu0 0.0
    %3301 = vmatpush1.msra.mxu0 0.0
    %3302 = vmatprep.subr.mxu0 0.0
    %3303 = vmatpush1.msra.mxu0 0.0
    %3304 = vmatprep.subr.mxu0 0.0
    %3305 = vmatpush1.msra.mxu0 0.0
    %3306 = vmatprep.subr.mxu0 0.0
    %3307 = vmatpush1.msra.mxu0 0.0
    %3308 = vmatprep.subr.mxu0 0.0
    %3309 = vmatpush1.msra.mxu0 0.0
    %3310 = vmatprep.subr.mxu0 0.0
    %3311 = vmatpush1.msra.mxu0 0.0
    %3312 = vmatprep.subr.mxu0 0.0
    %3313 = vmatpush1.msra.mxu0 0.0
    %3314 = vmatprep.subr.mxu0 0.0
    %3315 = vmatpush1.msra.mxu0 0.0
    %3316 = vmatprep.subr.mxu0 0.0
    %3317 = vmatpush1.msra.mxu0 %v3254
    %3318 = vmatprep.subr.mxu0 0.0
    %3319 = vmatpush1.msra.mxu0 %v3253
    %3320 = vmatprep.subr.mxu0 0.0
    %3321 = vmatpush2.msra.mxu0 0.0
    %3322 = vmatprep.subr.mxu0 0.0
    %3323 = vmatpush2.msra.mxu0 0.0
    %3324 = vmatprep.subr.mxu0 0.0
    %3325 = vmatpush2.msra.mxu0 0.0
    %3326 = vmatprep.subr.mxu0 0.0
    %3327 = vmatpush2.msra.mxu0 0.0
    %3328 = vmatprep.subr.mxu0 0.0
    %3329 = vmatpush2.msra.mxu0 0.0
    %3330 = vmatprep.subr.mxu0 0.0
    %3331 = vmatpush2.msra.mxu0 0.0
    %3332 = vmatprep.subr.mxu0 0.0
    %3333 = vmatpush2.msra.mxu0 0.0
    %3334 = vmatprep.subr.mxu0 0.0
    %3335 = vmatpush2.msra.mxu0 0.0
    %3336 = vmatprep.subr.mxu0 0.0
    %3337 = vmatpush2.msra.mxu0 0.0
    %3338 = vmatprep.subr.mxu0 0.0
    %3339 = vmatpush2.msra.mxu0 0.0
    %3340 = vmatprep.subr.mxu0 0.0
    %3341 = vmatpush2.msra.mxu0 0.0
    %3342 = vmatprep.subr.mxu0 0.0
    %3343 = vmatpush2.msra.mxu0 0.0
    %3344 = vmatprep.subr.mxu0 0.0
    %3345 = vmatpush2.msra.mxu0 0.0
    %3346 = vmatprep.subr.mxu0 0.0
    %3347 = vmatpush2.msra.mxu0 0.0
    %3348 = vmatprep.subr.mxu0 0.0
    %3349 = vmatpush2.msra.mxu0 0.0
    %3350 = vmatprep.subr.mxu0 0.0
    %3351 = vmatpush2.msra.mxu0 0.0
    %3352 = vmatprep.mubr.f32.mxu0 0.0
    %3353 = vmatmul.mubr.f32.gmra.mxu0 %v3256
    %v3354 = vpop.f32.mrf.mxu0
    %v3355 = vadd.f32 0.0, %v3354
    %v3356 = vpop.f32.mrf.mxu0
    %3357 = vmatprep.mubr.f32.mxu0 0.0
    %3358 = vmatmul.mubr.f32.gmra.mxu0 %v3259
    %v3359 = vpop.f32.mrf.mxu0
    %v3360 = vadd.f32 0.0, %v3359
    %v3361 = vpop.f32.mrf.mxu0
    %3362 = vmatprep.mubr.f32.mxu0 0.0
    %3363 = vmatmul.mubr.f32.gmra.mxu0 %v3262
    %v3364 = vpop.f32.mrf.mxu0
    %v3365 = vadd.f32 0.0, %v3364
    %v3366 = vpop.f32.mrf.mxu0
    %3367 = vmatprep.mubr.f32.mxu0 0.0
    %3368 = vmatmul.mubr.f32.gmra.mxu0 %v3265
    %v3369 = vpop.f32.mrf.mxu0
    %v3370 = vadd.f32 0.0, %v3369
    %v3371 = vpop.f32.mrf.mxu0
    %3372 = vmatprep.mubr.f32.mxu0 0.0
    %3373 = vmatmul.mubr.f32.gmra.mxu0 %v3268
    %v3374 = vpop.f32.mrf.mxu0
    %v3375 = vadd.f32 0.0, %v3374
    %v3376 = vpop.f32.mrf.mxu0
    %3377 = vmatprep.mubr.f32.mxu0 0.0
    %3378 = vmatmul.mubr.f32.gmra.mxu0 %v3271
    %v3379 = vpop.f32.mrf.mxu0
    %v3380 = vadd.f32 0.0, %v3379
    %v3381 = vpop.f32.mrf.mxu0
    %3382 = vmatprep.mubr.f32.mxu0 0.0
    %3383 = vmatmul.mubr.f32.gmra.mxu0 %v3274
    %v3384 = vpop.f32.mrf.mxu0
    %v3385 = vadd.f32 0.0, %v3384
    %v3386 = vpop.f32.mrf.mxu0
    %3387 = vmatprep.mubr.f32.mxu0 0.0
    %3388 = vmatmul.mubr.f32.gmra.mxu0 %v3277
    %v3389 = vpop.f32.mrf.mxu0
    %v3390 = vadd.f32 0.0, %v3389
    %v3391 = vpop.f32.mrf.mxu0
    %3392 = vmatprep.mubr.f32.mxu0 0.0
    %3393 = vmatmul.mubr.f32.gmra.mxu0 %v3280
    %v3394 = vpop.f32.mrf.mxu0
    %v3395 = vadd.f32 0.0, %v3394
    %v3396 = vpop.f32.mrf.mxu0
    %3397 = vmatprep.mubr.f32.mxu0 0.0
    %3398 = vmatmul.mubr.f32.gmra.mxu0 %v3283
    %v3399 = vpop.f32.mrf.mxu0
    %v3400 = vadd.f32 0.0, %v3399
    %v3401 = vpop.f32.mrf.mxu0
    %3402 = vmatprep.mubr.f32.mxu0 0.0
    %3403 = vmatmul.mubr.f32.gmra.mxu0 %v3286
    %v3404 = vpop.f32.mrf.mxu0
    %v3405 = vadd.f32 0.0, %v3404
    %v3406 = vpop.f32.mrf.mxu0
    %3407 = vdwg.mxu0
    %v3408 = vadd.f32 %v3231, %v3355
    %v3409 = vadd.f32 %v3232, %v3360
    %v3410 = vadd.f32 %v3233, %v3365
    %v3411 = vadd.f32 %v3234, %v3370
    %v3412 = vadd.f32 %v3235, %v3375
    %v3413 = vadd.f32 %v3236, %v3380
    %v3414 = vadd.f32 %v3237, %v3385
    %v3415 = vadd.f32 %v3238, %v3390
    %v3416 = vadd.f32 %v3239, %v3395
    %v3417 = vadd.f32 %v3240, %v3400
    %v3418 = vadd.f32 %v3241, %v3405
    %v3420 = vlaneseq
    %v3421 = vshrl.u32 %v3420, 7
    %v3422 = vsub.s32 0, %v3421
    %v3423 = vrot.slane %v1847, %v3422
    %v3425 = vadd.f32 %v3408, %v3423
    %v3426 = vadd.f32 %v3409, %v3423
    %v3427 = vadd.f32 %v3410, %v3423
    %v3428 = vadd.f32 %v3411, %v3423
    %v3429 = vadd.f32 %v3412, %v3423
    %v3430 = vadd.f32 %v3413, %v3423
    %v3431 = vadd.f32 %v3414, %v3423
    %v3432 = vadd.f32 %v3415, %v3423
    %v3433 = vadd.f32 %v3416, %v3423
    %v3434 = vadd.f32 %v3417, %v3423
    %v3435 = vadd.f32 %v3418, %v3423
    %v3436 = vmax.f32 %v3425, 0.0
    %v3437 = vmax.f32 %v3426, 0.0
    %v3438 = vmax.f32 %v3427, 0.0
    %v3439 = vmax.f32 %v3428, 0.0
    %v3440 = vmax.f32 %v3429, 0.0
    %v3441 = vmax.f32 %v3430, 0.0
    %v3442 = vmax.f32 %v3431, 0.0
    %v3443 = vmax.f32 %v3432, 0.0
    %v3444 = vmax.f32 %v3433, 0.0
    %v3445 = vmax.f32 %v3434, 0.0
    %v3446 = vmax.f32 %v3435, 0.0
    %vm3447 = vcmask 261120
    %3448 = vst.msk [vmem:[#allocation3] sm:$0xff] %vm3447, %v3436
    %3449 = vst.msk [vmem:[#allocation3 + $0x8] sm:$0xff] %vm3447, %v3437
    %3450 = vst.msk [vmem:[#allocation3 + $0x10] sm:$0xff] %vm3447, %v3438
    %3451 = vst.msk [vmem:[#allocation3 + $0x18] sm:$0xff] %vm3447, %v3439
    %3452 = vst.msk [vmem:[#allocation3 + $0x20] sm:$0xff] %vm3447, %v3440
    %3453 = vst.msk [vmem:[#allocation3 + $0x28] sm:$0xff] %vm3447, %v3441
    %3454 = vst.msk [vmem:[#allocation3 + $0x30] sm:$0xff] %vm3447, %v3442
    %3455 = vst.msk [vmem:[#allocation3 + $0x38] sm:$0xff] %vm3447, %v3443
    %3456 = vst.msk [vmem:[#allocation3 + $0x40] sm:$0xff] %vm3447, %v3444
    %3457 = vst.msk [vmem:[#allocation3 + $0x48] sm:$0xff] %vm3447, %v3445
    %3458 = vst.msk [vmem:[#allocation3 + $0x50] sm:$0xff] %vm3447, %v3446
    %v3459 = vld [vmem:[%s6] sm:$0x1]
    %v3460 = vld [vmem:[#allocation3] sm:$0x1]
    %v3461 = vld [vmem:[%s5] sm:$0xff]
    %v3462 = vld [vmem:[%s5 + $0x8] sm:$0xff]
    %v3463 = vld [vmem:[%s5 + $0x10] sm:$0xff]
    %v3464 = vld [vmem:[%s5 + $0x18] sm:$0xff]
    %v3466 = vsel %vm3447, %v3460, 0
    %3468 = vmatprep.subr.mxu0 0.0
    %3469 = vmatpush1.msra.mxu0 0.0
    %3470 = vmatprep.subr.mxu0 0.0
    %3471 = vmatpush1.msra.mxu0 0.0
    %3472 = vmatprep.subr.mxu0 0.0
    %3473 = vmatpush1.msra.mxu0 0.0
    %3474 = vmatprep.subr.mxu0 0.0
    %3475 = vmatpush1.msra.mxu0 0.0
    %3476 = vmatprep.subr.mxu0 0.0
    %3477 = vmatpush1.msra.mxu0 0.0
    %3478 = vmatprep.subr.mxu0 0.0
    %3479 = vmatpush1.msra.mxu0 0.0
    %3480 = vmatprep.subr.mxu0 0.0
    %3481 = vmatpush1.msra.mxu0 0.0
    %3482 = vmatprep.subr.mxu0 0.0
    %3483 = vmatpush1.msra.mxu0 0.0
    %3484 = vmatprep.subr.mxu0 0.0
    %3485 = vmatpush1.msra.mxu0 0.0
    %3486 = vmatprep.subr.mxu0 0.0
    %3487 = vmatpush1.msra.mxu0 0.0
    %3488 = vmatprep.subr.mxu0 0.0
    %3489 = vmatpush1.msra.mxu0 0.0
    %3490 = vmatprep.subr.mxu0 0.0
    %3491 = vmatpush1.msra.mxu0 0.0
    %3492 = vmatprep.subr.mxu0 0.0
    %3493 = vmatpush1.msra.mxu0 %v3464
    %3494 = vmatprep.subr.mxu0 0.0
    %3495 = vmatpush1.msra.mxu0 %v3463
    %3496 = vmatprep.subr.mxu0 0.0
    %3497 = vmatpush1.msra.mxu0 %v3462
    %3498 = vmatprep.subr.mxu0 0.0
    %3499 = vmatpush1.msra.mxu0 %v3461
    %3500 = vmatprep.subr.mxu0 0.0
    %3501 = vmatpush2.msra.mxu0 0.0
    %3502 = vmatprep.subr.mxu0 0.0
    %3503 = vmatpush2.msra.mxu0 0.0
    %3504 = vmatprep.subr.mxu0 0.0
    %3505 = vmatpush2.msra.mxu0 0.0
    %3506 = vmatprep.subr.mxu0 0.0
    %3507 = vmatpush2.msra.mxu0 0.0
    %3508 = vmatprep.subr.mxu0 0.0
    %3509 = vmatpush2.msra.mxu0 0.0
    %3510 = vmatprep.subr.mxu0 0.0
    %3511 = vmatpush2.msra.mxu0 0.0
    %3512 = vmatprep.subr.mxu0 0.0
    %3513 = vmatpush2.msra.mxu0 0.0
    %3514 = vmatprep.subr.mxu0 0.0
    %3515 = vmatpush2.msra.mxu0 0.0
    %3516 = vmatprep.subr.mxu0 0.0
    %3517 = vmatpush2.msra.mxu0 0.0
    %3518 = vmatprep.subr.mxu0 0.0
    %3519 = vmatpush2.msra.mxu0 0.0
    %3520 = vmatprep.subr.mxu0 0.0
    %3521 = vmatpush2.msra.mxu0 0.0
    %3522 = vmatprep.subr.mxu0 0.0
    %3523 = vmatpush2.msra.mxu0 0.0
    %3524 = vmatprep.subr.mxu0 0.0
    %3525 = vmatpush2.msra.mxu0 0.0
    %3526 = vmatprep.subr.mxu0 0.0
    %3527 = vmatpush2.msra.mxu0 0.0
    %3528 = vmatprep.subr.mxu0 0.0
    %3529 = vmatpush2.msra.mxu0 0.0
    %3530 = vmatprep.subr.mxu0 0.0
    %3531 = vmatpush2.msra.mxu0 0.0
    %3532 = vmatprep.mubr.f32.mxu0 0.0
    %3533 = vmatmul.mubr.f32.gmra.mxu0 %v3466
    %v3534 = vpop.f32.mrf.mxu0
    %v3535 = vadd.f32 0.0, %v3534
    %v3536 = vpop.f32.mrf.mxu0
    %3537 = vdwg.mxu0
    %v3538 = vadd.f32 %v3459, %v3535
    %v3539 = vld [vmem:[#allocation3 + $0x1] sm:$0x1]
    %v3540 = vld [vmem:[%s5 + $0x20] sm:$0xff]
    %v3541 = vld [vmem:[%s5 + $0x28] sm:$0xff]
    %v3542 = vld [vmem:[%s5 + $0x30] sm:$0xff]
    %v3543 = vld [vmem:[%s5 + $0x38] sm:$0xff]
    %v3545 = vsel %vm3447, %v3539, 0
    %3547 = vmatprep.subr.mxu0 0.0
    %3548 = vmatpush1.msra.mxu0 0.0
    %3549 = vmatprep.subr.mxu0 0.0
    %3550 = vmatpush1.msra.mxu0 0.0
    %3551 = vmatprep.subr.mxu0 0.0
    %3552 = vmatpush1.msra.mxu0 0.0
    %3553 = vmatprep.subr.mxu0 0.0
    %3554 = vmatpush1.msra.mxu0 0.0
    %3555 = vmatprep.subr.mxu0 0.0
    %3556 = vmatpush1.msra.mxu0 0.0
    %3557 = vmatprep.subr.mxu0 0.0
    %3558 = vmatpush1.msra.mxu0 0.0
    %3559 = vmatprep.subr.mxu0 0.0
    %3560 = vmatpush1.msra.mxu0 0.0
    %3561 = vmatprep.subr.mxu0 0.0
    %3562 = vmatpush1.msra.mxu0 0.0
    %3563 = vmatprep.subr.mxu0 0.0
    %3564 = vmatpush1.msra.mxu0 0.0
    %3565 = vmatprep.subr.mxu0 0.0
    %3566 = vmatpush1.msra.mxu0 0.0
    %3567 = vmatprep.subr.mxu0 0.0
    %3568 = vmatpush1.msra.mxu0 0.0
    %3569 = vmatprep.subr.mxu0 0.0
    %3570 = vmatpush1.msra.mxu0 0.0
    %3571 = vmatprep.subr.mxu0 0.0
    %3572 = vmatpush1.msra.mxu0 %v3543
    %3573 = vmatprep.subr.mxu0 0.0
    %3574 = vmatpush1.msra.mxu0 %v3542
    %3575 = vmatprep.subr.mxu0 0.0
    %3576 = vmatpush1.msra.mxu0 %v3541
    %3577 = vmatprep.subr.mxu0 0.0
    %3578 = vmatpush1.msra.mxu0 %v3540
    %3579 = vmatprep.subr.mxu0 0.0
    %3580 = vmatpush2.msra.mxu0 0.0
    %3581 = vmatprep.subr.mxu0 0.0
    %3582 = vmatpush2.msra.mxu0 0.0
    %3583 = vmatprep.subr.mxu0 0.0
    %3584 = vmatpush2.msra.mxu0 0.0
    %3585 = vmatprep.subr.mxu0 0.0
    %3586 = vmatpush2.msra.mxu0 0.0
    %3587 = vmatprep.subr.mxu0 0.0
    %3588 = vmatpush2.msra.mxu0 0.0
    %3589 = vmatprep.subr.mxu0 0.0
    %3590 = vmatpush2.msra.mxu0 0.0
    %3591 = vmatprep.subr.mxu0 0.0
    %3592 = vmatpush2.msra.mxu0 0.0
    %3593 = vmatprep.subr.mxu0 0.0
    %3594 = vmatpush2.msra.mxu0 0.0
    %3595 = vmatprep.subr.mxu0 0.0
    %3596 = vmatpush2.msra.mxu0 0.0
    %3597 = vmatprep.subr.mxu0 0.0
    %3598 = vmatpush2.msra.mxu0 0.0
    %3599 = vmatprep.subr.mxu0 0.0
    %3600 = vmatpush2.msra.mxu0 0.0
    %3601 = vmatprep.subr.mxu0 0.0
    %3602 = vmatpush2.msra.mxu0 0.0
    %3603 = vmatprep.subr.mxu0 0.0
    %3604 = vmatpush2.msra.mxu0 0.0
    %3605 = vmatprep.subr.mxu0 0.0
    %3606 = vmatpush2.msra.mxu0 0.0
    %3607 = vmatprep.subr.mxu0 0.0
    %3608 = vmatpush2.msra.mxu0 0.0
    %3609 = vmatprep.subr.mxu0 0.0
    %3610 = vmatpush2.msra.mxu0 0.0
    %3611 = vmatprep.mubr.f32.mxu0 0.0
    %3612 = vmatmul.mubr.f32.gmra.mxu0 %v3545
    %v3613 = vpop.f32.mrf.mxu0
    %v3614 = vadd.f32 0.0, %v3613
    %v3615 = vpop.f32.mrf.mxu0
    %3616 = vdwg.mxu0
    %v3617 = vadd.f32 %v3538, %v3614
    %v3618 = vld [vmem:[#allocation3 + $0x2] sm:$0x1]
    %v3619 = vld [vmem:[%s5 + $0x40] sm:$0xff]
    %v3620 = vld [vmem:[%s5 + $0x48] sm:$0xff]
    %v3621 = vld [vmem:[%s5 + $0x50] sm:$0xff]
    %v3622 = vld [vmem:[%s5 + $0x58] sm:$0xff]
    %v3624 = vsel %vm3447, %v3618, 0
    %3626 = vmatprep.subr.mxu0 0.0
    %3627 = vmatpush1.msra.mxu0 0.0
    %3628 = vmatprep.subr.mxu0 0.0
    %3629 = vmatpush1.msra.mxu0 0.0
    %3630 = vmatprep.subr.mxu0 0.0
    %3631 = vmatpush1.msra.mxu0 0.0
    %3632 = vmatprep.subr.mxu0 0.0
    %3633 = vmatpush1.msra.mxu0 0.0
    %3634 = vmatprep.subr.mxu0 0.0
    %3635 = vmatpush1.msra.mxu0 0.0
    %3636 = vmatprep.subr.mxu0 0.0
    %3637 = vmatpush1.msra.mxu0 0.0
    %3638 = vmatprep.subr.mxu0 0.0
    %3639 = vmatpush1.msra.mxu0 0.0
    %3640 = vmatprep.subr.mxu0 0.0
    %3641 = vmatpush1.msra.mxu0 0.0
    %3642 = vmatprep.subr.mxu0 0.0
    %3643 = vmatpush1.msra.mxu0 0.0
    %3644 = vmatprep.subr.mxu0 0.0
    %3645 = vmatpush1.msra.mxu0 0.0
    %3646 = vmatprep.subr.mxu0 0.0
    %3647 = vmatpush1.msra.mxu0 0.0
    %3648 = vmatprep.subr.mxu0 0.0
    %3649 = vmatpush1.msra.mxu0 0.0
    %3650 = vmatprep.subr.mxu0 0.0
    %3651 = vmatpush1.msra.mxu0 %v3622
    %3652 = vmatprep.subr.mxu0 0.0
    %3653 = vmatpush1.msra.mxu0 %v3621
    %3654 = vmatprep.subr.mxu0 0.0
    %3655 = vmatpush1.msra.mxu0 %v3620
    %3656 = vmatprep.subr.mxu0 0.0
    %3657 = vmatpush1.msra.mxu0 %v3619
    %3658 = vmatprep.subr.mxu0 0.0
    %3659 = vmatpush2.msra.mxu0 0.0
    %3660 = vmatprep.subr.mxu0 0.0
    %3661 = vmatpush2.msra.mxu0 0.0
    %3662 = vmatprep.subr.mxu0 0.0
    %3663 = vmatpush2.msra.mxu0 0.0
    %3664 = vmatprep.subr.mxu0 0.0
    %3665 = vmatpush2.msra.mxu0 0.0
    %3666 = vmatprep.subr.mxu0 0.0
    %3667 = vmatpush2.msra.mxu0 0.0
    %3668 = vmatprep.subr.mxu0 0.0
    %3669 = vmatpush2.msra.mxu0 0.0
    %3670 = vmatprep.subr.mxu0 0.0
    %3671 = vmatpush2.msra.mxu0 0.0
    %3672 = vmatprep.subr.mxu0 0.0
    %3673 = vmatpush2.msra.mxu0 0.0
    %3674 = vmatprep.subr.mxu0 0.0
    %3675 = vmatpush2.msra.mxu0 0.0
    %3676 = vmatprep.subr.mxu0 0.0
    %3677 = vmatpush2.msra.mxu0 0.0
    %3678 = vmatprep.subr.mxu0 0.0
    %3679 = vmatpush2.msra.mxu0 0.0
    %3680 = vmatprep.subr.mxu0 0.0
    %3681 = vmatpush2.msra.mxu0 0.0
    %3682 = vmatprep.subr.mxu0 0.0
    %3683 = vmatpush2.msra.mxu0 0.0
    %3684 = vmatprep.subr.mxu0 0.0
    %3685 = vmatpush2.msra.mxu0 0.0
    %3686 = vmatprep.subr.mxu0 0.0
    %3687 = vmatpush2.msra.mxu0 0.0
    %3688 = vmatprep.subr.mxu0 0.0
    %3689 = vmatpush2.msra.mxu0 0.0
    %3690 = vmatprep.mubr.f32.mxu0 0.0
    %3691 = vmatmul.mubr.f32.gmra.mxu0 %v3624
    %v3692 = vpop.f32.mrf.mxu0
    %v3693 = vadd.f32 0.0, %v3692
    %v3694 = vpop.f32.mrf.mxu0
    %3695 = vdwg.mxu0
    %v3696 = vadd.f32 %v3617, %v3693
    %v3697 = vld [vmem:[#allocation3 + $0x7] sm:$0x1]
    %v3698 = vld [vmem:[%s5 + $0x60] sm:$0xff]
    %v3699 = vld [vmem:[%s5 + $0x68] sm:$0xff]
    %v3700 = vld [vmem:[%s5 + $0x70] sm:$0xff]
    %v3701 = vld [vmem:[%s5 + $0x78] sm:$0xff]
    %v3703 = vsel %vm3447, %v3697, 0
    %3705 = vmatprep.subr.mxu0 0.0
    %3706 = vmatpush1.msra.mxu0 0.0
    %3707 = vmatprep.subr.mxu0 0.0
    %3708 = vmatpush1.msra.mxu0 0.0
    %3709 = vmatprep.subr.mxu0 0.0
    %3710 = vmatpush1.msra.mxu0 0.0
    %3711 = vmatprep.subr.mxu0 0.0
    %3712 = vmatpush1.msra.mxu0 0.0
    %3713 = vmatprep.subr.mxu0 0.0
    %3714 = vmatpush1.msra.mxu0 0.0
    %3715 = vmatprep.subr.mxu0 0.0
    %3716 = vmatpush1.msra.mxu0 0.0
    %3717 = vmatprep.subr.mxu0 0.0
    %3718 = vmatpush1.msra.mxu0 0.0
    %3719 = vmatprep.subr.mxu0 0.0
    %3720 = vmatpush1.msra.mxu0 0.0
    %3721 = vmatprep.subr.mxu0 0.0
    %3722 = vmatpush1.msra.mxu0 0.0
    %3723 = vmatprep.subr.mxu0 0.0
    %3724 = vmatpush1.msra.mxu0 0.0
    %3725 = vmatprep.subr.mxu0 0.0
    %3726 = vmatpush1.msra.mxu0 0.0
    %3727 = vmatprep.subr.mxu0 0.0
    %3728 = vmatpush1.msra.mxu0 0.0
    %3729 = vmatprep.subr.mxu0 0.0
    %3730 = vmatpush1.msra.mxu0 %v3701
    %3731 = vmatprep.subr.mxu0 0.0
    %3732 = vmatpush1.msra.mxu0 %v3700
    %3733 = vmatprep.subr.mxu0 0.0
    %3734 = vmatpush1.msra.mxu0 %v3699
    %3735 = vmatprep.subr.mxu0 0.0
    %3736 = vmatpush1.msra.mxu0 %v3698
    %3737 = vmatprep.subr.mxu0 0.0
    %3738 = vmatpush2.msra.mxu0 0.0
    %3739 = vmatprep.subr.mxu0 0.0
    %3740 = vmatpush2.msra.mxu0 0.0
    %3741 = vmatprep.subr.mxu0 0.0
    %3742 = vmatpush2.msra.mxu0 0.0
    %3743 = vmatprep.subr.mxu0 0.0
    %3744 = vmatpush2.msra.mxu0 0.0
    %3745 = vmatprep.subr.mxu0 0.0
    %3746 = vmatpush2.msra.mxu0 0.0
    %3747 = vmatprep.subr.mxu0 0.0
    %3748 = vmatpush2.msra.mxu0 0.0
    %3749 = vmatprep.subr.mxu0 0.0
    %3750 = vmatpush2.msra.mxu0 0.0
    %3751 = vmatprep.subr.mxu0 0.0
    %3752 = vmatpush2.msra.mxu0 0.0
    %3753 = vmatprep.subr.mxu0 0.0
    %3754 = vmatpush2.msra.mxu0 0.0
    %3755 = vmatprep.subr.mxu0 0.0
    %3756 = vmatpush2.msra.mxu0 0.0
    %3757 = vmatprep.subr.mxu0 0.0
    %3758 = vmatpush2.msra.mxu0 0.0
    %3759 = vmatprep.subr.mxu0 0.0
    %3760 = vmatpush2.msra.mxu0 0.0
    %3761 = vmatprep.subr.mxu0 0.0
    %3762 = vmatpush2.msra.mxu0 0.0
    %3763 = vmatprep.subr.mxu0 0.0
    %3764 = vmatpush2.msra.mxu0 0.0
    %3765 = vmatprep.subr.mxu0 0.0
    %3766 = vmatpush2.msra.mxu0 0.0
    %3767 = vmatprep.subr.mxu0 0.0
    %3768 = vmatpush2.msra.mxu0 0.0
    %3769 = vmatprep.mubr.f32.mxu0 0.0
    %3770 = vmatmul.mubr.f32.gmra.mxu0 %v3703
    %v3771 = vpop.f32.mrf.mxu0
    %v3772 = vadd.f32 0.0, %v3771
    %v3773 = vpop.f32.mrf.mxu0
    %3774 = vdwg.mxu0
    %v3775 = vadd.f32 %v3696, %v3772
    %v3776 = vld [vmem:[#allocation3 + $0x8] sm:$0x1]
    %v3777 = vld [vmem:[%s5 + $0x80] sm:$0xff]
    %v3778 = vld [vmem:[%s5 + $0x88] sm:$0xff]
    %v3779 = vld [vmem:[%s5 + $0x90] sm:$0xff]
    %v3780 = vld [vmem:[%s5 + $0x98] sm:$0xff]
    %v3782 = vsel %vm3447, %v3776, 0
    %3784 = vmatprep.subr.mxu0 0.0
    %3785 = vmatpush1.msra.mxu0 0.0
    %3786 = vmatprep.subr.mxu0 0.0
    %3787 = vmatpush1.msra.mxu0 0.0
    %3788 = vmatprep.subr.mxu0 0.0
    %3789 = vmatpush1.msra.mxu0 0.0
    %3790 = vmatprep.subr.mxu0 0.0
    %3791 = vmatpush1.msra.mxu0 0.0
    %3792 = vmatprep.subr.mxu0 0.0
    %3793 = vmatpush1.msra.mxu0 0.0
    %3794 = vmatprep.subr.mxu0 0.0
    %3795 = vmatpush1.msra.mxu0 0.0
    %3796 = vmatprep.subr.mxu0 0.0
    %3797 = vmatpush1.msra.mxu0 0.0
    %3798 = vmatprep.subr.mxu0 0.0
    %3799 = vmatpush1.msra.mxu0 0.0
    %3800 = vmatprep.subr.mxu0 0.0
    %3801 = vmatpush1.msra.mxu0 0.0
    %3802 = vmatprep.subr.mxu0 0.0
    %3803 = vmatpush1.msra.mxu0 0.0
    %3804 = vmatprep.subr.mxu0 0.0
    %3805 = vmatpush1.msra.mxu0 0.0
    %3806 = vmatprep.subr.mxu0 0.0
    %3807 = vmatpush1.msra.mxu0 0.0
    %3808 = vmatprep.subr.mxu0 0.0
    %3809 = vmatpush1.msra.mxu0 %v3780
    %3810 = vmatprep.subr.mxu0 0.0
    %3811 = vmatpush1.msra.mxu0 %v3779
    %3812 = vmatprep.subr.mxu0 0.0
    %3813 = vmatpush1.msra.mxu0 %v3778
    %3814 = vmatprep.subr.mxu0 0.0
    %3815 = vmatpush1.msra.mxu0 %v3777
    %3816 = vmatprep.subr.mxu0 0.0
    %3817 = vmatpush2.msra.mxu0 0.0
    %3818 = vmatprep.subr.mxu0 0.0
    %3819 = vmatpush2.msra.mxu0 0.0
    %3820 = vmatprep.subr.mxu0 0.0
    %3821 = vmatpush2.msra.mxu0 0.0
    %3822 = vmatprep.subr.mxu0 0.0
    %3823 = vmatpush2.msra.mxu0 0.0
    %3824 = vmatprep.subr.mxu0 0.0
    %3825 = vmatpush2.msra.mxu0 0.0
    %3826 = vmatprep.subr.mxu0 0.0
    %3827 = vmatpush2.msra.mxu0 0.0
    %3828 = vmatprep.subr.mxu0 0.0
    %3829 = vmatpush2.msra.mxu0 0.0
    %3830 = vmatprep.subr.mxu0 0.0
    %3831 = vmatpush2.msra.mxu0 0.0
    %3832 = vmatprep.subr.mxu0 0.0
    %3833 = vmatpush2.msra.mxu0 0.0
    %3834 = vmatprep.subr.mxu0 0.0
    %3835 = vmatpush2.msra.mxu0 0.0
    %3836 = vmatprep.subr.mxu0 0.0
    %3837 = vmatpush2.msra.mxu0 0.0
    %3838 = vmatprep.subr.mxu0 0.0
    %3839 = vmatpush2.msra.mxu0 0.0
    %3840 = vmatprep.subr.mxu0 0.0
    %3841 = vmatpush2.msra.mxu0 0.0
    %3842 = vmatprep.subr.mxu0 0.0
    %3843 = vmatpush2.msra.mxu0 0.0
    %3844 = vmatprep.subr.mxu0 0.0
    %3845 = vmatpush2.msra.mxu0 0.0
    %3846 = vmatprep.subr.mxu0 0.0
    %3847 = vmatpush2.msra.mxu0 0.0
    %3848 = vmatprep.mubr.f32.mxu0 0.0
    %3849 = vmatmul.mubr.f32.gmra.mxu0 %v3782
    %v3850 = vpop.f32.mrf.mxu0
    %v3851 = vadd.f32 0.0, %v3850
    %v3852 = vpop.f32.mrf.mxu0
    %3853 = vdwg.mxu0
    %v3854 = vadd.f32 %v3775, %v3851
    %v3855 = vld [vmem:[#allocation3 + $0x9] sm:$0x1]
    %v3856 = vld [vmem:[%s5 + $0xa0] sm:$0xff]
    %v3857 = vld [vmem:[%s5 + $0xa8] sm:$0xff]
    %v3858 = vld [vmem:[%s5 + $0xb0] sm:$0xff]
    %v3859 = vld [vmem:[%s5 + $0xb8] sm:$0xff]
    %v3861 = vsel %vm3447, %v3855, 0
    %3863 = vmatprep.subr.mxu0 0.0
    %3864 = vmatpush1.msra.mxu0 0.0
    %3865 = vmatprep.subr.mxu0 0.0
    %3866 = vmatpush1.msra.mxu0 0.0
    %3867 = vmatprep.subr.mxu0 0.0
    %3868 = vmatpush1.msra.mxu0 0.0
    %3869 = vmatprep.subr.mxu0 0.0
    %3870 = vmatpush1.msra.mxu0 0.0
    %3871 = vmatprep.subr.mxu0 0.0
    %3872 = vmatpush1.msra.mxu0 0.0
    %3873 = vmatprep.subr.mxu0 0.0
    %3874 = vmatpush1.msra.mxu0 0.0
    %3875 = vmatprep.subr.mxu0 0.0
    %3876 = vmatpush1.msra.mxu0 0.0
    %3877 = vmatprep.subr.mxu0 0.0
    %3878 = vmatpush1.msra.mxu0 0.0
    %3879 = vmatprep.subr.mxu0 0.0
    %3880 = vmatpush1.msra.mxu0 0.0
    %3881 = vmatprep.subr.mxu0 0.0
    %3882 = vmatpush1.msra.mxu0 0.0
    %3883 = vmatprep.subr.mxu0 0.0
    %3884 = vmatpush1.msra.mxu0 0.0
    %3885 = vmatprep.subr.mxu0 0.0
    %3886 = vmatpush1.msra.mxu0 0.0
    %3887 = vmatprep.subr.mxu0 0.0
    %3888 = vmatpush1.msra.mxu0 %v3859
    %3889 = vmatprep.subr.mxu0 0.0
    %3890 = vmatpush1.msra.mxu0 %v3858
    %3891 = vmatprep.subr.mxu0 0.0
    %3892 = vmatpush1.msra.mxu0 %v3857
    %3893 = vmatprep.subr.mxu0 0.0
    %3894 = vmatpush1.msra.mxu0 %v3856
    %3895 = vmatprep.subr.mxu0 0.0
    %3896 = vmatpush2.msra.mxu0 0.0
    %3897 = vmatprep.subr.mxu0 0.0
    %3898 = vmatpush2.msra.mxu0 0.0
    %3899 = vmatprep.subr.mxu0 0.0
    %3900 = vmatpush2.msra.mxu0 0.0
    %3901 = vmatprep.subr.mxu0 0.0
    %3902 = vmatpush2.msra.mxu0 0.0
    %3903 = vmatprep.subr.mxu0 0.0
    %3904 = vmatpush2.msra.mxu0 0.0
    %3905 = vmatprep.subr.mxu0 0.0
    %3906 = vmatpush2.msra.mxu0 0.0
    %3907 = vmatprep.subr.mxu0 0.0
    %3908 = vmatpush2.msra.mxu0 0.0
    %3909 = vmatprep.subr.mxu0 0.0
    %3910 = vmatpush2.msra.mxu0 0.0
    %3911 = vmatprep.subr.mxu0 0.0
    %3912 = vmatpush2.msra.mxu0 0.0
    %3913 = vmatprep.subr.mxu0 0.0
    %3914 = vmatpush2.msra.mxu0 0.0
    %3915 = vmatprep.subr.mxu0 0.0
    %3916 = vmatpush2.msra.mxu0 0.0
    %3917 = vmatprep.subr.mxu0 0.0
    %3918 = vmatpush2.msra.mxu0 0.0
    %3919 = vmatprep.subr.mxu0 0.0
    %3920 = vmatpush2.msra.mxu0 0.0
    %3921 = vmatprep.subr.mxu0 0.0
    %3922 = vmatpush2.msra.mxu0 0.0
    %3923 = vmatprep.subr.mxu0 0.0
    %3924 = vmatpush2.msra.mxu0 0.0
    %3925 = vmatprep.subr.mxu0 0.0
    %3926 = vmatpush2.msra.mxu0 0.0
    %3927 = vmatprep.mubr.f32.mxu0 0.0
    %3928 = vmatmul.mubr.f32.gmra.mxu0 %v3861
    %v3929 = vpop.f32.mrf.mxu0
    %v3930 = vadd.f32 0.0, %v3929
    %v3931 = vpop.f32.mrf.mxu0
    %3932 = vdwg.mxu0
    %v3933 = vadd.f32 %v3854, %v3930
    %v3934 = vld [vmem:[%s7] sm:$0xff]
    %v3935 = vld [vmem:[%s7 + $0x8] sm:$0xff]
    %v3936 = vld [vmem:[%s7 + $0x10] sm:$0xff]
    %v3937 = vld [vmem:[%s7 + $0x18] sm:$0xff]
    %v3938 = vld [vmem:[%s8] sm:$0x1]
    %v3940 = vsel %vm3447, %v3933, 0
    %3942 = vmatprep.subr.mxu0 0.0
    %3943 = vmatpush1.msra.mxu0 0.0
    %3944 = vmatprep.subr.mxu0 0.0
    %3945 = vmatpush1.msra.mxu0 0.0
    %3946 = vmatprep.subr.mxu0 0.0
    %3947 = vmatpush1.msra.mxu0 0.0
    %3948 = vmatprep.subr.mxu0 0.0
    %3949 = vmatpush1.msra.mxu0 0.0
    %3950 = vmatprep.subr.mxu0 0.0
    %3951 = vmatpush1.msra.mxu0 0.0
    %3952 = vmatprep.subr.mxu0 0.0
    %3953 = vmatpush1.msra.mxu0 0.0
    %3954 = vmatprep.subr.mxu0 0.0
    %3955 = vmatpush1.msra.mxu0 0.0
    %3956 = vmatprep.subr.mxu0 0.0
    %3957 = vmatpush1.msra.mxu0 0.0
    %3958 = vmatprep.subr.mxu0 0.0
    %3959 = vmatpush1.msra.mxu0 0.0
    %3960 = vmatprep.subr.mxu0 0.0
    %3961 = vmatpush1.msra.mxu0 0.0
    %3962 = vmatprep.subr.mxu0 0.0
    %3963 = vmatpush1.msra.mxu0 0.0
    %3964 = vmatprep.subr.mxu0 0.0
    %3965 = vmatpush1.msra.mxu0 0.0
    %3966 = vmatprep.subr.mxu0 0.0
    %3967 = vmatpush1.msra.mxu0 %v3937
    %3968 = vmatprep.subr.mxu0 0.0
    %3969 = vmatpush1.msra.mxu0 %v3936
    %3970 = vmatprep.subr.mxu0 0.0
    %3971 = vmatpush1.msra.mxu0 %v3935
    %3972 = vmatprep.subr.mxu0 0.0
    %3973 = vmatpush1.msra.mxu0 %v3934
    %3974 = vmatprep.subr.mxu0 0.0
    %3975 = vmatpush2.msra.mxu0 0.0
    %3976 = vmatprep.subr.mxu0 0.0
    %3977 = vmatpush2.msra.mxu0 0.0
    %3978 = vmatprep.subr.mxu0 0.0
    %3979 = vmatpush2.msra.mxu0 0.0
    %3980 = vmatprep.subr.mxu0 0.0
    %3981 = vmatpush2.msra.mxu0 0.0
    %3982 = vmatprep.subr.mxu0 0.0
    %3983 = vmatpush2.msra.mxu0 0.0
    %3984 = vmatprep.subr.mxu0 0.0
    %3985 = vmatpush2.msra.mxu0 0.0
    %3986 = vmatprep.subr.mxu0 0.0
    %3987 = vmatpush2.msra.mxu0 0.0
    %3988 = vmatprep.subr.mxu0 0.0
    %3989 = vmatpush2.msra.mxu0 0.0
    %3990 = vmatprep.subr.mxu0 0.0
    %3991 = vmatpush2.msra.mxu0 0.0
    %3992 = vmatprep.subr.mxu0 0.0
    %3993 = vmatpush2.msra.mxu0 0.0
    %3994 = vmatprep.subr.mxu0 0.0
    %3995 = vmatpush2.msra.mxu0 0.0
    %3996 = vmatprep.subr.mxu0 0.0
    %3997 = vmatpush2.msra.mxu0 0.0
    %3998 = vmatprep.subr.mxu0 0.0
    %3999 = vmatpush2.msra.mxu0 0.0
    %4000 = vmatprep.subr.mxu0 0.0
    %4001 = vmatpush2.msra.mxu0 0.0
    %4002 = vmatprep.subr.mxu0 0.0
    %4003 = vmatpush2.msra.mxu0 0.0
    %4004 = vmatprep.subr.mxu0 0.0
    %4005 = vmatpush2.msra.mxu0 0.0
    %4006 = vmatprep.mubr.f32.mxu0 0.0
    %4007 = vmatmul.mubr.f32.gmra.mxu0 %v3940
    %v4008 = vpop.f32.mrf.mxu0
    %v4009 = vadd.f32 %v3938, %v4008
    %v4010 = vpop.f32.mrf.mxu0
    %4011 = vdwg.mxu0
    %4012 = vst [vmem:[#allocation4] sm:$0x1] %v4009
    %v4013 = vld [vmem:[%s6] sm:$0x1]
    %v4014 = vld [vmem:[#allocation3 + $0x2a] sm:$0x1]
    %v4015 = vld [vmem:[%s5] sm:$0xff]
    %v4016 = vld [vmem:[%s5 + $0x8] sm:$0xff]
    %v4017 = vld [vmem:[%s5 + $0x10] sm:$0xff]
    %v4018 = vld [vmem:[%s5 + $0x18] sm:$0xff]
    %v4020 = vsel %vm3447, %v4014, 0
    %4022 = vmatprep.subr.mxu0 0.0
    %4023 = vmatpush1.msra.mxu0 0.0
    %4024 = vmatprep.subr.mxu0 0.0
    %4025 = vmatpush1.msra.mxu0 0.0
    %4026 = vmatprep.subr.mxu0 0.0
    %4027 = vmatpush1.msra.mxu0 0.0
    %4028 = vmatprep.subr.mxu0 0.0
    %4029 = vmatpush1.msra.mxu0 0.0
    %4030 = vmatprep.subr.mxu0 0.0
    %4031 = vmatpush1.msra.mxu0 0.0
    %4032 = vmatprep.subr.mxu0 0.0
    %4033 = vmatpush1.msra.mxu0 0.0
    %4034 = vmatprep.subr.mxu0 0.0
    %4035 = vmatpush1.msra.mxu0 0.0
    %4036 = vmatprep.subr.mxu0 0.0
    %4037 = vmatpush1.msra.mxu0 0.0
    %4038 = vmatprep.subr.mxu0 0.0
    %4039 = vmatpush1.msra.mxu0 0.0
    %4040 = vmatprep.subr.mxu0 0.0
    %4041 = vmatpush1.msra.mxu0 0.0
    %4042 = vmatprep.subr.mxu0 0.0
    %4043 = vmatpush1.msra.mxu0 0.0
    %4044 = vmatprep.subr.mxu0 0.0
    %4045 = vmatpush1.msra.mxu0 0.0
    %4046 = vmatprep.subr.mxu0 0.0
    %4047 = vmatpush1.msra.mxu0 %v4018
    %4048 = vmatprep.subr.mxu0 0.0
    %4049 = vmatpush1.msra.mxu0 %v4017
    %4050 = vmatprep.subr.mxu0 0.0
    %4051 = vmatpush1.msra.mxu0 %v4016
    %4052 = vmatprep.subr.mxu0 0.0
    %4053 = vmatpush1.msra.mxu0 %v4015
    %4054 = vmatprep.subr.mxu0 0.0
    %4055 = vmatpush2.msra.mxu0 0.0
    %4056 = vmatprep.subr.mxu0 0.0
    %4057 = vmatpush2.msra.mxu0 0.0
    %4058 = vmatprep.subr.mxu0 0.0
    %4059 = vmatpush2.msra.mxu0 0.0
    %4060 = vmatprep.subr.mxu0 0.0
    %4061 = vmatpush2.msra.mxu0 0.0
    %4062 = vmatprep.subr.mxu0 0.0
    %4063 = vmatpush2.msra.mxu0 0.0
    %4064 = vmatprep.subr.mxu0 0.0
    %4065 = vmatpush2.msra.mxu0 0.0
    %4066 = vmatprep.subr.mxu0 0.0
    %4067 = vmatpush2.msra.mxu0 0.0
    %4068 = vmatprep.subr.mxu0 0.0
    %4069 = vmatpush2.msra.mxu0 0.0
    %4070 = vmatprep.subr.mxu0 0.0
    %4071 = vmatpush2.msra.mxu0 0.0
    %4072 = vmatprep.subr.mxu0 0.0
    %4073 = vmatpush2.msra.mxu0 0.0
    %4074 = vmatprep.subr.mxu0 0.0
    %4075 = vmatpush2.msra.mxu0 0.0
    %4076 = vmatprep.subr.mxu0 0.0
    %4077 = vmatpush2.msra.mxu0 0.0
    %4078 = vmatprep.subr.mxu0 0.0
    %4079 = vmatpush2.msra.mxu0 0.0
    %4080 = vmatprep.subr.mxu0 0.0
    %4081 = vmatpush2.msra.mxu0 0.0
    %4082 = vmatprep.subr.mxu0 0.0
    %4083 = vmatpush2.msra.mxu0 0.0
    %4084 = vmatprep.subr.mxu0 0.0
    %4085 = vmatpush2.msra.mxu0 0.0
    %4086 = vmatprep.mubr.f32.mxu0 0.0
    %4087 = vmatmul.mubr.f32.gmra.mxu0 %v4020
    %v4088 = vpop.f32.mrf.mxu0
    %v4089 = vadd.f32 0.0, %v4088
    %v4090 = vpop.f32.mrf.mxu0
    %4091 = vdwg.mxu0
    %v4092 = vadd.f32 %v4013, %v4089
    %v4093 = vld [vmem:[#allocation3 + $0x2b] sm:$0x1]
    %v4094 = vld [vmem:[%s5 + $0x20] sm:$0xff]
    %v4095 = vld [vmem:[%s5 + $0x28] sm:$0xff]
    %v4096 = vld [vmem:[%s5 + $0x30] sm:$0xff]
    %v4097 = vld [vmem:[%s5 + $0x38] sm:$0xff]
    %v4099 = vsel %vm3447, %v4093, 0
    %4101 = vmatprep.subr.mxu0 0.0
    %4102 = vmatpush1.msra.mxu0 0.0
    %4103 = vmatprep.subr.mxu0 0.0
    %4104 = vmatpush1.msra.mxu0 0.0
    %4105 = vmatprep.subr.mxu0 0.0
    %4106 = vmatpush1.msra.mxu0 0.0
    %4107 = vmatprep.subr.mxu0 0.0
    %4108 = vmatpush1.msra.mxu0 0.0
    %4109 = vmatprep.subr.mxu0 0.0
    %4110 = vmatpush1.msra.mxu0 0.0
    %4111 = vmatprep.subr.mxu0 0.0
    %4112 = vmatpush1.msra.mxu0 0.0
    %4113 = vmatprep.subr.mxu0 0.0
    %4114 = vmatpush1.msra.mxu0 0.0
    %4115 = vmatprep.subr.mxu0 0.0
    %4116 = vmatpush1.msra.mxu0 0.0
    %4117 = vmatprep.subr.mxu0 0.0
    %4118 = vmatpush1.msra.mxu0 0.0
    %4119 = vmatprep.subr.mxu0 0.0
    %4120 = vmatpush1.msra.mxu0 0.0
    %4121 = vmatprep.subr.mxu0 0.0
    %4122 = vmatpush1.msra.mxu0 0.0
    %4123 = vmatprep.subr.mxu0 0.0
    %4124 = vmatpush1.msra.mxu0 0.0
    %4125 = vmatprep.subr.mxu0 0.0
    %4126 = vmatpush1.msra.mxu0 %v4097
    %4127 = vmatprep.subr.mxu0 0.0
    %4128 = vmatpush1.msra.mxu0 %v4096
    %4129 = vmatprep.subr.mxu0 0.0
    %4130 = vmatpush1.msra.mxu0 %v4095
    %4131 = vmatprep.subr.mxu0 0.0
    %4132 = vmatpush1.msra.mxu0 %v4094
    %4133 = vmatprep.subr.mxu0 0.0
    %4134 = vmatpush2.msra.mxu0 0.0
    %4135 = vmatprep.subr.mxu0 0.0
    %4136 = vmatpush2.msra.mxu0 0.0
    %4137 = vmatprep.subr.mxu0 0.0
    %4138 = vmatpush2.msra.mxu0 0.0
    %4139 = vmatprep.subr.mxu0 0.0
    %4140 = vmatpush2.msra.mxu0 0.0
    %4141 = vmatprep.subr.mxu0 0.0
    %4142 = vmatpush2.msra.mxu0 0.0
    %4143 = vmatprep.subr.mxu0 0.0
    %4144 = vmatpush2.msra.mxu0 0.0
    %4145 = vmatprep.subr.mxu0 0.0
    %4146 = vmatpush2.msra.mxu0 0.0
    %4147 = vmatprep.subr.mxu0 0.0
    %4148 = vmatpush2.msra.mxu0 0.0
    %4149 = vmatprep.subr.mxu0 0.0
    %4150 = vmatpush2.msra.mxu0 0.0
    %4151 = vmatprep.subr.mxu0 0.0
    %4152 = vmatpush2.msra.mxu0 0.0
    %4153 = vmatprep.subr.mxu0 0.0
    %4154 = vmatpush2.msra.mxu0 0.0
    %4155 = vmatprep.subr.mxu0 0.0
    %4156 = vmatpush2.msra.mxu0 0.0
    %4157 = vmatprep.subr.mxu0 0.0
    %4158 = vmatpush2.msra.mxu0 0.0
    %4159 = vmatprep.subr.mxu0 0.0
    %4160 = vmatpush2.msra.mxu0 0.0
    %4161 = vmatprep.subr.mxu0 0.0
    %4162 = vmatpush2.msra.mxu0 0.0
    %4163 = vmatprep.subr.mxu0 0.0
    %4164 = vmatpush2.msra.mxu0 0.0
    %4165 = vmatprep.mubr.f32.mxu0 0.0
    %4166 = vmatmul.mubr.f32.gmra.mxu0 %v4099
    %v4167 = vpop.f32.mrf.mxu0
    %v4168 = vadd.f32 0.0, %v4167
    %v4169 = vpop.f32.mrf.mxu0
    %4170 = vdwg.mxu0
    %v4171 = vadd.f32 %v4092, %v4168
    %v4172 = vld [vmem:[#allocation3 + $0x2c] sm:$0x1]
    %v4173 = vld [vmem:[%s5 + $0x40] sm:$0xff]
    %v4174 = vld [vmem:[%s5 + $0x48] sm:$0xff]
    %v4175 = vld [vmem:[%s5 + $0x50] sm:$0xff]
    %v4176 = vld [vmem:[%s5 + $0x58] sm:$0xff]
    %v4178 = vsel %vm3447, %v4172, 0
    %4180 = vmatprep.subr.mxu0 0.0
    %4181 = vmatpush1.msra.mxu0 0.0
    %4182 = vmatprep.subr.mxu0 0.0
    %4183 = vmatpush1.msra.mxu0 0.0
    %4184 = vmatprep.subr.mxu0 0.0
    %4185 = vmatpush1.msra.mxu0 0.0
    %4186 = vmatprep.subr.mxu0 0.0
    %4187 = vmatpush1.msra.mxu0 0.0
    %4188 = vmatprep.subr.mxu0 0.0
    %4189 = vmatpush1.msra.mxu0 0.0
    %4190 = vmatprep.subr.mxu0 0.0
    %4191 = vmatpush1.msra.mxu0 0.0
    %4192 = vmatprep.subr.mxu0 0.0
    %4193 = vmatpush1.msra.mxu0 0.0
    %4194 = vmatprep.subr.mxu0 0.0
    %4195 = vmatpush1.msra.mxu0 0.0
    %4196 = vmatprep.subr.mxu0 0.0
    %4197 = vmatpush1.msra.mxu0 0.0
    %4198 = vmatprep.subr.mxu0 0.0
    %4199 = vmatpush1.msra.mxu0 0.0
    %4200 = vmatprep.subr.mxu0 0.0
    %4201 = vmatpush1.msra.mxu0 0.0
    %4202 = vmatprep.subr.mxu0 0.0
    %4203 = vmatpush1.msra.mxu0 0.0
    %4204 = vmatprep.subr.mxu0 0.0
    %4205 = vmatpush1.msra.mxu0 %v4176
    %4206 = vmatprep.subr.mxu0 0.0
    %4207 = vmatpush1.msra.mxu0 %v4175
    %4208 = vmatprep.subr.mxu0 0.0
    %4209 = vmatpush1.msra.mxu0 %v4174
    %4210 = vmatprep.subr.mxu0 0.0
    %4211 = vmatpush1.msra.mxu0 %v4173
    %4212 = vmatprep.subr.mxu0 0.0
    %4213 = vmatpush2.msra.mxu0 0.0
    %4214 = vmatprep.subr.mxu0 0.0
    %4215 = vmatpush2.msra.mxu0 0.0
    %4216 = vmatprep.subr.mxu0 0.0
    %4217 = vmatpush2.msra.mxu0 0.0
    %4218 = vmatprep.subr.mxu0 0.0
    %4219 = vmatpush2.msra.mxu0 0.0
    %4220 = vmatprep.subr.mxu0 0.0
    %4221 = vmatpush2.msra.mxu0 0.0
    %4222 = vmatprep.subr.mxu0 0.0
    %4223 = vmatpush2.msra.mxu0 0.0
    %4224 = vmatprep.subr.mxu0 0.0
    %4225 = vmatpush2.msra.mxu0 0.0
    %4226 = vmatprep.subr.mxu0 0.0
    %4227 = vmatpush2.msra.mxu0 0.0
    %4228 = vmatprep.subr.mxu0 0.0
    %4229 = vmatpush2.msra.mxu0 0.0
    %4230 = vmatprep.subr.mxu0 0.0
    %4231 = vmatpush2.msra.mxu0 0.0
    %4232 = vmatprep.subr.mxu0 0.0
    %4233 = vmatpush2.msra.mxu0 0.0
    %4234 = vmatprep.subr.mxu0 0.0
    %4235 = vmatpush2.msra.mxu0 0.0
    %4236 = vmatprep.subr.mxu0 0.0
    %4237 = vmatpush2.msra.mxu0 0.0
    %4238 = vmatprep.subr.mxu0 0.0
    %4239 = vmatpush2.msra.mxu0 0.0
    %4240 = vmatprep.subr.mxu0 0.0
    %4241 = vmatpush2.msra.mxu0 0.0
    %4242 = vmatprep.subr.mxu0 0.0
    %4243 = vmatpush2.msra.mxu0 0.0
    %4244 = vmatprep.mubr.f32.mxu0 0.0
    %4245 = vmatmul.mubr.f32.gmra.mxu0 %v4178
    %v4246 = vpop.f32.mrf.mxu0
    %v4247 = vadd.f32 0.0, %v4246
    %v4248 = vpop.f32.mrf.mxu0
    %4249 = vdwg.mxu0
    %v4250 = vadd.f32 %v4171, %v4247
    %v4251 = vld [vmem:[#allocation3 + $0x31] sm:$0x1]
    %v4252 = vld [vmem:[%s5 + $0x60] sm:$0xff]
    %v4253 = vld [vmem:[%s5 + $0x68] sm:$0xff]
    %v4254 = vld [vmem:[%s5 + $0x70] sm:$0xff]
    %v4255 = vld [vmem:[%s5 + $0x78] sm:$0xff]
    %v4257 = vsel %vm3447, %v4251, 0
    %4259 = vmatprep.subr.mxu0 0.0
    %4260 = vmatpush1.msra.mxu0 0.0
    %4261 = vmatprep.subr.mxu0 0.0
    %4262 = vmatpush1.msra.mxu0 0.0
    %4263 = vmatprep.subr.mxu0 0.0
    %4264 = vmatpush1.msra.mxu0 0.0
    %4265 = vmatprep.subr.mxu0 0.0
    %4266 = vmatpush1.msra.mxu0 0.0
    %4267 = vmatprep.subr.mxu0 0.0
    %4268 = vmatpush1.msra.mxu0 0.0
    %4269 = vmatprep.subr.mxu0 0.0
    %4270 = vmatpush1.msra.mxu0 0.0
    %4271 = vmatprep.subr.mxu0 0.0
    %4272 = vmatpush1.msra.mxu0 0.0
    %4273 = vmatprep.subr.mxu0 0.0
    %4274 = vmatpush1.msra.mxu0 0.0
    %4275 = vmatprep.subr.mxu0 0.0
    %4276 = vmatpush1.msra.mxu0 0.0
    %4277 = vmatprep.subr.mxu0 0.0
    %4278 = vmatpush1.msra.mxu0 0.0
    %4279 = vmatprep.subr.mxu0 0.0
    %4280 = vmatpush1.msra.mxu0 0.0
    %4281 = vmatprep.subr.mxu0 0.0
    %4282 = vmatpush1.msra.mxu0 0.0
    %4283 = vmatprep.subr.mxu0 0.0
    %4284 = vmatpush1.msra.mxu0 %v4255
    %4285 = vmatprep.subr.mxu0 0.0
    %4286 = vmatpush1.msra.mxu0 %v4254
    %4287 = vmatprep.subr.mxu0 0.0
    %4288 = vmatpush1.msra.mxu0 %v4253
    %4289 = vmatprep.subr.mxu0 0.0
    %4290 = vmatpush1.msra.mxu0 %v4252
    %4291 = vmatprep.subr.mxu0 0.0
    %4292 = vmatpush2.msra.mxu0 0.0
    %4293 = vmatprep.subr.mxu0 0.0
    %4294 = vmatpush2.msra.mxu0 0.0
    %4295 = vmatprep.subr.mxu0 0.0
    %4296 = vmatpush2.msra.mxu0 0.0
    %4297 = vmatprep.subr.mxu0 0.0
    %4298 = vmatpush2.msra.mxu0 0.0
    %4299 = vmatprep.subr.mxu0 0.0
    %4300 = vmatpush2.msra.mxu0 0.0
    %4301 = vmatprep.subr.mxu0 0.0
    %4302 = vmatpush2.msra.mxu0 0.0
    %4303 = vmatprep.subr.mxu0 0.0
    %4304 = vmatpush2.msra.mxu0 0.0
    %4305 = vmatprep.subr.mxu0 0.0
    %4306 = vmatpush2.msra.mxu0 0.0
    %4307 = vmatprep.subr.mxu0 0.0
    %4308 = vmatpush2.msra.mxu0 0.0
    %4309 = vmatprep.subr.mxu0 0.0
    %4310 = vmatpush2.msra.mxu0 0.0
    %4311 = vmatprep.subr.mxu0 0.0
    %4312 = vmatpush2.msra.mxu0 0.0
    %4313 = vmatprep.subr.mxu0 0.0
    %4314 = vmatpush2.msra.mxu0 0.0
    %4315 = vmatprep.subr.mxu0 0.0
    %4316 = vmatpush2.msra.mxu0 0.0
    %4317 = vmatprep.subr.mxu0 0.0
    %4318 = vmatpush2.msra.mxu0 0.0
    %4319 = vmatprep.subr.mxu0 0.0
    %4320 = vmatpush2.msra.mxu0 0.0
    %4321 = vmatprep.subr.mxu0 0.0
    %4322 = vmatpush2.msra.mxu0 0.0
    %4323 = vmatprep.mubr.f32.mxu0 0.0
    %4324 = vmatmul.mubr.f32.gmra.mxu0 %v4257
    %v4325 = vpop.f32.mrf.mxu0
    %v4326 = vadd.f32 0.0, %v4325
    %v4327 = vpop.f32.mrf.mxu0
    %4328 = vdwg.mxu0
    %v4329 = vadd.f32 %v4250, %v4326
    %v4330 = vld [vmem:[#allocation3 + $0x32] sm:$0x1]
    %v4331 = vld [vmem:[%s5 + $0x80] sm:$0xff]
    %v4332 = vld [vmem:[%s5 + $0x88] sm:$0xff]
    %v4333 = vld [vmem:[%s5 + $0x90] sm:$0xff]
    %v4334 = vld [vmem:[%s5 + $0x98] sm:$0xff]
    %v4336 = vsel %vm3447, %v4330, 0
    %4338 = vmatprep.subr.mxu0 0.0
    %4339 = vmatpush1.msra.mxu0 0.0
    %4340 = vmatprep.subr.mxu0 0.0
    %4341 = vmatpush1.msra.mxu0 0.0
    %4342 = vmatprep.subr.mxu0 0.0
    %4343 = vmatpush1.msra.mxu0 0.0
    %4344 = vmatprep.subr.mxu0 0.0
    %4345 = vmatpush1.msra.mxu0 0.0
    %4346 = vmatprep.subr.mxu0 0.0
    %4347 = vmatpush1.msra.mxu0 0.0
    %4348 = vmatprep.subr.mxu0 0.0
    %4349 = vmatpush1.msra.mxu0 0.0
    %4350 = vmatprep.subr.mxu0 0.0
    %4351 = vmatpush1.msra.mxu0 0.0
    %4352 = vmatprep.subr.mxu0 0.0
    %4353 = vmatpush1.msra.mxu0 0.0
    %4354 = vmatprep.subr.mxu0 0.0
    %4355 = vmatpush1.msra.mxu0 0.0
    %4356 = vmatprep.subr.mxu0 0.0
    %4357 = vmatpush1.msra.mxu0 0.0
    %4358 = vmatprep.subr.mxu0 0.0
    %4359 = vmatpush1.msra.mxu0 0.0
    %4360 = vmatprep.subr.mxu0 0.0
    %4361 = vmatpush1.msra.mxu0 0.0
    %4362 = vmatprep.subr.mxu0 0.0
    %4363 = vmatpush1.msra.mxu0 %v4334
    %4364 = vmatprep.subr.mxu0 0.0
    %4365 = vmatpush1.msra.mxu0 %v4333
    %4366 = vmatprep.subr.mxu0 0.0
    %4367 = vmatpush1.msra.mxu0 %v4332
    %4368 = vmatprep.subr.mxu0 0.0
    %4369 = vmatpush1.msra.mxu0 %v4331
    %4370 = vmatprep.subr.mxu0 0.0
    %4371 = vmatpush2.msra.mxu0 0.0
    %4372 = vmatprep.subr.mxu0 0.0
    %4373 = vmatpush2.msra.mxu0 0.0
    %4374 = vmatprep.subr.mxu0 0.0
    %4375 = vmatpush2.msra.mxu0 0.0
    %4376 = vmatprep.subr.mxu0 0.0
    %4377 = vmatpush2.msra.mxu0 0.0
    %4378 = vmatprep.subr.mxu0 0.0
    %4379 = vmatpush2.msra.mxu0 0.0
    %4380 = vmatprep.subr.mxu0 0.0
    %4381 = vmatpush2.msra.mxu0 0.0
    %4382 = vmatprep.subr.mxu0 0.0
    %4383 = vmatpush2.msra.mxu0 0.0
    %4384 = vmatprep.subr.mxu0 0.0
    %4385 = vmatpush2.msra.mxu0 0.0
    %4386 = vmatprep.subr.mxu0 0.0
    %4387 = vmatpush2.msra.mxu0 0.0
    %4388 = vmatprep.subr.mxu0 0.0
    %4389 = vmatpush2.msra.mxu0 0.0
    %4390 = vmatprep.subr.mxu0 0.0
    %4391 = vmatpush2.msra.mxu0 0.0
    %4392 = vmatprep.subr.mxu0 0.0
    %4393 = vmatpush2.msra.mxu0 0.0
    %4394 = vmatprep.subr.mxu0 0.0
    %4395 = vmatpush2.msra.mxu0 0.0
    %4396 = vmatprep.subr.mxu0 0.0
    %4397 = vmatpush2.msra.mxu0 0.0
    %4398 = vmatprep.subr.mxu0 0.0
    %4399 = vmatpush2.msra.mxu0 0.0
    %4400 = vmatprep.subr.mxu0 0.0
    %4401 = vmatpush2.msra.mxu0 0.0
    %4402 = vmatprep.mubr.f32.mxu0 0.0
    %4403 = vmatmul.mubr.f32.gmra.mxu0 %v4336
    %v4404 = vpop.f32.mrf.mxu0
    %v4405 = vadd.f32 0.0, %v4404
    %v4406 = vpop.f32.mrf.mxu0
    %4407 = vdwg.mxu0
    %v4408 = vadd.f32 %v4329, %v4405
    %v4409 = vld [vmem:[#allocation3 + $0x33] sm:$0x1]
    %v4410 = vld [vmem:[%s5 + $0xa0] sm:$0xff]
    %v4411 = vld [vmem:[%s5 + $0xa8] sm:$0xff]
    %v4412 = vld [vmem:[%s5 + $0xb0] sm:$0xff]
    %v4413 = vld [vmem:[%s5 + $0xb8] sm:$0xff]
    %v4415 = vsel %vm3447, %v4409, 0
    %4417 = vmatprep.subr.mxu0 0.0
    %4418 = vmatpush1.msra.mxu0 0.0
    %4419 = vmatprep.subr.mxu0 0.0
    %4420 = vmatpush1.msra.mxu0 0.0
    %4421 = vmatprep.subr.mxu0 0.0
    %4422 = vmatpush1.msra.mxu0 0.0
    %4423 = vmatprep.subr.mxu0 0.0
    %4424 = vmatpush1.msra.mxu0 0.0
    %4425 = vmatprep.subr.mxu0 0.0
    %4426 = vmatpush1.msra.mxu0 0.0
    %4427 = vmatprep.subr.mxu0 0.0
    %4428 = vmatpush1.msra.mxu0 0.0
    %4429 = vmatprep.subr.mxu0 0.0
    %4430 = vmatpush1.msra.mxu0 0.0
    %4431 = vmatprep.subr.mxu0 0.0
    %4432 = vmatpush1.msra.mxu0 0.0
    %4433 = vmatprep.subr.mxu0 0.0
    %4434 = vmatpush1.msra.mxu0 0.0
    %4435 = vmatprep.subr.mxu0 0.0
    %4436 = vmatpush1.msra.mxu0 0.0
    %4437 = vmatprep.subr.mxu0 0.0
    %4438 = vmatpush1.msra.mxu0 0.0
    %4439 = vmatprep.subr.mxu0 0.0
    %4440 = vmatpush1.msra.mxu0 0.0
    %4441 = vmatprep.subr.mxu0 0.0
    %4442 = vmatpush1.msra.mxu0 %v4413
    %4443 = vmatprep.subr.mxu0 0.0
    %4444 = vmatpush1.msra.mxu0 %v4412
    %4445 = vmatprep.subr.mxu0 0.0
    %4446 = vmatpush1.msra.mxu0 %v4411
    %4447 = vmatprep.subr.mxu0 0.0
    %4448 = vmatpush1.msra.mxu0 %v4410
    %4449 = vmatprep.subr.mxu0 0.0
    %4450 = vmatpush2.msra.mxu0 0.0
    %4451 = vmatprep.subr.mxu0 0.0
    %4452 = vmatpush2.msra.mxu0 0.0
    %4453 = vmatprep.subr.mxu0 0.0
    %4454 = vmatpush2.msra.mxu0 0.0
    %4455 = vmatprep.subr.mxu0 0.0
    %4456 = vmatpush2.msra.mxu0 0.0
    %4457 = vmatprep.subr.mxu0 0.0
    %4458 = vmatpush2.msra.mxu0 0.0
    %4459 = vmatprep.subr.mxu0 0.0
    %4460 = vmatpush2.msra.mxu0 0.0
    %4461 = vmatprep.subr.mxu0 0.0
    %4462 = vmatpush2.msra.mxu0 0.0
    %4463 = vmatprep.subr.mxu0 0.0
    %4464 = vmatpush2.msra.mxu0 0.0
    %4465 = vmatprep.subr.mxu0 0.0
    %4466 = vmatpush2.msra.mxu0 0.0
    %4467 = vmatprep.subr.mxu0 0.0
    %4468 = vmatpush2.msra.mxu0 0.0
    %4469 = vmatprep.subr.mxu0 0.0
    %4470 = vmatpush2.msra.mxu0 0.0
    %4471 = vmatprep.subr.mxu0 0.0
    %4472 = vmatpush2.msra.mxu0 0.0
    %4473 = vmatprep.subr.mxu0 0.0
    %4474 = vmatpush2.msra.mxu0 0.0
    %4475 = vmatprep.subr.mxu0 0.0
    %4476 = vmatpush2.msra.mxu0 0.0
    %4477 = vmatprep.subr.mxu0 0.0
    %4478 = vmatpush2.msra.mxu0 0.0
    %4479 = vmatprep.subr.mxu0 0.0
    %4480 = vmatpush2.msra.mxu0 0.0
    %4481 = vmatprep.mubr.f32.mxu0 0.0
    %4482 = vmatmul.mubr.f32.gmra.mxu0 %v4415
    %v4483 = vpop.f32.mrf.mxu0
    %v4484 = vadd.f32 0.0, %v4483
    %v4485 = vpop.f32.mrf.mxu0
    %4486 = vdwg.mxu0
    %v4487 = vadd.f32 %v4408, %v4484
    %v4488 = vld [vmem:[%s7] sm:$0xff]
    %v4489 = vld [vmem:[%s7 + $0x8] sm:$0xff]
    %v4490 = vld [vmem:[%s7 + $0x10] sm:$0xff]
    %v4491 = vld [vmem:[%s7 + $0x18] sm:$0xff]
    %v4492 = vld [vmem:[%s8] sm:$0x1]
    %v4494 = vsel %vm3447, %v4487, 0
    %4496 = vmatprep.subr.mxu0 0.0
    %4497 = vmatpush1.msra.mxu0 0.0
    %4498 = vmatprep.subr.mxu0 0.0
    %4499 = vmatpush1.msra.mxu0 0.0
    %4500 = vmatprep.subr.mxu0 0.0
    %4501 = vmatpush1.msra.mxu0 0.0
    %4502 = vmatprep.subr.mxu0 0.0
    %4503 = vmatpush1.msra.mxu0 0.0
    %4504 = vmatprep.subr.mxu0 0.0
    %4505 = vmatpush1.msra.mxu0 0.0
    %4506 = vmatprep.subr.mxu0 0.0
    %4507 = vmatpush1.msra.mxu0 0.0
    %4508 = vmatprep.subr.mxu0 0.0
    %4509 = vmatpush1.msra.mxu0 0.0
    %4510 = vmatprep.subr.mxu0 0.0
    %4511 = vmatpush1.msra.mxu0 0.0
    %4512 = vmatprep.subr.mxu0 0.0
    %4513 = vmatpush1.msra.mxu0 0.0
    %4514 = vmatprep.subr.mxu0 0.0
    %4515 = vmatpush1.msra.mxu0 0.0
    %4516 = vmatprep.subr.mxu0 0.0
    %4517 = vmatpush1.msra.mxu0 0.0
    %4518 = vmatprep.subr.mxu0 0.0
    %4519 = vmatpush1.msra.mxu0 0.0
    %4520 = vmatprep.subr.mxu0 0.0
    %4521 = vmatpush1.msra.mxu0 %v4491
    %4522 = vmatprep.subr.mxu0 0.0
    %4523 = vmatpush1.msra.mxu0 %v4490
    %4524 = vmatprep.subr.mxu0 0.0
    %4525 = vmatpush1.msra.mxu0 %v4489
    %4526 = vmatprep.subr.mxu0 0.0
    %4527 = vmatpush1.msra.mxu0 %v4488
    %4528 = vmatprep.subr.mxu0 0.0
    %4529 = vmatpush2.msra.mxu0 0.0
    %4530 = vmatprep.subr.mxu0 0.0
    %4531 = vmatpush2.msra.mxu0 0.0
    %4532 = vmatprep.subr.mxu0 0.0
    %4533 = vmatpush2.msra.mxu0 0.0
    %4534 = vmatprep.subr.mxu0 0.0
    %4535 = vmatpush2.msra.mxu0 0.0
    %4536 = vmatprep.subr.mxu0 0.0
    %4537 = vmatpush2.msra.mxu0 0.0
    %4538 = vmatprep.subr.mxu0 0.0
    %4539 = vmatpush2.msra.mxu0 0.0
    %4540 = vmatprep.subr.mxu0 0.0
    %4541 = vmatpush2.msra.mxu0 0.0
    %4542 = vmatprep.subr.mxu0 0.0
    %4543 = vmatpush2.msra.mxu0 0.0
    %4544 = vmatprep.subr.mxu0 0.0
    %4545 = vmatpush2.msra.mxu0 0.0
    %4546 = vmatprep.subr.mxu0 0.0
    %4547 = vmatpush2.msra.mxu0 0.0
    %4548 = vmatprep.subr.mxu0 0.0
    %4549 = vmatpush2.msra.mxu0 0.0
    %4550 = vmatprep.subr.mxu0 0.0
    %4551 = vmatpush2.msra.mxu0 0.0
    %4552 = vmatprep.subr.mxu0 0.0
    %4553 = vmatpush2.msra.mxu0 0.0
    %4554 = vmatprep.subr.mxu0 0.0
    %4555 = vmatpush2.msra.mxu0 0.0
    %4556 = vmatprep.subr.mxu0 0.0
    %4557 = vmatpush2.msra.mxu0 0.0
    %4558 = vmatprep.subr.mxu0 0.0
    %4559 = vmatpush2.msra.mxu0 0.0
    %4560 = vmatprep.mubr.f32.mxu0 0.0
    %4561 = vmatmul.mubr.f32.gmra.mxu0 %v4494
    %v4562 = vpop.f32.mrf.mxu0
    %v4563 = vadd.f32 %v4492, %v4562
    %v4564 = vpop.f32.mrf.mxu0
    %4565 = vdwg.mxu0
    %4566 = vst [vmem:[#allocation4 + $0x1] sm:$0x1] %v4563
    // Predicated region
    $region38: #{cnn_forward.1} parent=1 // pred_check
      _
    $region39: #{cnn_forward.1} parent=1 // pred_check_branch
      %4568 = sbr.rel (0) target = $region41
    $region40: #{cnn_forward.1} parent=1 // pred_region
      %s4570 = ssub.s32 32, 32
      %4571 = vsyncadd [#allocation5], %s4570
      %s4573 = sshll.u32 [#allocation4], 4
      %s4574 = int_to_ptr.vmem [resolvable:$true] %s4573
      %4576 = dma.vmem_to_hbm [thread:$0]  %s4574, 32, %s9, [#allocation5]
    $region41: #{cnn_forward.1} parent=1 // pred_fallthru
      _
    // Predicated region
    $region42: #{cnn_forward.1} parent=1 // pred_check
      _
    $region43: #{cnn_forward.1} parent=1 // pred_check_branch
      %4578 = sbr.rel (0) target = $region45
    $region44: #{cnn_forward.1} parent=1 // pred_region
      %4579 = dma.done [#allocation5], 32
    $region45: #{cnn_forward.1} parent=1 // pred_fallthru
      _
    %4580 = vsyncpa [#allocation5], 1

</llo_original>
